<compile_context>
chip_gen: v5e
topology: v5e:2x2
jax: 0.10.0
libtpu: 0.0.40
codegen_flags: <defaults>
</compile_context>

<pallas_src>
import numpy as np
import jax
import jax.numpy as jnp
from jax.experimental import pallas as pl
from jax.experimental.pallas import tpu as pltpu


# sigmoid(x)*255 (uint8-truncated) > 127  <=>  sigmoid(x) >= 128/255  <=>  x >= log(128/127)
_LOGIT_128_255 = float(np.log(128.0 / 127.0))


def _round_up(x, m):
    return ((int(x) + m - 1) // m) * m


def _interp_matrix_np(out_size, in_size):
    """Row-interpolation matrix for F.interpolate(bilinear, align_corners=True)."""
    R = np.zeros((out_size, in_size), np.float32)
    if out_size == 0 or in_size == 0:
        return R
    if in_size == 1:
        R[:, 0] = 1.0
        return R
    if out_size == 1:
        R[0, 0] = 1.0
        return R
    src = np.arange(out_size, dtype=np.float64) * (in_size - 1) / (out_size - 1)
    i0 = np.minimum(np.floor(src).astype(np.int64), in_size - 1)
    i1 = np.minimum(i0 + 1, in_size - 1)
    w = (src - i0).astype(np.float32)
    R[np.arange(out_size), i0] += (1.0 - w)
    R[np.arange(out_size), i1] += w
    return R


def _tps_solve_np(X, Y):
    """Tiny (k+3)x(k+3) TPS solve (same math as the torch TPS module), on host."""
    X = X.astype(np.float32)
    Y = Y.astype(np.float32)
    k = X.shape[0]
    eps = 1e-9
    D2 = ((X[:, None, :] - X[None, :, :]) ** 2).sum(-1)
    K = D2 * np.log(D2 + eps)
    P = np.concatenate([np.ones((k, 1), np.float32), X], axis=1)
    L = np.zeros((k + 3, k + 3), np.float32)
    L[:k, :k] = K
    L[:k, k:] = P
    L[k:, :k] = P.T
    Z = np.zeros((k + 3, 2), np.float32)
    Z[:k] = Y
    Q = np.linalg.solve(L, Z)
    return Q[:k].astype(np.float32), Q[k:].astype(np.float32)   # W (k,2), A (3,2)


def _prepare_line(kernel_points, box_widths, box_heights, img_h, img_w, out_height):
    """Host-side geometry prep for one text line (mirrors PyTorch trans_line)."""
    kp = np.asarray(kernel_points, dtype=np.int64)        # (n, 2, 2)
    bw = [float(v) for v in box_widths]
    bh = [float(v) for v in box_heights]
    mbh = int(max(bh))

    xs, ys = kp[..., 0], kp[..., 1]
    margin_x = max(0, int(xs.min()))
    margin_y = max(0, int(ys.min()))
    margin_w = min(int(xs.max() - xs.min() + 1), img_w - margin_x)   # cv2.boundingRect
    margin_h = min(int(ys.max() - ys.min() + 1), img_h - margin_y)

    pad_w = int(sum(bw) - margin_w)
    line_w = margin_w + pad_w if pad_w > 0 else margin_w             # crop + right zero-pad
    line_h = margin_h

    kpl = kp.copy()
    kpl[:, :, 0] -= margin_x
    kpl[:, :, 1] -= margin_y

    point_source, point_target = [], []
    sum_w = 0.0
    for i in range(len(kpl)):
        if i > 0:
            sum_w += bw[i - 1]
        point_source.append(kpl[i, 0])
        point_source.append(kpl[i, 1])
        point_target.append([int(sum_w), 0])
        point_target.append([int(sum_w), mbh - 1])
    point_source = np.asarray(point_source, np.float64)
    point_target = np.asarray(point_target, np.float64)

    def norm(p):   # point_norm: pixel -> [-1, 1]
        x = p[:, 0] * 2.0 / (line_w - 1) - 1.0
        y = p[:, 1] * 2.0 / (line_h - 1) - 1.0
        return np.stack([x, y], axis=-1).astype(np.float32)

    Xn = norm(point_target)        # TPS "X" (targets)
    Yn = norm(point_source)        # TPS "Y" (sources)
    Wm, Am = _tps_solve_np(Xn, Yn)

    eff_h = min(line_h, mbh)       # rows kept by ten_wrp[:, :, :max_box_height, :]
    size_w = max(1, int(line_w * out_height / mbh))
    return dict(line_w=line_w, line_h=line_h, margin_x=margin_x, margin_y=margin_y,
                margin_w=margin_w, eff_h=eff_h, size_w=size_w,
                X=Xn, W=Wm, A=Am, top_left=[int(xs.min()), int(ys.min())])


def _make_connect_kernel(C, Hf, Wf, PH, PW, LINE_H, W_PAD, MAXK, NGEO):
    """Fused per-line kernel: TPS warp grid -> separable bilinear grid_sample
    (zeros padding, align_corners=True) -> bilinear resize + 16-lane packing,
    all as VMEM-resident matmuls. One grid step == one text line."""

    def kernel(bidx_ref, par_ref, feat_ref, rh_ref, rwt_ref, out_ref, s_ref):
        del bidx_ref  # only consumed by the index_maps
        l = pl.program_id(0)

        lw = par_ref[l, 0]          # line (crop + right-pad) width
        lh = par_ref[l, 1]          # line (crop) height
        mx = par_ref[l, 2]          # crop x offset in the full feature map
        my = par_ref[l, 3]          # crop y offset
        mw = par_ref[l, 4]          # real (non zero-padded) crop width

        # --- TPS warp of the regular target grid, lane-dense (PH, PW) plane ---
        r_i = jax.lax.broadcasted_iota(jnp.int32, (PH, PW), 0).astype(jnp.float32)
        c_i = jax.lax.broadcasted_iota(jnp.int32, (PH, PW), 1).astype(jnp.float32)
        gx = c_i * (2.0 / jnp.maximum(lw - 1.0, 1.0)) - 1.0
        gy = r_i * (2.0 / jnp.maximum(lh - 1.0, 1.0)) - 1.0

        warp_x = par_ref[l, 5] + gx * par_ref[l, 6] + gy * par_ref[l, 7]
        warp_y = par_ref[l, 8] + gx * par_ref[l, 9] + gy * par_ref[l, 10]
        for j in range(MAXK):                    # zero-padded control points add 0
            base = NGEO + 4 * j
            xj = par_ref[l, base + 0]
            yj = par_ref[l, base + 1]
            d2 = (gx - xj) ** 2 + (gy - yj) ** 2
            u = d2 * jnp.log(d2 + 1e-9)          # TPS radial basis (EUP log)
            warp_x = warp_x + u * par_ref[l, base + 2]
            warp_y = warp_y + u * par_ref[l, base + 3]

        # denormalize to pixel coords of the (virtual) cropped line
        px = (warp_x + 1.0) * 0.5 * (lw - 1.0)
        py = (warp_y + 1.0) * 0.5 * (lh - 1.0)
        x0 = jnp.floor(px)
        y0 = jnp.floor(py)
        fx = px - x0
        fy = py - y0

        featf = feat_ref[0]                                           # (C*Hf, Wf)
        xio = jax.lax.broadcasted_iota(jnp.int32, (Wf, PW), 0).astype(jnp.float32)
        yio = jax.lax.broadcasted_iota(jnp.int32, (Hf, PW), 0).astype(jnp.float32)

        # --- separable grid_sample: per plane row, x-interp = one-hot MXU matmul
        #     against the channel-stacked feature, y-pick = one-hot multiply +
        #     sublane reduce.  The crop is folded in via (mx, my) offsets and the
        #     (mw, lh) validity masks (right zero-pad + zeros padding_mode).
        # TODO(synk): PH is statically unrolled; very tall crops would want a
        # lax.fori_loop + pl.ds variant.
        for r in range(PH):
            rx0 = x0[r:r + 1, :]
            ry0 = y0[r:r + 1, :]
            rfx = fx[r:r + 1, :]
            rfy = fy[r:r + 1, :]

            ox_m = jnp.zeros((Wf, PW), jnp.float32)
            for dx in (0, 1):
                cx = rx0 + float(dx)
                wgt = rfx if dx else (1.0 - rfx)
                valid = ((cx >= 0.0) & (cx <= mw - 1.0)).astype(jnp.float32)
                col = jnp.clip(cx, 0.0, mw - 1.0) + mx
                ox_m = ox_m + (xio == col).astype(jnp.float32) * (wgt * valid)

            oy_m = jnp.zeros((Hf, PW), jnp.float32)
            for dy in (0, 1):
                cy = ry0 + float(dy)
                wgt = rfy if dy else (1.0 - rfy)
                valid = ((cy >= 0.0) & (cy <= lh - 1.0)).astype(jnp.float32)
                row = jnp.clip(cy, 0.0, lh - 1.0) + my
                oy_m = oy_m + (yio == row).astype(jnp.float32) * (wgt * valid)

            xint = jnp.dot(featf, ox_m, preferred_element_type=jnp.float32)   # (C*Hf, PW)
            for ch in range(C):
                srow = jnp.sum(oy_m * xint[ch * Hf:(ch + 1) * Hf, :],
                               axis=0, keepdims=True)                          # (1, PW)
                s_ref[ch * PH + r:ch * PH + r + 1, :] = srow

        # --- resize (align_corners=True) + packing folded into two matmuls:
        #     out[ch] = Rh @ S[ch] @ Rw^T, with Rw^T already carrying the
        #     16-column offset and the zero margins of the packed slab.
        rh = rh_ref[0]                                          # (LINE_H, PH)
        rwt = rwt_ref[0]                                        # (PW, W_PAD)
        u_all = jnp.dot(s_ref[...], rwt, preferred_element_type=jnp.float32)  # (C*PH, W_PAD)
        for ch in range(C):
            out_ref[0, ch] = jnp.dot(rh, u_all[ch * PH:(ch + 1) * PH, :],
                                     preferred_element_type=jnp.float32)

    return kernel


class ConnectPallas:
    """Inference branch (gt_boxes=None) of the PyTorch `Connect` module."""

    def __init__(self, line_height):
        self.Line_Height = int(line_height)

    def forward(self, kernels, features, line_specs):
        B, C, H, W = features.shape

        # (sigmoid*255).astype(uint8) > 127  ==  kernels >= log(128/127); pure XLA.
        binary = kernels >= _LOGIT_128_255

        # TODO(synk): cv2.findContours / get_trans_points / approxPolyDP have no
        # Pallas equivalent; the per-line control points come via `line_specs`.
        # TODO(synk): training branch (gt_boxes path) needs external `perspective`
        # + python `random` augmentation; not implemented.

        lines, sub_img_nums, line_top_lefts, line_contours = [], [], [], []
        for b in range(B):
            tops = []
            for (kp, bw, bh) in line_specs[b]:
                info = _prepare_line(kp, bw, bh, H, W, self.Line_Height)
                info["batch"] = b
                lines.append(info)
                tops.append(info["top_left"])
            sub_img_nums.append(len(line_specs[b]))
            line_top_lefts.append(tops)
            line_contours.append([])

        L = len(lines)
        if L == 0:
            out = jnp.zeros((0, C, self.Line_Height, 32), jnp.float32)
            return out, sub_img_nums, line_top_lefts, line_contours, binary

        LINE_H = self.Line_Height
        MAXK = max(li["X"].shape[0] for li in lines)
        PH = max(8, _round_up(max(li["line_h"] for li in lines), 8))
        PW = max(128, _round_up(max(li["line_w"] for li in lines), 128))
        max_len = max(li["size_w"] for li in lines)
        out_w = max_len + 32
        W_PAD = max(128, _round_up(out_w, 128))          # lane-dense kernel output
        NGEO = 11
        PLEN = NGEO + 4 * MAXK

        params = np.zeros((L, PLEN), np.float32)
        rh_all = np.zeros((L, LINE_H, PH), np.float32)
        rwt_all = np.zeros((L, PW, W_PAD), np.float32)
        bidx = np.zeros((L,), np.int32)
        for i, li in enumerate(lines):
            bidx[i] = li["batch"]
            params[i, 0] = li["line_w"]
            params[i, 1] = li["line_h"]
            params[i, 2] = li["margin_x"]
            params[i, 3] = li["margin_y"]
            params[i, 4] = li["margin_w"]
            params[i, 5:8] = li["A"][:, 0]
            params[i, 8:11] = li["A"][:, 1]
            k = li["X"].shape[0]
            params[i, NGEO + 0:NGEO + 4 * k:4] = li["X"][:, 0]
            params[i, NGEO + 1:NGEO + 4 * k:4] = li["X"][:, 1]
            params[i, NGEO + 2:NGEO + 4 * k:4] = li["W"][:, 0]
            params[i, NGEO + 3:NGEO + 4 * k:4] = li["W"][:, 1]
            # height interp (implicitly truncates to eff_h rows) ...
            rh_all[i, :, :li["eff_h"]] = _interp_matrix_np(LINE_H, li["eff_h"])
            # ... width interp with the packing (+16 lane offset) folded in.
            rw = _interp_matrix_np(li["size_w"], li["line_w"])          # (size_w, line_w)
            rwt_all[i, :li["line_w"], 16:16 + li["size_w"]] = rw.T

        # channel-stacked feature so the sample matmul batches over channels
        features_flat = features.astype(jnp.float32).reshape(B, C * H, W)

        kernel = _make_connect_kernel(C, H, W, PH, PW, LINE_H, W_PAD, MAXK, NGEO)
        grid_spec = pltpu.PrefetchScalarGridSpec(
            num_scalar_prefetch=1,                       # per-line batch index
            grid=(L,),
            in_specs=[
                pl.BlockSpec(memory_space=pltpu.MemorySpace.SMEM),          # per-line params
                pl.BlockSpec((1, C * H, W), lambda l, bi: (bi[l], 0, 0)),   # line's image
                pl.BlockSpec((1, LINE_H, PH), lambda l, bi: (l, 0, 0)),     # Rh
                pl.BlockSpec((1, PW, W_PAD), lambda l, bi: (l, 0, 0)),      # Rw^T (packed)
            ],
            out_specs=pl.BlockSpec((1, C, LINE_H, W_PAD),
                                   lambda l, bi: (l, 0, 0, 0)),
            scratch_shapes=[pltpu.VMEM((C * PH, PW), jnp.float32)],         # sampled S
        )
        out_pad = pl.pallas_call(
            kernel,
            out_shape=jax.ShapeDtypeStruct((L, C, LINE_H, W_PAD), jnp.float32),
            grid_spec=grid_spec,
            compiler_params=pltpu.CompilerParams(
                dimension_semantics=("parallel",)),      # v7x: split lines across TCs
        )(jnp.asarray(bidx), jnp.asarray(params), features_flat,
          jnp.asarray(rh_all), jnp.asarray(rwt_all))

        out = out_pad[:, :, :, :out_w]                   # module-exact output width
        return out, sub_img_nums, line_top_lefts, line_contours, binary


# ----------------------------------------------------------------------------
if __name__ == "__main__":
    key = jax.random.PRNGKey(0)
    B, C, H, W = 2, 4, 16, 16
    LINE_HEIGHT = 8
    k1, k2 = jax.random.split(key)
    kernels = jax.random.normal(k1, (B, H, W), jnp.float32)
    features = jax.random.normal(k2, (B, C, H, W), jnp.float32)

    # Deterministic synthetic line geometry (normally produced by the cv2 pipeline):
    # each entry = (kernel_points (n,2,2) int, box_widths (n-1,), box_heights (n,))
    line_specs = [
        [  # image 0: one text line, 4 center points
            (np.array([[[2, 4], [2, 9]],
                       [[6, 3], [6, 8]],
                       [[10, 4], [10, 9]],
                       [[14, 5], [14, 10]]]),
             [4.0, 4.0, 4.0],
             [6.0, 6.0, 6.0, 6.0]),
        ],
        [  # image 1: one text line, 3 center points
            (np.array([[[1, 6], [1, 11]],
                       [[7, 5], [7, 10]],
                       [[13, 6], [13, 11]]]),
             [6.0, 6.0],
             [6.0, 6.0, 6.0]),
        ],
    ]

    connect = ConnectPallas(LINE_HEIGHT)
    out, sub_img_nums, line_top_lefts, line_contours, binary = connect.forward(
        kernels, features, line_specs)
    jax.block_until_ready(out)
    jax.block_until_ready(binary)
    assert out.shape[0] == sum(sub_img_nums)
    assert out.shape[2] == LINE_HEIGHT
    assert bool(jnp.all(jnp.isfinite(out)))
    print("KERNEL_OK")
</pallas_src>

<mosaic_0001>
module attributes {stable_mosaic.version = 11 : i64} {
  func.func @kernel(%arg0: i32, %arg1: memref<2xi32, #tpu.memory_space<smem>>, %arg2: memref<2x43xf32, #tpu.memory_space<smem>>, %arg3: memref<1x64x16xf32, #tpu.memory_space<vmem>>, %arg4: memref<1x8x8xf32, #tpu.memory_space<vmem>>, %arg5: memref<1x128x128xf32, #tpu.memory_space<vmem>>, %arg6: memref<1x4x8x128xf32, #tpu.memory_space<vmem>>, %arg7: memref<32x128xf32, #tpu.memory_space<vmem>>) attributes {dimension_semantics = [#tpu.dimension_semantics<parallel>], iteration_bounds = array<i64: 2>, scalar_prefetch = 1 : i64, scratch_operands = 1 : i64, tpu.core_type = #tpu.core_type<tc>, window_params = [{transform_indices = @transform_0, window_bounds = array<i64: 2, 43>}, {transform_indices = @transform_1, window_bounds = array<i64: 1, 64, 16>}, {transform_indices = @transform_2, window_bounds = array<i64: 1, 8, 8>}, {transform_indices = @transform_3, window_bounds = array<i64: 1, 128, 128>}, {transform_indices = @transform_4, window_bounds = array<i64: 1, 4, 8, 128>}]} {
    %0 = arith.index_cast %arg0 : i32 to index
    %c0 = arith.constant 0 : index
    %1 = memref.load %arg2[%0, %c0] : memref<2x43xf32, #tpu.memory_space<smem>>
    %2 = arith.index_cast %arg0 : i32 to index
    %c1 = arith.constant 1 : index
    %3 = memref.load %arg2[%2, %c1] : memref<2x43xf32, #tpu.memory_space<smem>>
    %4 = arith.index_cast %arg0 : i32 to index
    %c2 = arith.constant 2 : index
    %5 = memref.load %arg2[%4, %c2] : memref<2x43xf32, #tpu.memory_space<smem>>
    %6 = arith.index_cast %arg0 : i32 to index
    %c3 = arith.constant 3 : index
    %7 = memref.load %arg2[%6, %c3] : memref<2x43xf32, #tpu.memory_space<smem>>
    %8 = arith.index_cast %arg0 : i32 to index
    %c4 = arith.constant 4 : index
    %9 = memref.load %arg2[%8, %c4] : memref<2x43xf32, #tpu.memory_space<smem>>
    %10 = tpu.iota {dimensions = array<i32: 0>} : vector<8x128xi32>
    %11 = arith.sitofp %10 : vector<8x128xi32> to vector<8x128xf32>
    %12 = tpu.iota {dimensions = array<i32: 1>} : vector<8x128xi32>
    %13 = arith.sitofp %12 : vector<8x128xi32> to vector<8x128xf32>
    %cst = arith.constant 1.000000e+00 : f32
    %14 = arith.subf %1, %cst : f32
    %cst_0 = arith.constant 1.000000e+00 : f32
    %15 = arith.maximumf %14, %cst_0 : f32
    %cst_1 = arith.constant 2.000000e+00 : f32
    %16 = arith.divf %cst_1, %15 : f32
    %17 = vector.broadcast %16 : f32 to vector<8x128xf32>
    %18 = arith.mulf %13, %17 : vector<8x128xf32>
    %cst_2 = arith.constant 1.000000e+00 : f32
    %19 = vector.broadcast %cst_2 : f32 to vector<8x128xf32>
    %20 = arith.subf %18, %19 : vector<8x128xf32>
    %cst_3 = arith.constant 1.000000e+00 : f32
    %21 = arith.subf %3, %cst_3 : f32
    %cst_4 = arith.constant 1.000000e+00 : f32
    %22 = arith.maximumf %21, %cst_4 : f32
    %cst_5 = arith.constant 2.000000e+00 : f32
    %23 = arith.divf %cst_5, %22 : f32
    %24 = vector.broadcast %23 : f32 to vector<8x128xf32>
    %25 = arith.mulf %11, %24 : vector<8x128xf32>
    %cst_6 = arith.constant 1.000000e+00 : f32
    %26 = vector.broadcast %cst_6 : f32 to vector<8x128xf32>
    %27 = arith.subf %25, %26 : vector<8x128xf32>
    %28 = arith.index_cast %arg0 : i32 to index
    %c5 = arith.constant 5 : index
    %29 = memref.load %arg2[%28, %c5] : memref<2x43xf32, #tpu.memory_space<smem>>
    %30 = arith.index_cast %arg0 : i32 to index
    %c6 = arith.constant 6 : index
    %31 = memref.load %arg2[%30, %c6] : memref<2x43xf32, #tpu.memory_space<smem>>
    %32 = vector.broadcast %31 : f32 to vector<8x128xf32>
    %33 = arith.mulf %20, %32 : vector<8x128xf32>
    %34 = vector.broadcast %29 : f32 to vector<8x128xf32>
    %35 = arith.addf %34, %33 : vector<8x128xf32>
    %36 = arith.index_cast %arg0 : i32 to index
    %c7 = arith.constant 7 : index
    %37 = memref.load %arg2[%36, %c7] : memref<2x43xf32, #tpu.memory_space<smem>>
    %38 = vector.broadcast %37 : f32 to vector<8x128xf32>
    %39 = arith.mulf %27, %38 : vector<8x128xf32>
    %40 = arith.addf %35, %39 : vector<8x128xf32>
    %41 = arith.index_cast %arg0 : i32 to index
    %c8 = arith.constant 8 : index
    %42 = memref.load %arg2[%41, %c8] : memref<2x43xf32, #tpu.memory_space<smem>>
    %43 = arith.index_cast %arg0 : i32 to index
    %c9 = arith.constant 9 : index
    %44 = memref.load %arg2[%43, %c9] : memref<2x43xf32, #tpu.memory_space<smem>>
    %45 = vector.broadcast %44 : f32 to vector<8x128xf32>
    %46 = arith.mulf %20, %45 : vector<8x128xf32>
    %47 = vector.broadcast %42 : f32 to vector<8x128xf32>
    %48 = arith.addf %47, %46 : vector<8x128xf32>
    %49 = arith.index_cast %arg0 : i32 to index
    %c10 = arith.constant 10 : index
    %50 = memref.load %arg2[%49, %c10] : memref<2x43xf32, #tpu.memory_space<smem>>
    %51 = vector.broadcast %50 : f32 to vector<8x128xf32>
    %52 = arith.mulf %27, %51 : vector<8x128xf32>
    %53 = arith.addf %48, %52 : vector<8x128xf32>
    %54 = arith.index_cast %arg0 : i32 to index
    %c11 = arith.constant 11 : index
    %55 = memref.load %arg2[%54, %c11] : memref<2x43xf32, #tpu.memory_space<smem>>
    %56 = arith.index_cast %arg0 : i32 to index
    %c12 = arith.constant 12 : index
    %57 = memref.load %arg2[%56, %c12] : memref<2x43xf32, #tpu.memory_space<smem>>
    %58 = vector.broadcast %55 : f32 to vector<8x128xf32>
    %59 = arith.subf %20, %58 : vector<8x128xf32>
    %60 = arith.mulf %59, %59 : vector<8x128xf32>
    %61 = vector.broadcast %57 : f32 to vector<8x128xf32>
    %62 = arith.subf %27, %61 : vector<8x128xf32>
    %63 = arith.mulf %62, %62 : vector<8x128xf32>
    %64 = arith.addf %60, %63 : vector<8x128xf32>
    %cst_7 = arith.constant 9.99999971E-10 : f32
    %65 = vector.broadcast %cst_7 : f32 to vector<8x128xf32>
    %66 = arith.addf %64, %65 : vector<8x128xf32>
    %67 = math.log %66 : vector<8x128xf32>
    %68 = arith.mulf %64, %67 : vector<8x128xf32>
    %69 = arith.index_cast %arg0 : i32 to index
    %c13 = arith.constant 13 : index
    %70 = memref.load %arg2[%69, %c13] : memref<2x43xf32, #tpu.memory_space<smem>>
    %71 = vector.broadcast %70 : f32 to vector<8x128xf32>
    %72 = arith.mulf %68, %71 : vector<8x128xf32>
    %73 = arith.addf %40, %72 : vector<8x128xf32>
    %74 = arith.index_cast %arg0 : i32 to index
    %c14 = arith.constant 14 : index
    %75 = memref.load %arg2[%74, %c14] : memref<2x43xf32, #tpu.memory_space<smem>>
    %76 = vector.broadcast %75 : f32 to vector<8x128xf32>
    %77 = arith.mulf %68, %76 : vector<8x128xf32>
    %78 = arith.addf %53, %77 : vector<8x128xf32>
    %79 = arith.index_cast %arg0 : i32 to index
    %c15 = arith.constant 15 : index
    %80 = memref.load %arg2[%79, %c15] : memref<2x43xf32, #tpu.memory_space<smem>>
    %81 = arith.index_cast %arg0 : i32 to index
    %c16 = arith.constant 16 : index
    %82 = memref.load %arg2[%81, %c16] : memref<2x43xf32, #tpu.memory_space<smem>>
    %83 = vector.broadcast %80 : f32 to vector<8x128xf32>
    %84 = arith.subf %20, %83 : vector<8x128xf32>
    %85 = arith.mulf %84, %84 : vector<8x128xf32>
    %86 = vector.broadcast %82 : f32 to vector<8x128xf32>
    %87 = arith.subf %27, %86 : vector<8x128xf32>
    %88 = arith.mulf %87, %87 : vector<8x128xf32>
    %89 = arith.addf %85, %88 : vector<8x128xf32>
    %cst_8 = arith.constant 9.99999971E-10 : f32
    %90 = vector.broadcast %cst_8 : f32 to vector<8x128xf32>
    %91 = arith.addf %89, %90 : vector<8x128xf32>
    %92 = math.log %91 : vector<8x128xf32>
    %93 = arith.mulf %89, %92 : vector<8x128xf32>
    %94 = arith.index_cast %arg0 : i32 to index
    %c17 = arith.constant 17 : index
    %95 = memref.load %arg2[%94, %c17] : memref<2x43xf32, #tpu.memory_space<smem>>
    %96 = vector.broadcast %95 : f32 to vector<8x128xf32>
    %97 = arith.mulf %93, %96 : vector<8x128xf32>
    %98 = arith.addf %73, %97 : vector<8x128xf32>
    %99 = arith.index_cast %arg0 : i32 to index
    %c18 = arith.constant 18 : index
    %100 = memref.load %arg2[%99, %c18] : memref<2x43xf32, #tpu.memory_space<smem>>
    %101 = vector.broadcast %100 : f32 to vector<8x128xf32>
    %102 = arith.mulf %93, %101 : vector<8x128xf32>
    %103 = arith.addf %78, %102 : vector<8x128xf32>
    %104 = arith.index_cast %arg0 : i32 to index
    %c19 = arith.constant 19 : index
    %105 = memref.load %arg2[%104, %c19] : memref<2x43xf32, #tpu.memory_space<smem>>
    %106 = arith.index_cast %arg0 : i32 to index
    %c20 = arith.constant 20 : index
    %107 = memref.load %arg2[%106, %c20] : memref<2x43xf32, #tpu.memory_space<smem>>
    %108 = vector.broadcast %105 : f32 to vector<8x128xf32>
    %109 = arith.subf %20, %108 : vector<8x128xf32>
    %110 = arith.mulf %109, %109 : vector<8x128xf32>
    %111 = vector.broadcast %107 : f32 to vector<8x128xf32>
    %112 = arith.subf %27, %111 : vector<8x128xf32>
    %113 = arith.mulf %112, %112 : vector<8x128xf32>
    %114 = arith.addf %110, %113 : vector<8x128xf32>
    %cst_9 = arith.constant 9.99999971E-10 : f32
    %115 = vector.broadcast %cst_9 : f32 to vector<8x128xf32>
    %116 = arith.addf %114, %115 : vector<8x128xf32>
    %117 = math.log %116 : vector<8x128xf32>
    %118 = arith.mulf %114, %117 : vector<8x128xf32>
    %119 = arith.index_cast %arg0 : i32 to index
    %c21 = arith.constant 21 : index
    %120 = memref.load %arg2[%119, %c21] : memref<2x43xf32, #tpu.memory_space<smem>>
    %121 = vector.broadcast %120 : f32 to vector<8x128xf32>
    %122 = arith.mulf %118, %121 : vector<8x128xf32>
    %123 = arith.addf %98, %122 : vector<8x128xf32>
    %124 = arith.index_cast %arg0 : i32 to index
    %c22 = arith.constant 22 : index
    %125 = memref.load %arg2[%124, %c22] : memref<2x43xf32, #tpu.memory_space<smem>>
    %126 = vector.broadcast %125 : f32 to vector<8x128xf32>
    %127 = arith.mulf %118, %126 : vector<8x128xf32>
    %128 = arith.addf %103, %127 : vector<8x128xf32>
    %129 = arith.index_cast %arg0 : i32 to index
    %c23 = arith.constant 23 : index
    %130 = memref.load %arg2[%129, %c23] : memref<2x43xf32, #tpu.memory_space<smem>>
    %131 = arith.index_cast %arg0 : i32 to index
    %c24 = arith.constant 24 : index
    %132 = memref.load %arg2[%131, %c24] : memref<2x43xf32, #tpu.memory_space<smem>>
    %133 = vector.broadcast %130 : f32 to vector<8x128xf32>
    %134 = arith.subf %20, %133 : vector<8x128xf32>
    %135 = arith.mulf %134, %134 : vector<8x128xf32>
    %136 = vector.broadcast %132 : f32 to vector<8x128xf32>
    %137 = arith.subf %27, %136 : vector<8x128xf32>
    %138 = arith.mulf %137, %137 : vector<8x128xf32>
    %139 = arith.addf %135, %138 : vector<8x128xf32>
    %cst_10 = arith.constant 9.99999971E-10 : f32
    %140 = vector.broadcast %cst_10 : f32 to vector<8x128xf32>
    %141 = arith.addf %139, %140 : vector<8x128xf32>
    %142 = math.log %141 : vector<8x128xf32>
    %143 = arith.mulf %139, %142 : vector<8x128xf32>
    %144 = arith.index_cast %arg0 : i32 to index
    %c25 = arith.constant 25 : index
    %145 = memref.load %arg2[%144, %c25] : memref<2x43xf32, #tpu.memory_space<smem>>
    %146 = vector.broadcast %145 : f32 to vector<8x128xf32>
    %147 = arith.mulf %143, %146 : vector<8x128xf32>
    %148 = arith.addf %123, %147 : vector<8x128xf32>
    %149 = arith.index_cast %arg0 : i32 to index
    %c26 = arith.constant 26 : index
    %150 = memref.load %arg2[%149, %c26] : memref<2x43xf32, #tpu.memory_space<smem>>
    %151 = vector.broadcast %150 : f32 to vector<8x128xf32>
    %152 = arith.mulf %143, %151 : vector<8x128xf32>
    %153 = arith.addf %128, %152 : vector<8x128xf32>
    %154 = arith.index_cast %arg0 : i32 to index
    %c27 = arith.constant 27 : index
    %155 = memref.load %arg2[%154, %c27] : memref<2x43xf32, #tpu.memory_space<smem>>
    %156 = arith.index_cast %arg0 : i32 to index
    %c28 = arith.constant 28 : index
    %157 = memref.load %arg2[%156, %c28] : memref<2x43xf32, #tpu.memory_space<smem>>
    %158 = vector.broadcast %155 : f32 to vector<8x128xf32>
    %159 = arith.subf %20, %158 : vector<8x128xf32>
    %160 = arith.mulf %159, %159 : vector<8x128xf32>
    %161 = vector.broadcast %157 : f32 to vector<8x128xf32>
    %162 = arith.subf %27, %161 : vector<8x128xf32>
    %163 = arith.mulf %162, %162 : vector<8x128xf32>
    %164 = arith.addf %160, %163 : vector<8x128xf32>
    %cst_11 = arith.constant 9.99999971E-10 : f32
    %165 = vector.broadcast %cst_11 : f32 to vector<8x128xf32>
    %166 = arith.addf %164, %165 : vector<8x128xf32>
    %167 = math.log %166 : vector<8x128xf32>
    %168 = arith.mulf %164, %167 : vector<8x128xf32>
    %169 = arith.index_cast %arg0 : i32 to index
    %c29 = arith.constant 29 : index
    %170 = memref.load %arg2[%169, %c29] : memref<2x43xf32, #tpu.memory_space<smem>>
    %171 = vector.broadcast %170 : f32 to vector<8x128xf32>
    %172 = arith.mulf %168, %171 : vector<8x128xf32>
    %173 = arith.addf %148, %172 : vector<8x128xf32>
    %174 = arith.index_cast %arg0 : i32 to index
    %c30 = arith.constant 30 : index
    %175 = memref.load %arg2[%174, %c30] : memref<2x43xf32, #tpu.memory_space<smem>>
    %176 = vector.broadcast %175 : f32 to vector<8x128xf32>
    %177 = arith.mulf %168, %176 : vector<8x128xf32>
    %178 = arith.addf %153, %177 : vector<8x128xf32>
    %179 = arith.index_cast %arg0 : i32 to index
    %c31 = arith.constant 31 : index
    %180 = memref.load %arg2[%179, %c31] : memref<2x43xf32, #tpu.memory_space<smem>>
    %181 = arith.index_cast %arg0 : i32 to index
    %c32 = arith.constant 32 : index
    %182 = memref.load %arg2[%181, %c32] : memref<2x43xf32, #tpu.memory_space<smem>>
    %183 = vector.broadcast %180 : f32 to vector<8x128xf32>
    %184 = arith.subf %20, %183 : vector<8x128xf32>
    %185 = arith.mulf %184, %184 : vector<8x128xf32>
    %186 = vector.broadcast %182 : f32 to vector<8x128xf32>
    %187 = arith.subf %27, %186 : vector<8x128xf32>
    %188 = arith.mulf %187, %187 : vector<8x128xf32>
    %189 = arith.addf %185, %188 : vector<8x128xf32>
    %cst_12 = arith.constant 9.99999971E-10 : f32
    %190 = vector.broadcast %cst_12 : f32 to vector<8x128xf32>
    %191 = arith.addf %189, %190 : vector<8x128xf32>
    %192 = math.log %191 : vector<8x128xf32>
    %193 = arith.mulf %189, %192 : vector<8x128xf32>
    %194 = arith.index_cast %arg0 : i32 to index
    %c33 = arith.constant 33 : index
    %195 = memref.load %arg2[%194, %c33] : memref<2x43xf32, #tpu.memory_space<smem>>
    %196 = vector.broadcast %195 : f32 to vector<8x128xf32>
    %197 = arith.mulf %193, %196 : vector<8x128xf32>
    %198 = arith.addf %173, %197 : vector<8x128xf32>
    %199 = arith.index_cast %arg0 : i32 to index
    %c34 = arith.constant 34 : index
    %200 = memref.load %arg2[%199, %c34] : memref<2x43xf32, #tpu.memory_space<smem>>
    %201 = vector.broadcast %200 : f32 to vector<8x128xf32>
    %202 = arith.mulf %193, %201 : vector<8x128xf32>
    %203 = arith.addf %178, %202 : vector<8x128xf32>
    %204 = arith.index_cast %arg0 : i32 to index
    %c35 = arith.constant 35 : index
    %205 = memref.load %arg2[%204, %c35] : memref<2x43xf32, #tpu.memory_space<smem>>
    %206 = arith.index_cast %arg0 : i32 to index
    %c36 = arith.constant 36 : index
    %207 = memref.load %arg2[%206, %c36] : memref<2x43xf32, #tpu.memory_space<smem>>
    %208 = vector.broadcast %205 : f32 to vector<8x128xf32>
    %209 = arith.subf %20, %208 : vector<8x128xf32>
    %210 = arith.mulf %209, %209 : vector<8x128xf32>
    %211 = vector.broadcast %207 : f32 to vector<8x128xf32>
    %212 = arith.subf %27, %211 : vector<8x128xf32>
    %213 = arith.mulf %212, %212 : vector<8x128xf32>
    %214 = arith.addf %210, %213 : vector<8x128xf32>
    %cst_13 = arith.constant 9.99999971E-10 : f32
    %215 = vector.broadcast %cst_13 : f32 to vector<8x128xf32>
    %216 = arith.addf %214, %215 : vector<8x128xf32>
    %217 = math.log %216 : vector<8x128xf32>
    %218 = arith.mulf %214, %217 : vector<8x128xf32>
    %219 = arith.index_cast %arg0 : i32 to index
    %c37 = arith.constant 37 : index
    %220 = memref.load %arg2[%219, %c37] : memref<2x43xf32, #tpu.memory_space<smem>>
    %221 = vector.broadcast %220 : f32 to vector<8x128xf32>
    %222 = arith.mulf %218, %221 : vector<8x128xf32>
    %223 = arith.addf %198, %222 : vector<8x128xf32>
    %224 = arith.index_cast %arg0 : i32 to index
    %c38 = arith.constant 38 : index
    %225 = memref.load %arg2[%224, %c38] : memref<2x43xf32, #tpu.memory_space<smem>>
    %226 = vector.broadcast %225 : f32 to vector<8x128xf32>
    %227 = arith.mulf %218, %226 : vector<8x128xf32>
    %228 = arith.addf %203, %227 : vector<8x128xf32>
    %229 = arith.index_cast %arg0 : i32 to index
    %c39 = arith.constant 39 : index
    %230 = memref.load %arg2[%229, %c39] : memref<2x43xf32, #tpu.memory_space<smem>>
    %231 = arith.index_cast %arg0 : i32 to index
    %c40 = arith.constant 40 : index
    %232 = memref.load %arg2[%231, %c40] : memref<2x43xf32, #tpu.memory_space<smem>>
    %233 = vector.broadcast %230 : f32 to vector<8x128xf32>
    %234 = arith.subf %20, %233 : vector<8x128xf32>
    %235 = arith.mulf %234, %234 : vector<8x128xf32>
    %236 = vector.broadcast %232 : f32 to vector<8x128xf32>
    %237 = arith.subf %27, %236 : vector<8x128xf32>
    %238 = arith.mulf %237, %237 : vector<8x128xf32>
    %239 = arith.addf %235, %238 : vector<8x128xf32>
    %cst_14 = arith.constant 9.99999971E-10 : f32
    %240 = vector.broadcast %cst_14 : f32 to vector<8x128xf32>
    %241 = arith.addf %239, %240 : vector<8x128xf32>
    %242 = math.log %241 : vector<8x128xf32>
    %243 = arith.mulf %239, %242 : vector<8x128xf32>
    %244 = arith.index_cast %arg0 : i32 to index
    %c41 = arith.constant 41 : index
    %245 = memref.load %arg2[%244, %c41] : memref<2x43xf32, #tpu.memory_space<smem>>
    %246 = vector.broadcast %245 : f32 to vector<8x128xf32>
    %247 = arith.mulf %243, %246 : vector<8x128xf32>
    %248 = arith.addf %223, %247 : vector<8x128xf32>
    %249 = arith.index_cast %arg0 : i32 to index
    %c42 = arith.constant 42 : index
    %250 = memref.load %arg2[%249, %c42] : memref<2x43xf32, #tpu.memory_space<smem>>
    %251 = vector.broadcast %250 : f32 to vector<8x128xf32>
    %252 = arith.mulf %243, %251 : vector<8x128xf32>
    %253 = arith.addf %228, %252 : vector<8x128xf32>
    %cst_15 = arith.constant 1.000000e+00 : f32
    %254 = vector.broadcast %cst_15 : f32 to vector<8x128xf32>
    %255 = arith.addf %248, %254 : vector<8x128xf32>
    %cst_16 = arith.constant 5.000000e-01 : f32
    %256 = vector.broadcast %cst_16 : f32 to vector<8x128xf32>
    %257 = arith.mulf %255, %256 : vector<8x128xf32>
    %cst_17 = arith.constant 1.000000e+00 : f32
    %258 = arith.subf %1, %cst_17 : f32
    %259 = vector.broadcast %258 : f32 to vector<8x128xf32>
    %260 = arith.mulf %257, %259 : vector<8x128xf32>
    %cst_18 = arith.constant 1.000000e+00 : f32
    %261 = vector.broadcast %cst_18 : f32 to vector<8x128xf32>
    %262 = arith.addf %253, %261 : vector<8x128xf32>
    %cst_19 = arith.constant 5.000000e-01 : f32
    %263 = vector.broadcast %cst_19 : f32 to vector<8x128xf32>
    %264 = arith.mulf %262, %263 : vector<8x128xf32>
    %cst_20 = arith.constant 1.000000e+00 : f32
    %265 = arith.subf %3, %cst_20 : f32
    %266 = vector.broadcast %265 : f32 to vector<8x128xf32>
    %267 = arith.mulf %264, %266 : vector<8x128xf32>
    %268 = math.floor %260 : vector<8x128xf32>
    %269 = math.floor %267 : vector<8x128xf32>
    %270 = arith.subf %260, %268 : vector<8x128xf32>
    %271 = arith.subf %267, %269 : vector<8x128xf32>
    %c0_21 = arith.constant 0 : index
    %c0_22 = arith.constant 0 : index
    %c0_23 = arith.constant 0 : index
    %272 = vector.load %arg3[%c0_21, %c0_22, %c0_23] : memref<1x64x16xf32, #tpu.memory_space<vmem>>, vector<1x64x16xf32>
    %273 = vector.shape_cast %272 : vector<1x64x16xf32> to vector<64x16xf32>
    %274 = tpu.iota {dimensions = array<i32: 0>} : vector<16x128xi32>
    %275 = arith.sitofp %274 : vector<16x128xi32> to vector<16x128xf32>
    %276 = tpu.iota {dimensions = array<i32: 0>} : vector<16x128xi32>
    %277 = arith.sitofp %276 : vector<16x128xi32> to vector<16x128xf32>
    %278 = vector.extract_strided_slice %268 {offsets = [0, 0], sizes = [1, 128], strides = [1, 1]} : vector<8x128xf32> to vector<1x128xf32>
    %279 = vector.extract_strided_slice %269 {offsets = [0, 0], sizes = [1, 128], strides = [1, 1]} : vector<8x128xf32> to vector<1x128xf32>
    %280 = vector.extract_strided_slice %270 {offsets = [0, 0], sizes = [1, 128], strides = [1, 1]} : vector<8x128xf32> to vector<1x128xf32>
    %281 = vector.extract_strided_slice %271 {offsets = [0, 0], sizes = [1, 128], strides = [1, 1]} : vector<8x128xf32> to vector<1x128xf32>
    %cst_24 = arith.constant 0.000000e+00 : f32
    %282 = vector.broadcast %cst_24 : f32 to vector<16x128xf32>
    %cst_25 = arith.constant 0.000000e+00 : f32
    %283 = vector.broadcast %cst_25 : f32 to vector<1x128xf32>
    %284 = arith.addf %278, %283 : vector<1x128xf32>
    %cst_26 = arith.constant 1.000000e+00 : f32
    %285 = vector.broadcast %cst_26 : f32 to vector<1x128xf32>
    %286 = arith.subf %285, %280 : vector<1x128xf32>
    %cst_27 = arith.constant 0.000000e+00 : f32
    %287 = vector.broadcast %cst_27 : f32 to vector<1x128xf32>
    %288 = arith.cmpf oge, %284, %287 : vector<1x128xf32>
    %cst_28 = arith.constant 1.000000e+00 : f32
    %289 = arith.subf %9, %cst_28 : f32
    %290 = vector.broadcast %289 : f32 to vector<1x128xf32>
    %291 = arith.cmpf ole, %284, %290 : vector<1x128xf32>
    %292 = arith.andi %288, %291 : vector<1x128xi1>
    %293 = arith.extui %292 : vector<1x128xi1> to vector<1x128xi32>
    %294 = arith.sitofp %293 : vector<1x128xi32> to vector<1x128xf32>
    %cst_29 = arith.constant 1.000000e+00 : f32
    %295 = arith.subf %9, %cst_29 : f32
    %cst_30 = arith.constant 0.000000e+00 : f32
    %296 = vector.broadcast %cst_30 : f32 to vector<1x128xf32>
    %297 = arith.maximumf %296, %284 : vector<1x128xf32>
    %298 = vector.broadcast %295 : f32 to vector<1x128xf32>
    %299 = arith.minimumf %298, %297 : vector<1x128xf32>
    %300 = vector.broadcast %5 : f32 to vector<1x128xf32>
    %301 = arith.addf %299, %300 : vector<1x128xf32>
    %302 = vector.broadcast %301 : vector<1x128xf32> to vector<16x128xf32>
    %303 = arith.cmpf oeq, %275, %302 : vector<16x128xf32>
    %304 = arith.extui %303 : vector<16x128xi1> to vector<16x128xi32>
    %305 = arith.sitofp %304 : vector<16x128xi32> to vector<16x128xf32>
    %306 = arith.mulf %286, %294 : vector<1x128xf32>
    %307 = vector.broadcast %306 : vector<1x128xf32> to vector<16x128xf32>
    %308 = arith.mulf %305, %307 : vector<16x128xf32>
    %309 = arith.addf %282, %308 : vector<16x128xf32>
    %cst_31 = arith.constant 1.000000e+00 : f32
    %310 = vector.broadcast %cst_31 : f32 to vector<1x128xf32>
    %311 = arith.addf %278, %310 : vector<1x128xf32>
    %cst_32 = arith.constant 0.000000e+00 : f32
    %312 = vector.broadcast %cst_32 : f32 to vector<1x128xf32>
    %313 = arith.cmpf oge, %311, %312 : vector<1x128xf32>
    %cst_33 = arith.constant 1.000000e+00 : f32
    %314 = arith.subf %9, %cst_33 : f32
    %315 = vector.broadcast %314 : f32 to vector<1x128xf32>
    %316 = arith.cmpf ole, %311, %315 : vector<1x128xf32>
    %317 = arith.andi %313, %316 : vector<1x128xi1>
    %318 = arith.extui %317 : vector<1x128xi1> to vector<1x128xi32>
    %319 = arith.sitofp %318 : vector<1x128xi32> to vector<1x128xf32>
    %cst_34 = arith.constant 1.000000e+00 : f32
    %320 = arith.subf %9, %cst_34 : f32
    %cst_35 = arith.constant 0.000000e+00 : f32
    %321 = vector.broadcast %cst_35 : f32 to vector<1x128xf32>
    %322 = arith.maximumf %321, %311 : vector<1x128xf32>
    %323 = vector.broadcast %320 : f32 to vector<1x128xf32>
    %324 = arith.minimumf %323, %322 : vector<1x128xf32>
    %325 = vector.broadcast %5 : f32 to vector<1x128xf32>
    %326 = arith.addf %324, %325 : vector<1x128xf32>
    %327 = vector.broadcast %326 : vector<1x128xf32> to vector<16x128xf32>
    %328 = arith.cmpf oeq, %275, %327 : vector<16x128xf32>
    %329 = arith.extui %328 : vector<16x128xi1> to vector<16x128xi32>
    %330 = arith.sitofp %329 : vector<16x128xi32> to vector<16x128xf32>
    %331 = arith.mulf %280, %319 : vector<1x128xf32>
    %332 = vector.broadcast %331 : vector<1x128xf32> to vector<16x128xf32>
    %333 = arith.mulf %330, %332 : vector<16x128xf32>
    %334 = arith.addf %309, %333 : vector<16x128xf32>
    %cst_36 = arith.constant 0.000000e+00 : f32
    %335 = vector.broadcast %cst_36 : f32 to vector<16x128xf32>
    %cst_37 = arith.constant 0.000000e+00 : f32
    %336 = vector.broadcast %cst_37 : f32 to vector<1x128xf32>
    %337 = arith.addf %279, %336 : vector<1x128xf32>
    %cst_38 = arith.constant 1.000000e+00 : f32
    %338 = vector.broadcast %cst_38 : f32 to vector<1x128xf32>
    %339 = arith.subf %338, %281 : vector<1x128xf32>
    %cst_39 = arith.constant 0.000000e+00 : f32
    %340 = vector.broadcast %cst_39 : f32 to vector<1x128xf32>
    %341 = arith.cmpf oge, %337, %340 : vector<1x128xf32>
    %cst_40 = arith.constant 1.000000e+00 : f32
    %342 = arith.subf %3, %cst_40 : f32
    %343 = vector.broadcast %342 : f32 to vector<1x128xf32>
    %344 = arith.cmpf ole, %337, %343 : vector<1x128xf32>
    %345 = arith.andi %341, %344 : vector<1x128xi1>
    %346 = arith.extui %345 : vector<1x128xi1> to vector<1x128xi32>
    %347 = arith.sitofp %346 : vector<1x128xi32> to vector<1x128xf32>
    %cst_41 = arith.constant 1.000000e+00 : f32
    %348 = arith.subf %3, %cst_41 : f32
    %cst_42 = arith.constant 0.000000e+00 : f32
    %349 = vector.broadcast %cst_42 : f32 to vector<1x128xf32>
    %350 = arith.maximumf %349, %337 : vector<1x128xf32>
    %351 = vector.broadcast %348 : f32 to vector<1x128xf32>
    %352 = arith.minimumf %351, %350 : vector<1x128xf32>
    %353 = vector.broadcast %7 : f32 to vector<1x128xf32>
    %354 = arith.addf %352, %353 : vector<1x128xf32>
    %355 = vector.broadcast %354 : vector<1x128xf32> to vector<16x128xf32>
    %356 = arith.cmpf oeq, %277, %355 : vector<16x128xf32>
    %357 = arith.extui %356 : vector<16x128xi1> to vector<16x128xi32>
    %358 = arith.sitofp %357 : vector<16x128xi32> to vector<16x128xf32>
    %359 = arith.mulf %339, %347 : vector<1x128xf32>
    %360 = vector.broadcast %359 : vector<1x128xf32> to vector<16x128xf32>
    %361 = arith.mulf %358, %360 : vector<16x128xf32>
    %362 = arith.addf %335, %361 : vector<16x128xf32>
    %cst_43 = arith.constant 1.000000e+00 : f32
    %363 = vector.broadcast %cst_43 : f32 to vector<1x128xf32>
    %364 = arith.addf %279, %363 : vector<1x128xf32>
    %cst_44 = arith.constant 0.000000e+00 : f32
    %365 = vector.broadcast %cst_44 : f32 to vector<1x128xf32>
    %366 = arith.cmpf oge, %364, %365 : vector<1x128xf32>
    %cst_45 = arith.constant 1.000000e+00 : f32
    %367 = arith.subf %3, %cst_45 : f32
    %368 = vector.broadcast %367 : f32 to vector<1x128xf32>
    %369 = arith.cmpf ole, %364, %368 : vector<1x128xf32>
    %370 = arith.andi %366, %369 : vector<1x128xi1>
    %371 = arith.extui %370 : vector<1x128xi1> to vector<1x128xi32>
    %372 = arith.sitofp %371 : vector<1x128xi32> to vector<1x128xf32>
    %cst_46 = arith.constant 1.000000e+00 : f32
    %373 = arith.subf %3, %cst_46 : f32
    %cst_47 = arith.constant 0.000000e+00 : f32
    %374 = vector.broadcast %cst_47 : f32 to vector<1x128xf32>
    %375 = arith.maximumf %374, %364 : vector<1x128xf32>
    %376 = vector.broadcast %373 : f32 to vector<1x128xf32>
    %377 = arith.minimumf %376, %375 : vector<1x128xf32>
    %378 = vector.broadcast %7 : f32 to vector<1x128xf32>
    %379 = arith.addf %377, %378 : vector<1x128xf32>
    %380 = vector.broadcast %379 : vector<1x128xf32> to vector<16x128xf32>
    %381 = arith.cmpf oeq, %277, %380 : vector<16x128xf32>
    %382 = arith.extui %381 : vector<16x128xi1> to vector<16x128xi32>
    %383 = arith.sitofp %382 : vector<16x128xi32> to vector<16x128xf32>
    %384 = arith.mulf %281, %372 : vector<1x128xf32>
    %385 = vector.broadcast %384 : vector<1x128xf32> to vector<16x128xf32>
    %386 = arith.mulf %383, %385 : vector<16x128xf32>
    %387 = arith.addf %362, %386 : vector<16x128xf32>
    %cst_48 = arith.constant dense<0.000000e+00> : vector<64x128xf32>
    %388 = tpu.matmul %273, %334, %cst_48 {dimension_numbers = #tpu.dot_dimension_numbers<[1], [0], [0], [1], [0, 0, 1, 1], [], []>} : vector<64x16xf32>, vector<16x128xf32>, vector<64x128xf32> -> vector<64x128xf32>
    %389 = vector.extract_strided_slice %388 {offsets = [0, 0], sizes = [16, 128], strides = [1, 1]} : vector<64x128xf32> to vector<16x128xf32>
    %390 = arith.mulf %387, %389 : vector<16x128xf32>
    %cst_49 = arith.constant dense<0.000000e+00> : vector<128xf32>
    %391 = vector.multi_reduction <add>, %390, %cst_49 [0] : vector<16x128xf32> to vector<128xf32>
    %392 = vector.shape_cast %391 : vector<128xf32> to vector<1x128xf32>
    %c0_50 = arith.constant 0 : index
    %c0_51 = arith.constant 0 : index
    %393 = vector.load %arg7[%c0_50, %c0_51] : memref<32x128xf32, #tpu.memory_space<vmem>>, vector<1x128xf32>
    tpu.vector_store %arg7[%c0_50, %c0_51], %392 {strides = array<i32>} : memref<32x128xf32, #tpu.memory_space<vmem>>, vector<1x128xf32>,
    %394 = vector.extract_strided_slice %388 {offsets = [16, 0], sizes = [16, 128], strides = [1, 1]} : vector<64x128xf32> to vector<16x128xf32>
    %395 = arith.mulf %387, %394 : vector<16x128xf32>
    %cst_52 = arith.constant dense<0.000000e+00> : vector<128xf32>
    %396 = vector.multi_reduction <add>, %395, %cst_52 [0] : vector<16x128xf32> to vector<128xf32>
    %397 = vector.shape_cast %396 : vector<128xf32> to vector<1x128xf32>
    %c8_53 = arith.constant 8 : index
    %c0_54 = arith.constant 0 : index
    %398 = vector.load %arg7[%c8_53, %c0_54] : memref<32x128xf32, #tpu.memory_space<vmem>>, vector<1x128xf32>
    tpu.vector_store %arg7[%c8_53, %c0_54], %397 {strides = array<i32>} : memref<32x128xf32, #tpu.memory_space<vmem>>, vector<1x128xf32>,
    %399 = vector.extract_strided_slice %388 {offsets = [32, 0], sizes = [16, 128], strides = [1, 1]} : vector<64x128xf32> to vector<16x128xf32>
    %400 = arith.mulf %387, %399 : vector<16x128xf32>
    %cst_55 = arith.constant dense<0.000000e+00> : vector<128xf32>
    %401 = vector.multi_reduction <add>, %400, %cst_55 [0] : vector<16x128xf32> to vector<128xf32>
    %402 = vector.shape_cast %401 : vector<128xf32> to vector<1x128xf32>
    %c16_56 = arith.constant 16 : index
    %c0_57 = arith.constant 0 : index
    %403 = vector.load %arg7[%c16_56, %c0_57] : memref<32x128xf32, #tpu.memory_space<vmem>>, vector<1x128xf32>
    tpu.vector_store %arg7[%c16_56, %c0_57], %402 {strides = array<i32>} : memref<32x128xf32, #tpu.memory_space<vmem>>, vector<1x128xf32>,
    %404 = vector.extract_strided_slice %388 {offsets = [48, 0], sizes = [16, 128], strides = [1, 1]} : vector<64x128xf32> to vector<16x128xf32>
    %405 = arith.mulf %387, %404 : vector<16x128xf32>
    %cst_58 = arith.constant dense<0.000000e+00> : vector<128xf32>
    %406 = vector.multi_reduction <add>, %405, %cst_58 [0] : vector<16x128xf32> to vector<128xf32>
    %407 = vector.shape_cast %406 : vector<128xf32> to vector<1x128xf32>
    %c24_59 = arith.constant 24 : index
    %c0_60 = arith.constant 0 : index
    %408 = vector.load %arg7[%c24_59, %c0_60] : memref<32x128xf32, #tpu.memory_space<vmem>>, vector<1x128xf32>
    tpu.vector_store %arg7[%c24_59, %c0_60], %407 {strides = array<i32>} : memref<32x128xf32, #tpu.memory_space<vmem>>, vector<1x128xf32>,
    %409 = vector.extract_strided_slice %268 {offsets = [1, 0], sizes = [1, 128], strides = [1, 1]} : vector<8x128xf32> to vector<1x128xf32>
    %410 = vector.extract_strided_slice %269 {offsets = [1, 0], sizes = [1, 128], strides = [1, 1]} : vector<8x128xf32> to vector<1x128xf32>
    %411 = vector.extract_strided_slice %270 {offsets = [1, 0], sizes = [1, 128], strides = [1, 1]} : vector<8x128xf32> to vector<1x128xf32>
    %412 = vector.extract_strided_slice %271 {offsets = [1, 0], sizes = [1, 128], strides = [1, 1]} : vector<8x128xf32> to vector<1x128xf32>
    %cst_61 = arith.constant 0.000000e+00 : f32
    %413 = vector.broadcast %cst_61 : f32 to vector<16x128xf32>
    %cst_62 = arith.constant 0.000000e+00 : f32
    %414 = vector.broadcast %cst_62 : f32 to vector<1x128xf32>
    %415 = arith.addf %409, %414 : vector<1x128xf32>
    %cst_63 = arith.constant 1.000000e+00 : f32
    %416 = vector.broadcast %cst_63 : f32 to vector<1x128xf32>
    %417 = arith.subf %416, %411 : vector<1x128xf32>
    %cst_64 = arith.constant 0.000000e+00 : f32
    %418 = vector.broadcast %cst_64 : f32 to vector<1x128xf32>
    %419 = arith.cmpf oge, %415, %418 : vector<1x128xf32>
    %cst_65 = arith.constant 1.000000e+00 : f32
    %420 = arith.subf %9, %cst_65 : f32
    %421 = vector.broadcast %420 : f32 to vector<1x128xf32>
    %422 = arith.cmpf ole, %415, %421 : vector<1x128xf32>
    %423 = arith.andi %419, %422 : vector<1x128xi1>
    %424 = arith.extui %423 : vector<1x128xi1> to vector<1x128xi32>
    %425 = arith.sitofp %424 : vector<1x128xi32> to vector<1x128xf32>
    %cst_66 = arith.constant 1.000000e+00 : f32
    %426 = arith.subf %9, %cst_66 : f32
    %cst_67 = arith.constant 0.000000e+00 : f32
    %427 = vector.broadcast %cst_67 : f32 to vector<1x128xf32>
    %428 = arith.maximumf %427, %415 : vector<1x128xf32>
    %429 = vector.broadcast %426 : f32 to vector<1x128xf32>
    %430 = arith.minimumf %429, %428 : vector<1x128xf32>
    %431 = vector.broadcast %5 : f32 to vector<1x128xf32>
    %432 = arith.addf %430, %431 : vector<1x128xf32>
    %433 = vector.broadcast %432 : vector<1x128xf32> to vector<16x128xf32>
    %434 = arith.cmpf oeq, %275, %433 : vector<16x128xf32>
    %435 = arith.extui %434 : vector<16x128xi1> to vector<16x128xi32>
    %436 = arith.sitofp %435 : vector<16x128xi32> to vector<16x128xf32>
    %437 = arith.mulf %417, %425 : vector<1x128xf32>
    %438 = vector.broadcast %437 : vector<1x128xf32> to vector<16x128xf32>
    %439 = arith.mulf %436, %438 : vector<16x128xf32>
    %440 = arith.addf %413, %439 : vector<16x128xf32>
    %cst_68 = arith.constant 1.000000e+00 : f32
    %441 = vector.broadcast %cst_68 : f32 to vector<1x128xf32>
    %442 = arith.addf %409, %441 : vector<1x128xf32>
    %cst_69 = arith.constant 0.000000e+00 : f32
    %443 = vector.broadcast %cst_69 : f32 to vector<1x128xf32>
    %444 = arith.cmpf oge, %442, %443 : vector<1x128xf32>
    %cst_70 = arith.constant 1.000000e+00 : f32
    %445 = arith.subf %9, %cst_70 : f32
    %446 = vector.broadcast %445 : f32 to vector<1x128xf32>
    %447 = arith.cmpf ole, %442, %446 : vector<1x128xf32>
    %448 = arith.andi %444, %447 : vector<1x128xi1>
    %449 = arith.extui %448 : vector<1x128xi1> to vector<1x128xi32>
    %450 = arith.sitofp %449 : vector<1x128xi32> to vector<1x128xf32>
    %cst_71 = arith.constant 1.000000e+00 : f32
    %451 = arith.subf %9, %cst_71 : f32
    %cst_72 = arith.constant 0.000000e+00 : f32
    %452 = vector.broadcast %cst_72 : f32 to vector<1x128xf32>
    %453 = arith.maximumf %452, %442 : vector<1x128xf32>
    %454 = vector.broadcast %451 : f32 to vector<1x128xf32>
    %455 = arith.minimumf %454, %453 : vector<1x128xf32>
    %456 = vector.broadcast %5 : f32 to vector<1x128xf32>
    %457 = arith.addf %455, %456 : vector<1x128xf32>
    %458 = vector.broadcast %457 : vector<1x128xf32> to vector<16x128xf32>
    %459 = arith.cmpf oeq, %275, %458 : vector<16x128xf32>
    %460 = arith.extui %459 : vector<16x128xi1> to vector<16x128xi32>
    %461 = arith.sitofp %460 : vector<16x128xi32> to vector<16x128xf32>
    %462 = arith.mulf %411, %450 : vector<1x128xf32>
    %463 = vector.broadcast %462 : vector<1x128xf32> to vector<16x128xf32>
    %464 = arith.mulf %461, %463 : vector<16x128xf32>
    %465 = arith.addf %440, %464 : vector<16x128xf32>
    %cst_73 = arith.constant 0.000000e+00 : f32
    %466 = vector.broadcast %cst_73 : f32 to vector<16x128xf32>
    %cst_74 = arith.constant 0.000000e+00 : f32
    %467 = vector.broadcast %cst_74 : f32 to vector<1x128xf32>
    %468 = arith.addf %410, %467 : vector<1x128xf32>
    %cst_75 = arith.constant 1.000000e+00 : f32
    %469 = vector.broadcast %cst_75 : f32 to vector<1x128xf32>
    %470 = arith.subf %469, %412 : vector<1x128xf32>
    %cst_76 = arith.constant 0.000000e+00 : f32
    %471 = vector.broadcast %cst_76 : f32 to vector<1x128xf32>
    %472 = arith.cmpf oge, %468, %471 : vector<1x128xf32>
    %cst_77 = arith.constant 1.000000e+00 : f32
    %473 = arith.subf %3, %cst_77 : f32
    %474 = vector.broadcast %473 : f32 to vector<1x128xf32>
    %475 = arith.cmpf ole, %468, %474 : vector<1x128xf32>
    %476 = arith.andi %472, %475 : vector<1x128xi1>
    %477 = arith.extui %476 : vector<1x128xi1> to vector<1x128xi32>
    %478 = arith.sitofp %477 : vector<1x128xi32> to vector<1x128xf32>
    %cst_78 = arith.constant 1.000000e+00 : f32
    %479 = arith.subf %3, %cst_78 : f32
    %cst_79 = arith.constant 0.000000e+00 : f32
    %480 = vector.broadcast %cst_79 : f32 to vector<1x128xf32>
    %481 = arith.maximumf %480, %468 : vector<1x128xf32>
    %482 = vector.broadcast %479 : f32 to vector<1x128xf32>
    %483 = arith.minimumf %482, %481 : vector<1x128xf32>
    %484 = vector.broadcast %7 : f32 to vector<1x128xf32>
    %485 = arith.addf %483, %484 : vector<1x128xf32>
    %486 = vector.broadcast %485 : vector<1x128xf32> to vector<16x128xf32>
    %487 = arith.cmpf oeq, %277, %486 : vector<16x128xf32>
    %488 = arith.extui %487 : vector<16x128xi1> to vector<16x128xi32>
    %489 = arith.sitofp %488 : vector<16x128xi32> to vector<16x128xf32>
    %490 = arith.mulf %470, %478 : vector<1x128xf32>
    %491 = vector.broadcast %490 : vector<1x128xf32> to vector<16x128xf32>
    %492 = arith.mulf %489, %491 : vector<16x128xf32>
    %493 = arith.addf %466, %492 : vector<16x128xf32>
    %cst_80 = arith.constant 1.000000e+00 : f32
    %494 = vector.broadcast %cst_80 : f32 to vector<1x128xf32>
    %495 = arith.addf %410, %494 : vector<1x128xf32>
    %cst_81 = arith.constant 0.000000e+00 : f32
    %496 = vector.broadcast %cst_81 : f32 to vector<1x128xf32>
    %497 = arith.cmpf oge, %495, %496 : vector<1x128xf32>
    %cst_82 = arith.constant 1.000000e+00 : f32
    %498 = arith.subf %3, %cst_82 : f32
    %499 = vector.broadcast %498 : f32 to vector<1x128xf32>
    %500 = arith.cmpf ole, %495, %499 : vector<1x128xf32>
    %501 = arith.andi %497, %500 : vector<1x128xi1>
    %502 = arith.extui %501 : vector<1x128xi1> to vector<1x128xi32>
    %503 = arith.sitofp %502 : vector<1x128xi32> to vector<1x128xf32>
    %cst_83 = arith.constant 1.000000e+00 : f32
    %504 = arith.subf %3, %cst_83 : f32
    %cst_84 = arith.constant 0.000000e+00 : f32
    %505 = vector.broadcast %cst_84 : f32 to vector<1x128xf32>
    %506 = arith.maximumf %505, %495 : vector<1x128xf32>
    %507 = vector.broadcast %504 : f32 to vector<1x128xf32>
    %508 = arith.minimumf %507, %506 : vector<1x128xf32>
    %509 = vector.broadcast %7 : f32 to vector<1x128xf32>
    %510 = arith.addf %508, %509 : vector<1x128xf32>
    %511 = vector.broadcast %510 : vector<1x128xf32> to vector<16x128xf32>
    %512 = arith.cmpf oeq, %277, %511 : vector<16x128xf32>
    %513 = arith.extui %512 : vector<16x128xi1> to vector<16x128xi32>
    %514 = arith.sitofp %513 : vector<16x128xi32> to vector<16x128xf32>
    %515 = arith.mulf %412, %503 : vector<1x128xf32>
    %516 = vector.broadcast %515 : vector<1x128xf32> to vector<16x128xf32>
    %517 = arith.mulf %514, %516 : vector<16x128xf32>
    %518 = arith.addf %493, %517 : vector<16x128xf32>
    %cst_85 = arith.constant dense<0.000000e+00> : vector<64x128xf32>
    %519 = tpu.matmul %273, %465, %cst_85 {dimension_numbers = #tpu.dot_dimension_numbers<[1], [0], [0], [1], [0, 0, 1, 1], [], []>} : vector<64x16xf32>, vector<16x128xf32>, vector<64x128xf32> -> vector<64x128xf32>
    %520 = vector.extract_strided_slice %519 {offsets = [0, 0], sizes = [16, 128], strides = [1, 1]} : vector<64x128xf32> to vector<16x128xf32>
    %521 = arith.mulf %518, %520 : vector<16x128xf32>
    %cst_86 = arith.constant dense<0.000000e+00> : vector<128xf32>
    %522 = vector.multi_reduction <add>, %521, %cst_86 [0] : vector<16x128xf32> to vector<128xf32>
    %523 = vector.shape_cast %522 : vector<128xf32> to vector<1x128xf32>
    %c1_87 = arith.constant 1 : index
    %c0_88 = arith.constant 0 : index
    %524 = vector.load %arg7[%c1_87, %c0_88] : memref<32x128xf32, #tpu.memory_space<vmem>>, vector<1x128xf32>
    tpu.vector_store %arg7[%c1_87, %c0_88], %523 {strides = array<i32>} : memref<32x128xf32, #tpu.memory_space<vmem>>, vector<1x128xf32>,
    %525 = vector.extract_strided_slice %519 {offsets = [16, 0], sizes = [16, 128], strides = [1, 1]} : vector<64x128xf32> to vector<16x128xf32>
    %526 = arith.mulf %518, %525 : vector<16x128xf32>
    %cst_89 = arith.constant dense<0.000000e+00> : vector<128xf32>
    %527 = vector.multi_reduction <add>, %526, %cst_89 [0] : vector<16x128xf32> to vector<128xf32>
    %528 = vector.shape_cast %527 : vector<128xf32> to vector<1x128xf32>
    %c9_90 = arith.constant 9 : index
    %c0_91 = arith.constant 0 : index
    %529 = vector.load %arg7[%c9_90, %c0_91] : memref<32x128xf32, #tpu.memory_space<vmem>>, vector<1x128xf32>
    tpu.vector_store %arg7[%c9_90, %c0_91], %528 {strides = array<i32>} : memref<32x128xf32, #tpu.memory_space<vmem>>, vector<1x128xf32>,
    %530 = vector.extract_strided_slice %519 {offsets = [32, 0], sizes = [16, 128], strides = [1, 1]} : vector<64x128xf32> to vector<16x128xf32>
    %531 = arith.mulf %518, %530 : vector<16x128xf32>
    %cst_92 = arith.constant dense<0.000000e+00> : vector<128xf32>
    %532 = vector.multi_reduction <add>, %531, %cst_92 [0] : vector<16x128xf32> to vector<128xf32>
    %533 = vector.shape_cast %532 : vector<128xf32> to vector<1x128xf32>
    %c17_93 = arith.constant 17 : index
    %c0_94 = arith.constant 0 : index
    %534 = vector.load %arg7[%c17_93, %c0_94] : memref<32x128xf32, #tpu.memory_space<vmem>>, vector<1x128xf32>
    tpu.vector_store %arg7[%c17_93, %c0_94], %533 {strides = array<i32>} : memref<32x128xf32, #tpu.memory_space<vmem>>, vector<1x128xf32>,
    %535 = vector.extract_strided_slice %519 {offsets = [48, 0], sizes = [16, 128], strides = [1, 1]} : vector<64x128xf32> to vector<16x128xf32>
    %536 = arith.mulf %518, %535 : vector<16x128xf32>
    %cst_95 = arith.constant dense<0.000000e+00> : vector<128xf32>
    %537 = vector.multi_reduction <add>, %536, %cst_95 [0] : vector<16x128xf32> to vector<128xf32>
    %538 = vector.shape_cast %537 : vector<128xf32> to vector<1x128xf32>
    %c25_96 = arith.constant 25 : index
    %c0_97 = arith.constant 0 : index
    %539 = vector.load %arg7[%c25_96, %c0_97] : memref<32x128xf32, #tpu.memory_space<vmem>>, vector<1x128xf32>
    tpu.vector_store %arg7[%c25_96, %c0_97], %538 {strides = array<i32>} : memref<32x128xf32, #tpu.memory_space<vmem>>, vector<1x128xf32>,
    %540 = vector.extract_strided_slice %268 {offsets = [2, 0], sizes = [1, 128], strides = [1, 1]} : vector<8x128xf32> to vector<1x128xf32>
    %541 = vector.extract_strided_slice %269 {offsets = [2, 0], sizes = [1, 128], strides = [1, 1]} : vector<8x128xf32> to vector<1x128xf32>
    %542 = vector.extract_strided_slice %270 {offsets = [2, 0], sizes = [1, 128], strides = [1, 1]} : vector<8x128xf32> to vector<1x128xf32>
    %543 = vector.extract_strided_slice %271 {offsets = [2, 0], sizes = [1, 128], strides = [1, 1]} : vector<8x128xf32> to vector<1x128xf32>
    %cst_98 = arith.constant 0.000000e+00 : f32
    %544 = vector.broadcast %cst_98 : f32 to vector<16x128xf32>
    %cst_99 = arith.constant 0.000000e+00 : f32
    %545 = vector.broadcast %cst_99 : f32 to vector<1x128xf32>
    %546 = arith.addf %540, %545 : vector<1x128xf32>
    %cst_100 = arith.constant 1.000000e+00 : f32
    %547 = vector.broadcast %cst_100 : f32 to vector<1x128xf32>
    %548 = arith.subf %547, %542 : vector<1x128xf32>
    %cst_101 = arith.constant 0.000000e+00 : f32
    %549 = vector.broadcast %cst_101 : f32 to vector<1x128xf32>
    %550 = arith.cmpf oge, %546, %549 : vector<1x128xf32>
    %cst_102 = arith.constant 1.000000e+00 : f32
    %551 = arith.subf %9, %cst_102 : f32
    %552 = vector.broadcast %551 : f32 to vector<1x128xf32>
    %553 = arith.cmpf ole, %546, %552 : vector<1x128xf32>
    %554 = arith.andi %550, %553 : vector<1x128xi1>
    %555 = arith.extui %554 : vector<1x128xi1> to vector<1x128xi32>
    %556 = arith.sitofp %555 : vector<1x128xi32> to vector<1x128xf32>
    %cst_103 = arith.constant 1.000000e+00 : f32
    %557 = arith.subf %9, %cst_103 : f32
    %cst_104 = arith.constant 0.000000e+00 : f32
    %558 = vector.broadcast %cst_104 : f32 to vector<1x128xf32>
    %559 = arith.maximumf %558, %546 : vector<1x128xf32>
    %560 = vector.broadcast %557 : f32 to vector<1x128xf32>
    %561 = arith.minimumf %560, %559 : vector<1x128xf32>
    %562 = vector.broadcast %5 : f32 to vector<1x128xf32>
    %563 = arith.addf %561, %562 : vector<1x128xf32>
    %564 = vector.broadcast %563 : vector<1x128xf32> to vector<16x128xf32>
    %565 = arith.cmpf oeq, %275, %564 : vector<16x128xf32>
    %566 = arith.extui %565 : vector<16x128xi1> to vector<16x128xi32>
    %567 = arith.sitofp %566 : vector<16x128xi32> to vector<16x128xf32>
    %568 = arith.mulf %548, %556 : vector<1x128xf32>
    %569 = vector.broadcast %568 : vector<1x128xf32> to vector<16x128xf32>
    %570 = arith.mulf %567, %569 : vector<16x128xf32>
    %571 = arith.addf %544, %570 : vector<16x128xf32>
    %cst_105 = arith.constant 1.000000e+00 : f32
    %572 = vector.broadcast %cst_105 : f32 to vector<1x128xf32>
    %573 = arith.addf %540, %572 : vector<1x128xf32>
    %cst_106 = arith.constant 0.000000e+00 : f32
    %574 = vector.broadcast %cst_106 : f32 to vector<1x128xf32>
    %575 = arith.cmpf oge, %573, %574 : vector<1x128xf32>
    %cst_107 = arith.constant 1.000000e+00 : f32
    %576 = arith.subf %9, %cst_107 : f32
    %577 = vector.broadcast %576 : f32 to vector<1x128xf32>
    %578 = arith.cmpf ole, %573, %577 : vector<1x128xf32>
    %579 = arith.andi %575, %578 : vector<1x128xi1>
    %580 = arith.extui %579 : vector<1x128xi1> to vector<1x128xi32>
    %581 = arith.sitofp %580 : vector<1x128xi32> to vector<1x128xf32>
    %cst_108 = arith.constant 1.000000e+00 : f32
    %582 = arith.subf %9, %cst_108 : f32
    %cst_109 = arith.constant 0.000000e+00 : f32
    %583 = vector.broadcast %cst_109 : f32 to vector<1x128xf32>
    %584 = arith.maximumf %583, %573 : vector<1x128xf32>
    %585 = vector.broadcast %582 : f32 to vector<1x128xf32>
    %586 = arith.minimumf %585, %584 : vector<1x128xf32>
    %587 = vector.broadcast %5 : f32 to vector<1x128xf32>
    %588 = arith.addf %586, %587 : vector<1x128xf32>
    %589 = vector.broadcast %588 : vector<1x128xf32> to vector<16x128xf32>
    %590 = arith.cmpf oeq, %275, %589 : vector<16x128xf32>
    %591 = arith.extui %590 : vector<16x128xi1> to vector<16x128xi32>
    %592 = arith.sitofp %591 : vector<16x128xi32> to vector<16x128xf32>
    %593 = arith.mulf %542, %581 : vector<1x128xf32>
    %594 = vector.broadcast %593 : vector<1x128xf32> to vector<16x128xf32>
    %595 = arith.mulf %592, %594 : vector<16x128xf32>
    %596 = arith.addf %571, %595 : vector<16x128xf32>
    %cst_110 = arith.constant 0.000000e+00 : f32
    %597 = vector.broadcast %cst_110 : f32 to vector<16x128xf32>
    %cst_111 = arith.constant 0.000000e+00 : f32
    %598 = vector.broadcast %cst_111 : f32 to vector<1x128xf32>
    %599 = arith.addf %541, %598 : vector<1x128xf32>
    %cst_112 = arith.constant 1.000000e+00 : f32
    %600 = vector.broadcast %cst_112 : f32 to vector<1x128xf32>
    %601 = arith.subf %600, %543 : vector<1x128xf32>
    %cst_113 = arith.constant 0.000000e+00 : f32
    %602 = vector.broadcast %cst_113 : f32 to vector<1x128xf32>
    %603 = arith.cmpf oge, %599, %602 : vector<1x128xf32>
    %cst_114 = arith.constant 1.000000e+00 : f32
    %604 = arith.subf %3, %cst_114 : f32
    %605 = vector.broadcast %604 : f32 to vector<1x128xf32>
    %606 = arith.cmpf ole, %599, %605 : vector<1x128xf32>
    %607 = arith.andi %603, %606 : vector<1x128xi1>
    %608 = arith.extui %607 : vector<1x128xi1> to vector<1x128xi32>
    %609 = arith.sitofp %608 : vector<1x128xi32> to vector<1x128xf32>
    %cst_115 = arith.constant 1.000000e+00 : f32
    %610 = arith.subf %3, %cst_115 : f32
    %cst_116 = arith.constant 0.000000e+00 : f32
    %611 = vector.broadcast %cst_116 : f32 to vector<1x128xf32>
    %612 = arith.maximumf %611, %599 : vector<1x128xf32>
    %613 = vector.broadcast %610 : f32 to vector<1x128xf32>
    %614 = arith.minimumf %613, %612 : vector<1x128xf32>
    %615 = vector.broadcast %7 : f32 to vector<1x128xf32>
    %616 = arith.addf %614, %615 : vector<1x128xf32>
    %617 = vector.broadcast %616 : vector<1x128xf32> to vector<16x128xf32>
    %618 = arith.cmpf oeq, %277, %617 : vector<16x128xf32>
    %619 = arith.extui %618 : vector<16x128xi1> to vector<16x128xi32>
    %620 = arith.sitofp %619 : vector<16x128xi32> to vector<16x128xf32>
    %621 = arith.mulf %601, %609 : vector<1x128xf32>
    %622 = vector.broadcast %621 : vector<1x128xf32> to vector<16x128xf32>
    %623 = arith.mulf %620, %622 : vector<16x128xf32>
    %624 = arith.addf %597, %623 : vector<16x128xf32>
    %cst_117 = arith.constant 1.000000e+00 : f32
    %625 = vector.broadcast %cst_117 : f32 to vector<1x128xf32>
    %626 = arith.addf %541, %625 : vector<1x128xf32>
    %cst_118 = arith.constant 0.000000e+00 : f32
    %627 = vector.broadcast %cst_118 : f32 to vector<1x128xf32>
    %628 = arith.cmpf oge, %626, %627 : vector<1x128xf32>
    %cst_119 = arith.constant 1.000000e+00 : f32
    %629 = arith.subf %3, %cst_119 : f32
    %630 = vector.broadcast %629 : f32 to vector<1x128xf32>
    %631 = arith.cmpf ole, %626, %630 : vector<1x128xf32>
    %632 = arith.andi %628, %631 : vector<1x128xi1>
    %633 = arith.extui %632 : vector<1x128xi1> to vector<1x128xi32>
    %634 = arith.sitofp %633 : vector<1x128xi32> to vector<1x128xf32>
    %cst_120 = arith.constant 1.000000e+00 : f32
    %635 = arith.subf %3, %cst_120 : f32
    %cst_121 = arith.constant 0.000000e+00 : f32
    %636 = vector.broadcast %cst_121 : f32 to vector<1x128xf32>
    %637 = arith.maximumf %636, %626 : vector<1x128xf32>
    %638 = vector.broadcast %635 : f32 to vector<1x128xf32>
    %639 = arith.minimumf %638, %637 : vector<1x128xf32>
    %640 = vector.broadcast %7 : f32 to vector<1x128xf32>
    %641 = arith.addf %639, %640 : vector<1x128xf32>
    %642 = vector.broadcast %641 : vector<1x128xf32> to vector<16x128xf32>
    %643 = arith.cmpf oeq, %277, %642 : vector<16x128xf32>
    %644 = arith.extui %643 : vector<16x128xi1> to vector<16x128xi32>
    %645 = arith.sitofp %644 : vector<16x128xi32> to vector<16x128xf32>
    %646 = arith.mulf %543, %634 : vector<1x128xf32>
    %647 = vector.broadcast %646 : vector<1x128xf32> to vector<16x128xf32>
    %648 = arith.mulf %645, %647 : vector<16x128xf32>
    %649 = arith.addf %624, %648 : vector<16x128xf32>
    %cst_122 = arith.constant dense<0.000000e+00> : vector<64x128xf32>
    %650 = tpu.matmul %273, %596, %cst_122 {dimension_numbers = #tpu.dot_dimension_numbers<[1], [0], [0], [1], [0, 0, 1, 1], [], []>} : vector<64x16xf32>, vector<16x128xf32>, vector<64x128xf32> -> vector<64x128xf32>
    %651 = vector.extract_strided_slice %650 {offsets = [0, 0], sizes = [16, 128], strides = [1, 1]} : vector<64x128xf32> to vector<16x128xf32>
    %652 = arith.mulf %649, %651 : vector<16x128xf32>
    %cst_123 = arith.constant dense<0.000000e+00> : vector<128xf32>
    %653 = vector.multi_reduction <add>, %652, %cst_123 [0] : vector<16x128xf32> to vector<128xf32>
    %654 = vector.shape_cast %653 : vector<128xf32> to vector<1x128xf32>
    %c2_124 = arith.constant 2 : index
    %c0_125 = arith.constant 0 : index
    %655 = vector.load %arg7[%c2_124, %c0_125] : memref<32x128xf32, #tpu.memory_space<vmem>>, vector<1x128xf32>
    tpu.vector_store %arg7[%c2_124, %c0_125], %654 {strides = array<i32>} : memref<32x128xf32, #tpu.memory_space<vmem>>, vector<1x128xf32>,
    %656 = vector.extract_strided_slice %650 {offsets = [16, 0], sizes = [16, 128], strides = [1, 1]} : vector<64x128xf32> to vector<16x128xf32>
    %657 = arith.mulf %649, %656 : vector<16x128xf32>
    %cst_126 = arith.constant dense<0.000000e+00> : vector<128xf32>
    %658 = vector.multi_reduction <add>, %657, %cst_126 [0] : vector<16x128xf32> to vector<128xf32>
    %659 = vector.shape_cast %658 : vector<128xf32> to vector<1x128xf32>
    %c10_127 = arith.constant 10 : index
    %c0_128 = arith.constant 0 : index
    %660 = vector.load %arg7[%c10_127, %c0_128] : memref<32x128xf32, #tpu.memory_space<vmem>>, vector<1x128xf32>
    tpu.vector_store %arg7[%c10_127, %c0_128], %659 {strides = array<i32>} : memref<32x128xf32, #tpu.memory_space<vmem>>, vector<1x128xf32>,
    %661 = vector.extract_strided_slice %650 {offsets = [32, 0], sizes = [16, 128], strides = [1, 1]} : vector<64x128xf32> to vector<16x128xf32>
    %662 = arith.mulf %649, %661 : vector<16x128xf32>
    %cst_129 = arith.constant dense<0.000000e+00> : vector<128xf32>
    %663 = vector.multi_reduction <add>, %662, %cst_129 [0] : vector<16x128xf32> to vector<128xf32>
    %664 = vector.shape_cast %663 : vector<128xf32> to vector<1x128xf32>
    %c18_130 = arith.constant 18 : index
    %c0_131 = arith.constant 0 : index
    %665 = vector.load %arg7[%c18_130, %c0_131] : memref<32x128xf32, #tpu.memory_space<vmem>>, vector<1x128xf32>
    tpu.vector_store %arg7[%c18_130, %c0_131], %664 {strides = array<i32>} : memref<32x128xf32, #tpu.memory_space<vmem>>, vector<1x128xf32>,
    %666 = vector.extract_strided_slice %650 {offsets = [48, 0], sizes = [16, 128], strides = [1, 1]} : vector<64x128xf32> to vector<16x128xf32>
    %667 = arith.mulf %649, %666 : vector<16x128xf32>
    %cst_132 = arith.constant dense<0.000000e+00> : vector<128xf32>
    %668 = vector.multi_reduction <add>, %667, %cst_132 [0] : vector<16x128xf32> to vector<128xf32>
    %669 = vector.shape_cast %668 : vector<128xf32> to vector<1x128xf32>
    %c26_133 = arith.constant 26 : index
    %c0_134 = arith.constant 0 : index
    %670 = vector.load %arg7[%c26_133, %c0_134] : memref<32x128xf32, #tpu.memory_space<vmem>>, vector<1x128xf32>
    tpu.vector_store %arg7[%c26_133, %c0_134], %669 {strides = array<i32>} : memref<32x128xf32, #tpu.memory_space<vmem>>, vector<1x128xf32>,
    %671 = vector.extract_strided_slice %268 {offsets = [3, 0], sizes = [1, 128], strides = [1, 1]} : vector<8x128xf32> to vector<1x128xf32>
    %672 = vector.extract_strided_slice %269 {offsets = [3, 0], sizes = [1, 128], strides = [1, 1]} : vector<8x128xf32> to vector<1x128xf32>
    %673 = vector.extract_strided_slice %270 {offsets = [3, 0], sizes = [1, 128], strides = [1, 1]} : vector<8x128xf32> to vector<1x128xf32>
    %674 = vector.extract_strided_slice %271 {offsets = [3, 0], sizes = [1, 128], strides = [1, 1]} : vector<8x128xf32> to vector<1x128xf32>
    %cst_135 = arith.constant 0.000000e+00 : f32
    %675 = vector.broadcast %cst_135 : f32 to vector<16x128xf32>
    %cst_136 = arith.constant 0.000000e+00 : f32
    %676 = vector.broadcast %cst_136 : f32 to vector<1x128xf32>
    %677 = arith.addf %671, %676 : vector<1x128xf32>
    %cst_137 = arith.constant 1.000000e+00 : f32
    %678 = vector.broadcast %cst_137 : f32 to vector<1x128xf32>
    %679 = arith.subf %678, %673 : vector<1x128xf32>
    %cst_138 = arith.constant 0.000000e+00 : f32
    %680 = vector.broadcast %cst_138 : f32 to vector<1x128xf32>
    %681 = arith.cmpf oge, %677, %680 : vector<1x128xf32>
    %cst_139 = arith.constant 1.000000e+00 : f32
    %682 = arith.subf %9, %cst_139 : f32
    %683 = vector.broadcast %682 : f32 to vector<1x128xf32>
    %684 = arith.cmpf ole, %677, %683 : vector<1x128xf32>
    %685 = arith.andi %681, %684 : vector<1x128xi1>
    %686 = arith.extui %685 : vector<1x128xi1> to vector<1x128xi32>
    %687 = arith.sitofp %686 : vector<1x128xi32> to vector<1x128xf32>
    %cst_140 = arith.constant 1.000000e+00 : f32
    %688 = arith.subf %9, %cst_140 : f32
    %cst_141 = arith.constant 0.000000e+00 : f32
    %689 = vector.broadcast %cst_141 : f32 to vector<1x128xf32>
    %690 = arith.maximumf %689, %677 : vector<1x128xf32>
    %691 = vector.broadcast %688 : f32 to vector<1x128xf32>
    %692 = arith.minimumf %691, %690 : vector<1x128xf32>
    %693 = vector.broadcast %5 : f32 to vector<1x128xf32>
    %694 = arith.addf %692, %693 : vector<1x128xf32>
    %695 = vector.broadcast %694 : vector<1x128xf32> to vector<16x128xf32>
    %696 = arith.cmpf oeq, %275, %695 : vector<16x128xf32>
    %697 = arith.extui %696 : vector<16x128xi1> to vector<16x128xi32>
    %698 = arith.sitofp %697 : vector<16x128xi32> to vector<16x128xf32>
    %699 = arith.mulf %679, %687 : vector<1x128xf32>
    %700 = vector.broadcast %699 : vector<1x128xf32> to vector<16x128xf32>
    %701 = arith.mulf %698, %700 : vector<16x128xf32>
    %702 = arith.addf %675, %701 : vector<16x128xf32>
    %cst_142 = arith.constant 1.000000e+00 : f32
    %703 = vector.broadcast %cst_142 : f32 to vector<1x128xf32>
    %704 = arith.addf %671, %703 : vector<1x128xf32>
    %cst_143 = arith.constant 0.000000e+00 : f32
    %705 = vector.broadcast %cst_143 : f32 to vector<1x128xf32>
    %706 = arith.cmpf oge, %704, %705 : vector<1x128xf32>
    %cst_144 = arith.constant 1.000000e+00 : f32
    %707 = arith.subf %9, %cst_144 : f32
    %708 = vector.broadcast %707 : f32 to vector<1x128xf32>
    %709 = arith.cmpf ole, %704, %708 : vector<1x128xf32>
    %710 = arith.andi %706, %709 : vector<1x128xi1>
    %711 = arith.extui %710 : vector<1x128xi1> to vector<1x128xi32>
    %712 = arith.sitofp %711 : vector<1x128xi32> to vector<1x128xf32>
    %cst_145 = arith.constant 1.000000e+00 : f32
    %713 = arith.subf %9, %cst_145 : f32
    %cst_146 = arith.constant 0.000000e+00 : f32
    %714 = vector.broadcast %cst_146 : f32 to vector<1x128xf32>
    %715 = arith.maximumf %714, %704 : vector<1x128xf32>
    %716 = vector.broadcast %713 : f32 to vector<1x128xf32>
    %717 = arith.minimumf %716, %715 : vector<1x128xf32>
    %718 = vector.broadcast %5 : f32 to vector<1x128xf32>
    %719 = arith.addf %717, %718 : vector<1x128xf32>
    %720 = vector.broadcast %719 : vector<1x128xf32> to vector<16x128xf32>
    %721 = arith.cmpf oeq, %275, %720 : vector<16x128xf32>
    %722 = arith.extui %721 : vector<16x128xi1> to vector<16x128xi32>
    %723 = arith.sitofp %722 : vector<16x128xi32> to vector<16x128xf32>
    %724 = arith.mulf %673, %712 : vector<1x128xf32>
    %725 = vector.broadcast %724 : vector<1x128xf32> to vector<16x128xf32>
    %726 = arith.mulf %723, %725 : vector<16x128xf32>
    %727 = arith.addf %702, %726 : vector<16x128xf32>
    %cst_147 = arith.constant 0.000000e+00 : f32
    %728 = vector.broadcast %cst_147 : f32 to vector<16x128xf32>
    %cst_148 = arith.constant 0.000000e+00 : f32
    %729 = vector.broadcast %cst_148 : f32 to vector<1x128xf32>
    %730 = arith.addf %672, %729 : vector<1x128xf32>
    %cst_149 = arith.constant 1.000000e+00 : f32
    %731 = vector.broadcast %cst_149 : f32 to vector<1x128xf32>
    %732 = arith.subf %731, %674 : vector<1x128xf32>
    %cst_150 = arith.constant 0.000000e+00 : f32
    %733 = vector.broadcast %cst_150 : f32 to vector<1x128xf32>
    %734 = arith.cmpf oge, %730, %733 : vector<1x128xf32>
    %cst_151 = arith.constant 1.000000e+00 : f32
    %735 = arith.subf %3, %cst_151 : f32
    %736 = vector.broadcast %735 : f32 to vector<1x128xf32>
    %737 = arith.cmpf ole, %730, %736 : vector<1x128xf32>
    %738 = arith.andi %734, %737 : vector<1x128xi1>
    %739 = arith.extui %738 : vector<1x128xi1> to vector<1x128xi32>
    %740 = arith.sitofp %739 : vector<1x128xi32> to vector<1x128xf32>
    %cst_152 = arith.constant 1.000000e+00 : f32
    %741 = arith.subf %3, %cst_152 : f32
    %cst_153 = arith.constant 0.000000e+00 : f32
    %742 = vector.broadcast %cst_153 : f32 to vector<1x128xf32>
    %743 = arith.maximumf %742, %730 : vector<1x128xf32>
    %744 = vector.broadcast %741 : f32 to vector<1x128xf32>
    %745 = arith.minimumf %744, %743 : vector<1x128xf32>
    %746 = vector.broadcast %7 : f32 to vector<1x128xf32>
    %747 = arith.addf %745, %746 : vector<1x128xf32>
    %748 = vector.broadcast %747 : vector<1x128xf32> to vector<16x128xf32>
    %749 = arith.cmpf oeq, %277, %748 : vector<16x128xf32>
    %750 = arith.extui %749 : vector<16x128xi1> to vector<16x128xi32>
    %751 = arith.sitofp %750 : vector<16x128xi32> to vector<16x128xf32>
    %752 = arith.mulf %732, %740 : vector<1x128xf32>
    %753 = vector.broadcast %752 : vector<1x128xf32> to vector<16x128xf32>
    %754 = arith.mulf %751, %753 : vector<16x128xf32>
    %755 = arith.addf %728, %754 : vector<16x128xf32>
    %cst_154 = arith.constant 1.000000e+00 : f32
    %756 = vector.broadcast %cst_154 : f32 to vector<1x128xf32>
    %757 = arith.addf %672, %756 : vector<1x128xf32>
    %cst_155 = arith.constant 0.000000e+00 : f32
    %758 = vector.broadcast %cst_155 : f32 to vector<1x128xf32>
    %759 = arith.cmpf oge, %757, %758 : vector<1x128xf32>
    %cst_156 = arith.constant 1.000000e+00 : f32
    %760 = arith.subf %3, %cst_156 : f32
    %761 = vector.broadcast %760 : f32 to vector<1x128xf32>
    %762 = arith.cmpf ole, %757, %761 : vector<1x128xf32>
    %763 = arith.andi %759, %762 : vector<1x128xi1>
    %764 = arith.extui %763 : vector<1x128xi1> to vector<1x128xi32>
    %765 = arith.sitofp %764 : vector<1x128xi32> to vector<1x128xf32>
    %cst_157 = arith.constant 1.000000e+00 : f32
    %766 = arith.subf %3, %cst_157 : f32
    %cst_158 = arith.constant 0.000000e+00 : f32
    %767 = vector.broadcast %cst_158 : f32 to vector<1x128xf32>
    %768 = arith.maximumf %767, %757 : vector<1x128xf32>
    %769 = vector.broadcast %766 : f32 to vector<1x128xf32>
    %770 = arith.minimumf %769, %768 : vector<1x128xf32>
    %771 = vector.broadcast %7 : f32 to vector<1x128xf32>
    %772 = arith.addf %770, %771 : vector<1x128xf32>
    %773 = vector.broadcast %772 : vector<1x128xf32> to vector<16x128xf32>
    %774 = arith.cmpf oeq, %277, %773 : vector<16x128xf32>
    %775 = arith.extui %774 : vector<16x128xi1> to vector<16x128xi32>
    %776 = arith.sitofp %775 : vector<16x128xi32> to vector<16x128xf32>
    %777 = arith.mulf %674, %765 : vector<1x128xf32>
    %778 = vector.broadcast %777 : vector<1x128xf32> to vector<16x128xf32>
    %779 = arith.mulf %776, %778 : vector<16x128xf32>
    %780 = arith.addf %755, %779 : vector<16x128xf32>
    %cst_159 = arith.constant dense<0.000000e+00> : vector<64x128xf32>
    %781 = tpu.matmul %273, %727, %cst_159 {dimension_numbers = #tpu.dot_dimension_numbers<[1], [0], [0], [1], [0, 0, 1, 1], [], []>} : vector<64x16xf32>, vector<16x128xf32>, vector<64x128xf32> -> vector<64x128xf32>
    %782 = vector.extract_strided_slice %781 {offsets = [0, 0], sizes = [16, 128], strides = [1, 1]} : vector<64x128xf32> to vector<16x128xf32>
    %783 = arith.mulf %780, %782 : vector<16x128xf32>
    %cst_160 = arith.constant dense<0.000000e+00> : vector<128xf32>
    %784 = vector.multi_reduction <add>, %783, %cst_160 [0] : vector<16x128xf32> to vector<128xf32>
    %785 = vector.shape_cast %784 : vector<128xf32> to vector<1x128xf32>
    %c3_161 = arith.constant 3 : index
    %c0_162 = arith.constant 0 : index
    %786 = vector.load %arg7[%c3_161, %c0_162] : memref<32x128xf32, #tpu.memory_space<vmem>>, vector<1x128xf32>
    tpu.vector_store %arg7[%c3_161, %c0_162], %785 {strides = array<i32>} : memref<32x128xf32, #tpu.memory_space<vmem>>, vector<1x128xf32>,
    %787 = vector.extract_strided_slice %781 {offsets = [16, 0], sizes = [16, 128], strides = [1, 1]} : vector<64x128xf32> to vector<16x128xf32>
    %788 = arith.mulf %780, %787 : vector<16x128xf32>
    %cst_163 = arith.constant dense<0.000000e+00> : vector<128xf32>
    %789 = vector.multi_reduction <add>, %788, %cst_163 [0] : vector<16x128xf32> to vector<128xf32>
    %790 = vector.shape_cast %789 : vector<128xf32> to vector<1x128xf32>
    %c11_164 = arith.constant 11 : index
    %c0_165 = arith.constant 0 : index
    %791 = vector.load %arg7[%c11_164, %c0_165] : memref<32x128xf32, #tpu.memory_space<vmem>>, vector<1x128xf32>
    tpu.vector_store %arg7[%c11_164, %c0_165], %790 {strides = array<i32>} : memref<32x128xf32, #tpu.memory_space<vmem>>, vector<1x128xf32>,
    %792 = vector.extract_strided_slice %781 {offsets = [32, 0], sizes = [16, 128], strides = [1, 1]} : vector<64x128xf32> to vector<16x128xf32>
    %793 = arith.mulf %780, %792 : vector<16x128xf32>
    %cst_166 = arith.constant dense<0.000000e+00> : vector<128xf32>
    %794 = vector.multi_reduction <add>, %793, %cst_166 [0] : vector<16x128xf32> to vector<128xf32>
    %795 = vector.shape_cast %794 : vector<128xf32> to vector<1x128xf32>
    %c19_167 = arith.constant 19 : index
    %c0_168 = arith.constant 0 : index
    %796 = vector.load %arg7[%c19_167, %c0_168] : memref<32x128xf32, #tpu.memory_space<vmem>>, vector<1x128xf32>
    tpu.vector_store %arg7[%c19_167, %c0_168], %795 {strides = array<i32>} : memref<32x128xf32, #tpu.memory_space<vmem>>, vector<1x128xf32>,
    %797 = vector.extract_strided_slice %781 {offsets = [48, 0], sizes = [16, 128], strides = [1, 1]} : vector<64x128xf32> to vector<16x128xf32>
    %798 = arith.mulf %780, %797 : vector<16x128xf32>
    %cst_169 = arith.constant dense<0.000000e+00> : vector<128xf32>
    %799 = vector.multi_reduction <add>, %798, %cst_169 [0] : vector<16x128xf32> to vector<128xf32>
    %800 = vector.shape_cast %799 : vector<128xf32> to vector<1x128xf32>
    %c27_170 = arith.constant 27 : index
    %c0_171 = arith.constant 0 : index
    %801 = vector.load %arg7[%c27_170, %c0_171] : memref<32x128xf32, #tpu.memory_space<vmem>>, vector<1x128xf32>
    tpu.vector_store %arg7[%c27_170, %c0_171], %800 {strides = array<i32>} : memref<32x128xf32, #tpu.memory_space<vmem>>, vector<1x128xf32>,
    %802 = vector.extract_strided_slice %268 {offsets = [4, 0], sizes = [1, 128], strides = [1, 1]} : vector<8x128xf32> to vector<1x128xf32>
    %803 = vector.extract_strided_slice %269 {offsets = [4, 0], sizes = [1, 128], strides = [1, 1]} : vector<8x128xf32> to vector<1x128xf32>
    %804 = vector.extract_strided_slice %270 {offsets = [4, 0], sizes = [1, 128], strides = [1, 1]} : vector<8x128xf32> to vector<1x128xf32>
    %805 = vector.extract_strided_slice %271 {offsets = [4, 0], sizes = [1, 128], strides = [1, 1]} : vector<8x128xf32> to vector<1x128xf32>
    %cst_172 = arith.constant 0.000000e+00 : f32
    %806 = vector.broadcast %cst_172 : f32 to vector<16x128xf32>
    %cst_173 = arith.constant 0.000000e+00 : f32
    %807 = vector.broadcast %cst_173 : f32 to vector<1x128xf32>
    %808 = arith.addf %802, %807 : vector<1x128xf32>
    %cst_174 = arith.constant 1.000000e+00 : f32
    %809 = vector.broadcast %cst_174 : f32 to vector<1x128xf32>
    %810 = arith.subf %809, %804 : vector<1x128xf32>
    %cst_175 = arith.constant 0.000000e+00 : f32
    %811 = vector.broadcast %cst_175 : f32 to vector<1x128xf32>
    %812 = arith.cmpf oge, %808, %811 : vector<1x128xf32>
    %cst_176 = arith.constant 1.000000e+00 : f32
    %813 = arith.subf %9, %cst_176 : f32
    %814 = vector.broadcast %813 : f32 to vector<1x128xf32>
    %815 = arith.cmpf ole, %808, %814 : vector<1x128xf32>
    %816 = arith.andi %812, %815 : vector<1x128xi1>
    %817 = arith.extui %816 : vector<1x128xi1> to vector<1x128xi32>
    %818 = arith.sitofp %817 : vector<1x128xi32> to vector<1x128xf32>
    %cst_177 = arith.constant 1.000000e+00 : f32
    %819 = arith.subf %9, %cst_177 : f32
    %cst_178 = arith.constant 0.000000e+00 : f32
    %820 = vector.broadcast %cst_178 : f32 to vector<1x128xf32>
    %821 = arith.maximumf %820, %808 : vector<1x128xf32>
    %822 = vector.broadcast %819 : f32 to vector<1x128xf32>
    %823 = arith.minimumf %822, %821 : vector<1x128xf32>
    %824 = vector.broadcast %5 : f32 to vector<1x128xf32>
    %825 = arith.addf %823, %824 : vector<1x128xf32>
    %826 = vector.broadcast %825 : vector<1x128xf32> to vector<16x128xf32>
    %827 = arith.cmpf oeq, %275, %826 : vector<16x128xf32>
    %828 = arith.extui %827 : vector<16x128xi1> to vector<16x128xi32>
    %829 = arith.sitofp %828 : vector<16x128xi32> to vector<16x128xf32>
    %830 = arith.mulf %810, %818 : vector<1x128xf32>
    %831 = vector.broadcast %830 : vector<1x128xf32> to vector<16x128xf32>
    %832 = arith.mulf %829, %831 : vector<16x128xf32>
    %833 = arith.addf %806, %832 : vector<16x128xf32>
    %cst_179 = arith.constant 1.000000e+00 : f32
    %834 = vector.broadcast %cst_179 : f32 to vector<1x128xf32>
    %835 = arith.addf %802, %834 : vector<1x128xf32>
    %cst_180 = arith.constant 0.000000e+00 : f32
    %836 = vector.broadcast %cst_180 : f32 to vector<1x128xf32>
    %837 = arith.cmpf oge, %835, %836 : vector<1x128xf32>
    %cst_181 = arith.constant 1.000000e+00 : f32
    %838 = arith.subf %9, %cst_181 : f32
    %839 = vector.broadcast %838 : f32 to vector<1x128xf32>
    %840 = arith.cmpf ole, %835, %839 : vector<1x128xf32>
    %841 = arith.andi %837, %840 : vector<1x128xi1>
    %842 = arith.extui %841 : vector<1x128xi1> to vector<1x128xi32>
    %843 = arith.sitofp %842 : vector<1x128xi32> to vector<1x128xf32>
    %cst_182 = arith.constant 1.000000e+00 : f32
    %844 = arith.subf %9, %cst_182 : f32
    %cst_183 = arith.constant 0.000000e+00 : f32
    %845 = vector.broadcast %cst_183 : f32 to vector<1x128xf32>
    %846 = arith.maximumf %845, %835 : vector<1x128xf32>
    %847 = vector.broadcast %844 : f32 to vector<1x128xf32>
    %848 = arith.minimumf %847, %846 : vector<1x128xf32>
    %849 = vector.broadcast %5 : f32 to vector<1x128xf32>
    %850 = arith.addf %848, %849 : vector<1x128xf32>
    %851 = vector.broadcast %850 : vector<1x128xf32> to vector<16x128xf32>
    %852 = arith.cmpf oeq, %275, %851 : vector<16x128xf32>
    %853 = arith.extui %852 : vector<16x128xi1> to vector<16x128xi32>
    %854 = arith.sitofp %853 : vector<16x128xi32> to vector<16x128xf32>
    %855 = arith.mulf %804, %843 : vector<1x128xf32>
    %856 = vector.broadcast %855 : vector<1x128xf32> to vector<16x128xf32>
    %857 = arith.mulf %854, %856 : vector<16x128xf32>
    %858 = arith.addf %833, %857 : vector<16x128xf32>
    %cst_184 = arith.constant 0.000000e+00 : f32
    %859 = vector.broadcast %cst_184 : f32 to vector<16x128xf32>
    %cst_185 = arith.constant 0.000000e+00 : f32
    %860 = vector.broadcast %cst_185 : f32 to vector<1x128xf32>
    %861 = arith.addf %803, %860 : vector<1x128xf32>
    %cst_186 = arith.constant 1.000000e+00 : f32
    %862 = vector.broadcast %cst_186 : f32 to vector<1x128xf32>
    %863 = arith.subf %862, %805 : vector<1x128xf32>
    %cst_187 = arith.constant 0.000000e+00 : f32
    %864 = vector.broadcast %cst_187 : f32 to vector<1x128xf32>
    %865 = arith.cmpf oge, %861, %864 : vector<1x128xf32>
    %cst_188 = arith.constant 1.000000e+00 : f32
    %866 = arith.subf %3, %cst_188 : f32
    %867 = vector.broadcast %866 : f32 to vector<1x128xf32>
    %868 = arith.cmpf ole, %861, %867 : vector<1x128xf32>
    %869 = arith.andi %865, %868 : vector<1x128xi1>
    %870 = arith.extui %869 : vector<1x128xi1> to vector<1x128xi32>
    %871 = arith.sitofp %870 : vector<1x128xi32> to vector<1x128xf32>
    %cst_189 = arith.constant 1.000000e+00 : f32
    %872 = arith.subf %3, %cst_189 : f32
    %cst_190 = arith.constant 0.000000e+00 : f32
    %873 = vector.broadcast %cst_190 : f32 to vector<1x128xf32>
    %874 = arith.maximumf %873, %861 : vector<1x128xf32>
    %875 = vector.broadcast %872 : f32 to vector<1x128xf32>
    %876 = arith.minimumf %875, %874 : vector<1x128xf32>
    %877 = vector.broadcast %7 : f32 to vector<1x128xf32>
    %878 = arith.addf %876, %877 : vector<1x128xf32>
    %879 = vector.broadcast %878 : vector<1x128xf32> to vector<16x128xf32>
    %880 = arith.cmpf oeq, %277, %879 : vector<16x128xf32>
    %881 = arith.extui %880 : vector<16x128xi1> to vector<16x128xi32>
    %882 = arith.sitofp %881 : vector<16x128xi32> to vector<16x128xf32>
    %883 = arith.mulf %863, %871 : vector<1x128xf32>
    %884 = vector.broadcast %883 : vector<1x128xf32> to vector<16x128xf32>
    %885 = arith.mulf %882, %884 : vector<16x128xf32>
    %886 = arith.addf %859, %885 : vector<16x128xf32>
    %cst_191 = arith.constant 1.000000e+00 : f32
    %887 = vector.broadcast %cst_191 : f32 to vector<1x128xf32>
    %888 = arith.addf %803, %887 : vector<1x128xf32>
    %cst_192 = arith.constant 0.000000e+00 : f32
    %889 = vector.broadcast %cst_192 : f32 to vector<1x128xf32>
    %890 = arith.cmpf oge, %888, %889 : vector<1x128xf32>
    %cst_193 = arith.constant 1.000000e+00 : f32
    %891 = arith.subf %3, %cst_193 : f32
    %892 = vector.broadcast %891 : f32 to vector<1x128xf32>
    %893 = arith.cmpf ole, %888, %892 : vector<1x128xf32>
    %894 = arith.andi %890, %893 : vector<1x128xi1>
    %895 = arith.extui %894 : vector<1x128xi1> to vector<1x128xi32>
    %896 = arith.sitofp %895 : vector<1x128xi32> to vector<1x128xf32>
    %cst_194 = arith.constant 1.000000e+00 : f32
    %897 = arith.subf %3, %cst_194 : f32
    %cst_195 = arith.constant 0.000000e+00 : f32
    %898 = vector.broadcast %cst_195 : f32 to vector<1x128xf32>
    %899 = arith.maximumf %898, %888 : vector<1x128xf32>
    %900 = vector.broadcast %897 : f32 to vector<1x128xf32>
    %901 = arith.minimumf %900, %899 : vector<1x128xf32>
    %902 = vector.broadcast %7 : f32 to vector<1x128xf32>
    %903 = arith.addf %901, %902 : vector<1x128xf32>
    %904 = vector.broadcast %903 : vector<1x128xf32> to vector<16x128xf32>
    %905 = arith.cmpf oeq, %277, %904 : vector<16x128xf32>
    %906 = arith.extui %905 : vector<16x128xi1> to vector<16x128xi32>
    %907 = arith.sitofp %906 : vector<16x128xi32> to vector<16x128xf32>
    %908 = arith.mulf %805, %896 : vector<1x128xf32>
    %909 = vector.broadcast %908 : vector<1x128xf32> to vector<16x128xf32>
    %910 = arith.mulf %907, %909 : vector<16x128xf32>
    %911 = arith.addf %886, %910 : vector<16x128xf32>
    %cst_196 = arith.constant dense<0.000000e+00> : vector<64x128xf32>
    %912 = tpu.matmul %273, %858, %cst_196 {dimension_numbers = #tpu.dot_dimension_numbers<[1], [0], [0], [1], [0, 0, 1, 1], [], []>} : vector<64x16xf32>, vector<16x128xf32>, vector<64x128xf32> -> vector<64x128xf32>
    %913 = vector.extract_strided_slice %912 {offsets = [0, 0], sizes = [16, 128], strides = [1, 1]} : vector<64x128xf32> to vector<16x128xf32>
    %914 = arith.mulf %911, %913 : vector<16x128xf32>
    %cst_197 = arith.constant dense<0.000000e+00> : vector<128xf32>
    %915 = vector.multi_reduction <add>, %914, %cst_197 [0] : vector<16x128xf32> to vector<128xf32>
    %916 = vector.shape_cast %915 : vector<128xf32> to vector<1x128xf32>
    %c4_198 = arith.constant 4 : index
    %c0_199 = arith.constant 0 : index
    %917 = vector.load %arg7[%c4_198, %c0_199] : memref<32x128xf32, #tpu.memory_space<vmem>>, vector<1x128xf32>
    tpu.vector_store %arg7[%c4_198, %c0_199], %916 {strides = array<i32>} : memref<32x128xf32, #tpu.memory_space<vmem>>, vector<1x128xf32>,
    %918 = vector.extract_strided_slice %912 {offsets = [16, 0], sizes = [16, 128], strides = [1, 1]} : vector<64x128xf32> to vector<16x128xf32>
    %919 = arith.mulf %911, %918 : vector<16x128xf32>
    %cst_200 = arith.constant dense<0.000000e+00> : vector<128xf32>
    %920 = vector.multi_reduction <add>, %919, %cst_200 [0] : vector<16x128xf32> to vector<128xf32>
    %921 = vector.shape_cast %920 : vector<128xf32> to vector<1x128xf32>
    %c12_201 = arith.constant 12 : index
    %c0_202 = arith.constant 0 : index
    %922 = vector.load %arg7[%c12_201, %c0_202] : memref<32x128xf32, #tpu.memory_space<vmem>>, vector<1x128xf32>
    tpu.vector_store %arg7[%c12_201, %c0_202], %921 {strides = array<i32>} : memref<32x128xf32, #tpu.memory_space<vmem>>, vector<1x128xf32>,
    %923 = vector.extract_strided_slice %912 {offsets = [32, 0], sizes = [16, 128], strides = [1, 1]} : vector<64x128xf32> to vector<16x128xf32>
    %924 = arith.mulf %911, %923 : vector<16x128xf32>
    %cst_203 = arith.constant dense<0.000000e+00> : vector<128xf32>
    %925 = vector.multi_reduction <add>, %924, %cst_203 [0] : vector<16x128xf32> to vector<128xf32>
    %926 = vector.shape_cast %925 : vector<128xf32> to vector<1x128xf32>
    %c20_204 = arith.constant 20 : index
    %c0_205 = arith.constant 0 : index
    %927 = vector.load %arg7[%c20_204, %c0_205] : memref<32x128xf32, #tpu.memory_space<vmem>>, vector<1x128xf32>
    tpu.vector_store %arg7[%c20_204, %c0_205], %926 {strides = array<i32>} : memref<32x128xf32, #tpu.memory_space<vmem>>, vector<1x128xf32>,
    %928 = vector.extract_strided_slice %912 {offsets = [48, 0], sizes = [16, 128], strides = [1, 1]} : vector<64x128xf32> to vector<16x128xf32>
    %929 = arith.mulf %911, %928 : vector<16x128xf32>
    %cst_206 = arith.constant dense<0.000000e+00> : vector<128xf32>
    %930 = vector.multi_reduction <add>, %929, %cst_206 [0] : vector<16x128xf32> to vector<128xf32>
    %931 = vector.shape_cast %930 : vector<128xf32> to vector<1x128xf32>
    %c28_207 = arith.constant 28 : index
    %c0_208 = arith.constant 0 : index
    %932 = vector.load %arg7[%c28_207, %c0_208] : memref<32x128xf32, #tpu.memory_space<vmem>>, vector<1x128xf32>
    tpu.vector_store %arg7[%c28_207, %c0_208], %931 {strides = array<i32>} : memref<32x128xf32, #tpu.memory_space<vmem>>, vector<1x128xf32>,
    %933 = vector.extract_strided_slice %268 {offsets = [5, 0], sizes = [1, 128], strides = [1, 1]} : vector<8x128xf32> to vector<1x128xf32>
    %934 = vector.extract_strided_slice %269 {offsets = [5, 0], sizes = [1, 128], strides = [1, 1]} : vector<8x128xf32> to vector<1x128xf32>
    %935 = vector.extract_strided_slice %270 {offsets = [5, 0], sizes = [1, 128], strides = [1, 1]} : vector<8x128xf32> to vector<1x128xf32>
    %936 = vector.extract_strided_slice %271 {offsets = [5, 0], sizes = [1, 128], strides = [1, 1]} : vector<8x128xf32> to vector<1x128xf32>
    %cst_209 = arith.constant 0.000000e+00 : f32
    %937 = vector.broadcast %cst_209 : f32 to vector<16x128xf32>
    %cst_210 = arith.constant 0.000000e+00 : f32
    %938 = vector.broadcast %cst_210 : f32 to vector<1x128xf32>
    %939 = arith.addf %933, %938 : vector<1x128xf32>
    %cst_211 = arith.constant 1.000000e+00 : f32
    %940 = vector.broadcast %cst_211 : f32 to vector<1x128xf32>
    %941 = arith.subf %940, %935 : vector<1x128xf32>
    %cst_212 = arith.constant 0.000000e+00 : f32
    %942 = vector.broadcast %cst_212 : f32 to vector<1x128xf32>
    %943 = arith.cmpf oge, %939, %942 : vector<1x128xf32>
    %cst_213 = arith.constant 1.000000e+00 : f32
    %944 = arith.subf %9, %cst_213 : f32
    %945 = vector.broadcast %944 : f32 to vector<1x128xf32>
    %946 = arith.cmpf ole, %939, %945 : vector<1x128xf32>
    %947 = arith.andi %943, %946 : vector<1x128xi1>
    %948 = arith.extui %947 : vector<1x128xi1> to vector<1x128xi32>
    %949 = arith.sitofp %948 : vector<1x128xi32> to vector<1x128xf32>
    %cst_214 = arith.constant 1.000000e+00 : f32
    %950 = arith.subf %9, %cst_214 : f32
    %cst_215 = arith.constant 0.000000e+00 : f32
    %951 = vector.broadcast %cst_215 : f32 to vector<1x128xf32>
    %952 = arith.maximumf %951, %939 : vector<1x128xf32>
    %953 = vector.broadcast %950 : f32 to vector<1x128xf32>
    %954 = arith.minimumf %953, %952 : vector<1x128xf32>
    %955 = vector.broadcast %5 : f32 to vector<1x128xf32>
    %956 = arith.addf %954, %955 : vector<1x128xf32>
    %957 = vector.broadcast %956 : vector<1x128xf32> to vector<16x128xf32>
    %958 = arith.cmpf oeq, %275, %957 : vector<16x128xf32>
    %959 = arith.extui %958 : vector<16x128xi1> to vector<16x128xi32>
    %960 = arith.sitofp %959 : vector<16x128xi32> to vector<16x128xf32>
    %961 = arith.mulf %941, %949 : vector<1x128xf32>
    %962 = vector.broadcast %961 : vector<1x128xf32> to vector<16x128xf32>
    %963 = arith.mulf %960, %962 : vector<16x128xf32>
    %964 = arith.addf %937, %963 : vector<16x128xf32>
    %cst_216 = arith.constant 1.000000e+00 : f32
    %965 = vector.broadcast %cst_216 : f32 to vector<1x128xf32>
    %966 = arith.addf %933, %965 : vector<1x128xf32>
    %cst_217 = arith.constant 0.000000e+00 : f32
    %967 = vector.broadcast %cst_217 : f32 to vector<1x128xf32>
    %968 = arith.cmpf oge, %966, %967 : vector<1x128xf32>
    %cst_218 = arith.constant 1.000000e+00 : f32
    %969 = arith.subf %9, %cst_218 : f32
    %970 = vector.broadcast %969 : f32 to vector<1x128xf32>
    %971 = arith.cmpf ole, %966, %970 : vector<1x128xf32>
    %972 = arith.andi %968, %971 : vector<1x128xi1>
    %973 = arith.extui %972 : vector<1x128xi1> to vector<1x128xi32>
    %974 = arith.sitofp %973 : vector<1x128xi32> to vector<1x128xf32>
    %cst_219 = arith.constant 1.000000e+00 : f32
    %975 = arith.subf %9, %cst_219 : f32
    %cst_220 = arith.constant 0.000000e+00 : f32
    %976 = vector.broadcast %cst_220 : f32 to vector<1x128xf32>
    %977 = arith.maximumf %976, %966 : vector<1x128xf32>
    %978 = vector.broadcast %975 : f32 to vector<1x128xf32>
    %979 = arith.minimumf %978, %977 : vector<1x128xf32>
    %980 = vector.broadcast %5 : f32 to vector<1x128xf32>
    %981 = arith.addf %979, %980 : vector<1x128xf32>
    %982 = vector.broadcast %981 : vector<1x128xf32> to vector<16x128xf32>
    %983 = arith.cmpf oeq, %275, %982 : vector<16x128xf32>
    %984 = arith.extui %983 : vector<16x128xi1> to vector<16x128xi32>
    %985 = arith.sitofp %984 : vector<16x128xi32> to vector<16x128xf32>
    %986 = arith.mulf %935, %974 : vector<1x128xf32>
    %987 = vector.broadcast %986 : vector<1x128xf32> to vector<16x128xf32>
    %988 = arith.mulf %985, %987 : vector<16x128xf32>
    %989 = arith.addf %964, %988 : vector<16x128xf32>
    %cst_221 = arith.constant 0.000000e+00 : f32
    %990 = vector.broadcast %cst_221 : f32 to vector<16x128xf32>
    %cst_222 = arith.constant 0.000000e+00 : f32
    %991 = vector.broadcast %cst_222 : f32 to vector<1x128xf32>
    %992 = arith.addf %934, %991 : vector<1x128xf32>
    %cst_223 = arith.constant 1.000000e+00 : f32
    %993 = vector.broadcast %cst_223 : f32 to vector<1x128xf32>
    %994 = arith.subf %993, %936 : vector<1x128xf32>
    %cst_224 = arith.constant 0.000000e+00 : f32
    %995 = vector.broadcast %cst_224 : f32 to vector<1x128xf32>
    %996 = arith.cmpf oge, %992, %995 : vector<1x128xf32>
    %cst_225 = arith.constant 1.000000e+00 : f32
    %997 = arith.subf %3, %cst_225 : f32
    %998 = vector.broadcast %997 : f32 to vector<1x128xf32>
    %999 = arith.cmpf ole, %992, %998 : vector<1x128xf32>
    %1000 = arith.andi %996, %999 : vector<1x128xi1>
    %1001 = arith.extui %1000 : vector<1x128xi1> to vector<1x128xi32>
    %1002 = arith.sitofp %1001 : vector<1x128xi32> to vector<1x128xf32>
    %cst_226 = arith.constant 1.000000e+00 : f32
    %1003 = arith.subf %3, %cst_226 : f32
    %cst_227 = arith.constant 0.000000e+00 : f32
    %1004 = vector.broadcast %cst_227 : f32 to vector<1x128xf32>
    %1005 = arith.maximumf %1004, %992 : vector<1x128xf32>
    %1006 = vector.broadcast %1003 : f32 to vector<1x128xf32>
    %1007 = arith.minimumf %1006, %1005 : vector<1x128xf32>
    %1008 = vector.broadcast %7 : f32 to vector<1x128xf32>
    %1009 = arith.addf %1007, %1008 : vector<1x128xf32>
    %1010 = vector.broadcast %1009 : vector<1x128xf32> to vector<16x128xf32>
    %1011 = arith.cmpf oeq, %277, %1010 : vector<16x128xf32>
    %1012 = arith.extui %1011 : vector<16x128xi1> to vector<16x128xi32>
    %1013 = arith.sitofp %1012 : vector<16x128xi32> to vector<16x128xf32>
    %1014 = arith.mulf %994, %1002 : vector<1x128xf32>
    %1015 = vector.broadcast %1014 : vector<1x128xf32> to vector<16x128xf32>
    %1016 = arith.mulf %1013, %1015 : vector<16x128xf32>
    %1017 = arith.addf %990, %1016 : vector<16x128xf32>
    %cst_228 = arith.constant 1.000000e+00 : f32
    %1018 = vector.broadcast %cst_228 : f32 to vector<1x128xf32>
    %1019 = arith.addf %934, %1018 : vector<1x128xf32>
    %cst_229 = arith.constant 0.000000e+00 : f32
    %1020 = vector.broadcast %cst_229 : f32 to vector<1x128xf32>
    %1021 = arith.cmpf oge, %1019, %1020 : vector<1x128xf32>
    %cst_230 = arith.constant 1.000000e+00 : f32
    %1022 = arith.subf %3, %cst_230 : f32
    %1023 = vector.broadcast %1022 : f32 to vector<1x128xf32>
    %1024 = arith.cmpf ole, %1019, %1023 : vector<1x128xf32>
    %1025 = arith.andi %1021, %1024 : vector<1x128xi1>
    %1026 = arith.extui %1025 : vector<1x128xi1> to vector<1x128xi32>
    %1027 = arith.sitofp %1026 : vector<1x128xi32> to vector<1x128xf32>
    %cst_231 = arith.constant 1.000000e+00 : f32
    %1028 = arith.subf %3, %cst_231 : f32
    %cst_232 = arith.constant 0.000000e+00 : f32
    %1029 = vector.broadcast %cst_232 : f32 to vector<1x128xf32>
    %1030 = arith.maximumf %1029, %1019 : vector<1x128xf32>
    %1031 = vector.broadcast %1028 : f32 to vector<1x128xf32>
    %1032 = arith.minimumf %1031, %1030 : vector<1x128xf32>
    %1033 = vector.broadcast %7 : f32 to vector<1x128xf32>
    %1034 = arith.addf %1032, %1033 : vector<1x128xf32>
    %1035 = vector.broadcast %1034 : vector<1x128xf32> to vector<16x128xf32>
    %1036 = arith.cmpf oeq, %277, %1035 : vector<16x128xf32>
    %1037 = arith.extui %1036 : vector<16x128xi1> to vector<16x128xi32>
    %1038 = arith.sitofp %1037 : vector<16x128xi32> to vector<16x128xf32>
    %1039 = arith.mulf %936, %1027 : vector<1x128xf32>
    %1040 = vector.broadcast %1039 : vector<1x128xf32> to vector<16x128xf32>
    %1041 = arith.mulf %1038, %1040 : vector<16x128xf32>
    %1042 = arith.addf %1017, %1041 : vector<16x128xf32>
    %cst_233 = arith.constant dense<0.000000e+00> : vector<64x128xf32>
    %1043 = tpu.matmul %273, %989, %cst_233 {dimension_numbers = #tpu.dot_dimension_numbers<[1], [0], [0], [1], [0, 0, 1, 1], [], []>} : vector<64x16xf32>, vector<16x128xf32>, vector<64x128xf32> -> vector<64x128xf32>
    %1044 = vector.extract_strided_slice %1043 {offsets = [0, 0], sizes = [16, 128], strides = [1, 1]} : vector<64x128xf32> to vector<16x128xf32>
    %1045 = arith.mulf %1042, %1044 : vector<16x128xf32>
    %cst_234 = arith.constant dense<0.000000e+00> : vector<128xf32>
    %1046 = vector.multi_reduction <add>, %1045, %cst_234 [0] : vector<16x128xf32> to vector<128xf32>
    %1047 = vector.shape_cast %1046 : vector<128xf32> to vector<1x128xf32>
    %c5_235 = arith.constant 5 : index
    %c0_236 = arith.constant 0 : index
    %1048 = vector.load %arg7[%c5_235, %c0_236] : memref<32x128xf32, #tpu.memory_space<vmem>>, vector<1x128xf32>
    tpu.vector_store %arg7[%c5_235, %c0_236], %1047 {strides = array<i32>} : memref<32x128xf32, #tpu.memory_space<vmem>>, vector<1x128xf32>,
    %1049 = vector.extract_strided_slice %1043 {offsets = [16, 0], sizes = [16, 128], strides = [1, 1]} : vector<64x128xf32> to vector<16x128xf32>
    %1050 = arith.mulf %1042, %1049 : vector<16x128xf32>
    %cst_237 = arith.constant dense<0.000000e+00> : vector<128xf32>
    %1051 = vector.multi_reduction <add>, %1050, %cst_237 [0] : vector<16x128xf32> to vector<128xf32>
    %1052 = vector.shape_cast %1051 : vector<128xf32> to vector<1x128xf32>
    %c13_238 = arith.constant 13 : index
    %c0_239 = arith.constant 0 : index
    %1053 = vector.load %arg7[%c13_238, %c0_239] : memref<32x128xf32, #tpu.memory_space<vmem>>, vector<1x128xf32>
    tpu.vector_store %arg7[%c13_238, %c0_239], %1052 {strides = array<i32>} : memref<32x128xf32, #tpu.memory_space<vmem>>, vector<1x128xf32>,
    %1054 = vector.extract_strided_slice %1043 {offsets = [32, 0], sizes = [16, 128], strides = [1, 1]} : vector<64x128xf32> to vector<16x128xf32>
    %1055 = arith.mulf %1042, %1054 : vector<16x128xf32>
    %cst_240 = arith.constant dense<0.000000e+00> : vector<128xf32>
    %1056 = vector.multi_reduction <add>, %1055, %cst_240 [0] : vector<16x128xf32> to vector<128xf32>
    %1057 = vector.shape_cast %1056 : vector<128xf32> to vector<1x128xf32>
    %c21_241 = arith.constant 21 : index
    %c0_242 = arith.constant 0 : index
    %1058 = vector.load %arg7[%c21_241, %c0_242] : memref<32x128xf32, #tpu.memory_space<vmem>>, vector<1x128xf32>
    tpu.vector_store %arg7[%c21_241, %c0_242], %1057 {strides = array<i32>} : memref<32x128xf32, #tpu.memory_space<vmem>>, vector<1x128xf32>,
    %1059 = vector.extract_strided_slice %1043 {offsets = [48, 0], sizes = [16, 128], strides = [1, 1]} : vector<64x128xf32> to vector<16x128xf32>
    %1060 = arith.mulf %1042, %1059 : vector<16x128xf32>
    %cst_243 = arith.constant dense<0.000000e+00> : vector<128xf32>
    %1061 = vector.multi_reduction <add>, %1060, %cst_243 [0] : vector<16x128xf32> to vector<128xf32>
    %1062 = vector.shape_cast %1061 : vector<128xf32> to vector<1x128xf32>
    %c29_244 = arith.constant 29 : index
    %c0_245 = arith.constant 0 : index
    %1063 = vector.load %arg7[%c29_244, %c0_245] : memref<32x128xf32, #tpu.memory_space<vmem>>, vector<1x128xf32>
    tpu.vector_store %arg7[%c29_244, %c0_245], %1062 {strides = array<i32>} : memref<32x128xf32, #tpu.memory_space<vmem>>, vector<1x128xf32>,
    %1064 = vector.extract_strided_slice %268 {offsets = [6, 0], sizes = [1, 128], strides = [1, 1]} : vector<8x128xf32> to vector<1x128xf32>
    %1065 = vector.extract_strided_slice %269 {offsets = [6, 0], sizes = [1, 128], strides = [1, 1]} : vector<8x128xf32> to vector<1x128xf32>
    %1066 = vector.extract_strided_slice %270 {offsets = [6, 0], sizes = [1, 128], strides = [1, 1]} : vector<8x128xf32> to vector<1x128xf32>
    %1067 = vector.extract_strided_slice %271 {offsets = [6, 0], sizes = [1, 128], strides = [1, 1]} : vector<8x128xf32> to vector<1x128xf32>
    %cst_246 = arith.constant 0.000000e+00 : f32
    %1068 = vector.broadcast %cst_246 : f32 to vector<16x128xf32>
    %cst_247 = arith.constant 0.000000e+00 : f32
    %1069 = vector.broadcast %cst_247 : f32 to vector<1x128xf32>
    %1070 = arith.addf %1064, %1069 : vector<1x128xf32>
    %cst_248 = arith.constant 1.000000e+00 : f32
    %1071 = vector.broadcast %cst_248 : f32 to vector<1x128xf32>
    %1072 = arith.subf %1071, %1066 : vector<1x128xf32>
    %cst_249 = arith.constant 0.000000e+00 : f32
    %1073 = vector.broadcast %cst_249 : f32 to vector<1x128xf32>
    %1074 = arith.cmpf oge, %1070, %1073 : vector<1x128xf32>
    %cst_250 = arith.constant 1.000000e+00 : f32
    %1075 = arith.subf %9, %cst_250 : f32
    %1076 = vector.broadcast %1075 : f32 to vector<1x128xf32>
    %1077 = arith.cmpf ole, %1070, %1076 : vector<1x128xf32>
    %1078 = arith.andi %1074, %1077 : vector<1x128xi1>
    %1079 = arith.extui %1078 : vector<1x128xi1> to vector<1x128xi32>
    %1080 = arith.sitofp %1079 : vector<1x128xi32> to vector<1x128xf32>
    %cst_251 = arith.constant 1.000000e+00 : f32
    %1081 = arith.subf %9, %cst_251 : f32
    %cst_252 = arith.constant 0.000000e+00 : f32
    %1082 = vector.broadcast %cst_252 : f32 to vector<1x128xf32>
    %1083 = arith.maximumf %1082, %1070 : vector<1x128xf32>
    %1084 = vector.broadcast %1081 : f32 to vector<1x128xf32>
    %1085 = arith.minimumf %1084, %1083 : vector<1x128xf32>
    %1086 = vector.broadcast %5 : f32 to vector<1x128xf32>
    %1087 = arith.addf %1085, %1086 : vector<1x128xf32>
    %1088 = vector.broadcast %1087 : vector<1x128xf32> to vector<16x128xf32>
    %1089 = arith.cmpf oeq, %275, %1088 : vector<16x128xf32>
    %1090 = arith.extui %1089 : vector<16x128xi1> to vector<16x128xi32>
    %1091 = arith.sitofp %1090 : vector<16x128xi32> to vector<16x128xf32>
    %1092 = arith.mulf %1072, %1080 : vector<1x128xf32>
    %1093 = vector.broadcast %1092 : vector<1x128xf32> to vector<16x128xf32>
    %1094 = arith.mulf %1091, %1093 : vector<16x128xf32>
    %1095 = arith.addf %1068, %1094 : vector<16x128xf32>
    %cst_253 = arith.constant 1.000000e+00 : f32
    %1096 = vector.broadcast %cst_253 : f32 to vector<1x128xf32>
    %1097 = arith.addf %1064, %1096 : vector<1x128xf32>
    %cst_254 = arith.constant 0.000000e+00 : f32
    %1098 = vector.broadcast %cst_254 : f32 to vector<1x128xf32>
    %1099 = arith.cmpf oge, %1097, %1098 : vector<1x128xf32>
    %cst_255 = arith.constant 1.000000e+00 : f32
    %1100 = arith.subf %9, %cst_255 : f32
    %1101 = vector.broadcast %1100 : f32 to vector<1x128xf32>
    %1102 = arith.cmpf ole, %1097, %1101 : vector<1x128xf32>
    %1103 = arith.andi %1099, %1102 : vector<1x128xi1>
    %1104 = arith.extui %1103 : vector<1x128xi1> to vector<1x128xi32>
    %1105 = arith.sitofp %1104 : vector<1x128xi32> to vector<1x128xf32>
    %cst_256 = arith.constant 1.000000e+00 : f32
    %1106 = arith.subf %9, %cst_256 : f32
    %cst_257 = arith.constant 0.000000e+00 : f32
    %1107 = vector.broadcast %cst_257 : f32 to vector<1x128xf32>
    %1108 = arith.maximumf %1107, %1097 : vector<1x128xf32>
    %1109 = vector.broadcast %1106 : f32 to vector<1x128xf32>
    %1110 = arith.minimumf %1109, %1108 : vector<1x128xf32>
    %1111 = vector.broadcast %5 : f32 to vector<1x128xf32>
    %1112 = arith.addf %1110, %1111 : vector<1x128xf32>
    %1113 = vector.broadcast %1112 : vector<1x128xf32> to vector<16x128xf32>
    %1114 = arith.cmpf oeq, %275, %1113 : vector<16x128xf32>
    %1115 = arith.extui %1114 : vector<16x128xi1> to vector<16x128xi32>
    %1116 = arith.sitofp %1115 : vector<16x128xi32> to vector<16x128xf32>
    %1117 = arith.mulf %1066, %1105 : vector<1x128xf32>
    %1118 = vector.broadcast %1117 : vector<1x128xf32> to vector<16x128xf32>
    %1119 = arith.mulf %1116, %1118 : vector<16x128xf32>
    %1120 = arith.addf %1095, %1119 : vector<16x128xf32>
    %cst_258 = arith.constant 0.000000e+00 : f32
    %1121 = vector.broadcast %cst_258 : f32 to vector<16x128xf32>
    %cst_259 = arith.constant 0.000000e+00 : f32
    %1122 = vector.broadcast %cst_259 : f32 to vector<1x128xf32>
    %1123 = arith.addf %1065, %1122 : vector<1x128xf32>
    %cst_260 = arith.constant 1.000000e+00 : f32
    %1124 = vector.broadcast %cst_260 : f32 to vector<1x128xf32>
    %1125 = arith.subf %1124, %1067 : vector<1x128xf32>
    %cst_261 = arith.constant 0.000000e+00 : f32
    %1126 = vector.broadcast %cst_261 : f32 to vector<1x128xf32>
    %1127 = arith.cmpf oge, %1123, %1126 : vector<1x128xf32>
    %cst_262 = arith.constant 1.000000e+00 : f32
    %1128 = arith.subf %3, %cst_262 : f32
    %1129 = vector.broadcast %1128 : f32 to vector<1x128xf32>
    %1130 = arith.cmpf ole, %1123, %1129 : vector<1x128xf32>
    %1131 = arith.andi %1127, %1130 : vector<1x128xi1>
    %1132 = arith.extui %1131 : vector<1x128xi1> to vector<1x128xi32>
    %1133 = arith.sitofp %1132 : vector<1x128xi32> to vector<1x128xf32>
    %cst_263 = arith.constant 1.000000e+00 : f32
    %1134 = arith.subf %3, %cst_263 : f32
    %cst_264 = arith.constant 0.000000e+00 : f32
    %1135 = vector.broadcast %cst_264 : f32 to vector<1x128xf32>
    %1136 = arith.maximumf %1135, %1123 : vector<1x128xf32>
    %1137 = vector.broadcast %1134 : f32 to vector<1x128xf32>
    %1138 = arith.minimumf %1137, %1136 : vector<1x128xf32>
    %1139 = vector.broadcast %7 : f32 to vector<1x128xf32>
    %1140 = arith.addf %1138, %1139 : vector<1x128xf32>
    %1141 = vector.broadcast %1140 : vector<1x128xf32> to vector<16x128xf32>
    %1142 = arith.cmpf oeq, %277, %1141 : vector<16x128xf32>
    %1143 = arith.extui %1142 : vector<16x128xi1> to vector<16x128xi32>
    %1144 = arith.sitofp %1143 : vector<16x128xi32> to vector<16x128xf32>
    %1145 = arith.mulf %1125, %1133 : vector<1x128xf32>
    %1146 = vector.broadcast %1145 : vector<1x128xf32> to vector<16x128xf32>
    %1147 = arith.mulf %1144, %1146 : vector<16x128xf32>
    %1148 = arith.addf %1121, %1147 : vector<16x128xf32>
    %cst_265 = arith.constant 1.000000e+00 : f32
    %1149 = vector.broadcast %cst_265 : f32 to vector<1x128xf32>
    %1150 = arith.addf %1065, %1149 : vector<1x128xf32>
    %cst_266 = arith.constant 0.000000e+00 : f32
    %1151 = vector.broadcast %cst_266 : f32 to vector<1x128xf32>
    %1152 = arith.cmpf oge, %1150, %1151 : vector<1x128xf32>
    %cst_267 = arith.constant 1.000000e+00 : f32
    %1153 = arith.subf %3, %cst_267 : f32
    %1154 = vector.broadcast %1153 : f32 to vector<1x128xf32>
    %1155 = arith.cmpf ole, %1150, %1154 : vector<1x128xf32>
    %1156 = arith.andi %1152, %1155 : vector<1x128xi1>
    %1157 = arith.extui %1156 : vector<1x128xi1> to vector<1x128xi32>
    %1158 = arith.sitofp %1157 : vector<1x128xi32> to vector<1x128xf32>
    %cst_268 = arith.constant 1.000000e+00 : f32
    %1159 = arith.subf %3, %cst_268 : f32
    %cst_269 = arith.constant 0.000000e+00 : f32
    %1160 = vector.broadcast %cst_269 : f32 to vector<1x128xf32>
    %1161 = arith.maximumf %1160, %1150 : vector<1x128xf32>
    %1162 = vector.broadcast %1159 : f32 to vector<1x128xf32>
    %1163 = arith.minimumf %1162, %1161 : vector<1x128xf32>
    %1164 = vector.broadcast %7 : f32 to vector<1x128xf32>
    %1165 = arith.addf %1163, %1164 : vector<1x128xf32>
    %1166 = vector.broadcast %1165 : vector<1x128xf32> to vector<16x128xf32>
    %1167 = arith.cmpf oeq, %277, %1166 : vector<16x128xf32>
    %1168 = arith.extui %1167 : vector<16x128xi1> to vector<16x128xi32>
    %1169 = arith.sitofp %1168 : vector<16x128xi32> to vector<16x128xf32>
    %1170 = arith.mulf %1067, %1158 : vector<1x128xf32>
    %1171 = vector.broadcast %1170 : vector<1x128xf32> to vector<16x128xf32>
    %1172 = arith.mulf %1169, %1171 : vector<16x128xf32>
    %1173 = arith.addf %1148, %1172 : vector<16x128xf32>
    %cst_270 = arith.constant dense<0.000000e+00> : vector<64x128xf32>
    %1174 = tpu.matmul %273, %1120, %cst_270 {dimension_numbers = #tpu.dot_dimension_numbers<[1], [0], [0], [1], [0, 0, 1, 1], [], []>} : vector<64x16xf32>, vector<16x128xf32>, vector<64x128xf32> -> vector<64x128xf32>
    %1175 = vector.extract_strided_slice %1174 {offsets = [0, 0], sizes = [16, 128], strides = [1, 1]} : vector<64x128xf32> to vector<16x128xf32>
    %1176 = arith.mulf %1173, %1175 : vector<16x128xf32>
    %cst_271 = arith.constant dense<0.000000e+00> : vector<128xf32>
    %1177 = vector.multi_reduction <add>, %1176, %cst_271 [0] : vector<16x128xf32> to vector<128xf32>
    %1178 = vector.shape_cast %1177 : vector<128xf32> to vector<1x128xf32>
    %c6_272 = arith.constant 6 : index
    %c0_273 = arith.constant 0 : index
    %1179 = vector.load %arg7[%c6_272, %c0_273] : memref<32x128xf32, #tpu.memory_space<vmem>>, vector<1x128xf32>
    tpu.vector_store %arg7[%c6_272, %c0_273], %1178 {strides = array<i32>} : memref<32x128xf32, #tpu.memory_space<vmem>>, vector<1x128xf32>,
    %1180 = vector.extract_strided_slice %1174 {offsets = [16, 0], sizes = [16, 128], strides = [1, 1]} : vector<64x128xf32> to vector<16x128xf32>
    %1181 = arith.mulf %1173, %1180 : vector<16x128xf32>
    %cst_274 = arith.constant dense<0.000000e+00> : vector<128xf32>
    %1182 = vector.multi_reduction <add>, %1181, %cst_274 [0] : vector<16x128xf32> to vector<128xf32>
    %1183 = vector.shape_cast %1182 : vector<128xf32> to vector<1x128xf32>
    %c14_275 = arith.constant 14 : index
    %c0_276 = arith.constant 0 : index
    %1184 = vector.load %arg7[%c14_275, %c0_276] : memref<32x128xf32, #tpu.memory_space<vmem>>, vector<1x128xf32>
    tpu.vector_store %arg7[%c14_275, %c0_276], %1183 {strides = array<i32>} : memref<32x128xf32, #tpu.memory_space<vmem>>, vector<1x128xf32>,
    %1185 = vector.extract_strided_slice %1174 {offsets = [32, 0], sizes = [16, 128], strides = [1, 1]} : vector<64x128xf32> to vector<16x128xf32>
    %1186 = arith.mulf %1173, %1185 : vector<16x128xf32>
    %cst_277 = arith.constant dense<0.000000e+00> : vector<128xf32>
    %1187 = vector.multi_reduction <add>, %1186, %cst_277 [0] : vector<16x128xf32> to vector<128xf32>
    %1188 = vector.shape_cast %1187 : vector<128xf32> to vector<1x128xf32>
    %c22_278 = arith.constant 22 : index
    %c0_279 = arith.constant 0 : index
    %1189 = vector.load %arg7[%c22_278, %c0_279] : memref<32x128xf32, #tpu.memory_space<vmem>>, vector<1x128xf32>
    tpu.vector_store %arg7[%c22_278, %c0_279], %1188 {strides = array<i32>} : memref<32x128xf32, #tpu.memory_space<vmem>>, vector<1x128xf32>,
    %1190 = vector.extract_strided_slice %1174 {offsets = [48, 0], sizes = [16, 128], strides = [1, 1]} : vector<64x128xf32> to vector<16x128xf32>
    %1191 = arith.mulf %1173, %1190 : vector<16x128xf32>
    %cst_280 = arith.constant dense<0.000000e+00> : vector<128xf32>
    %1192 = vector.multi_reduction <add>, %1191, %cst_280 [0] : vector<16x128xf32> to vector<128xf32>
    %1193 = vector.shape_cast %1192 : vector<128xf32> to vector<1x128xf32>
    %c30_281 = arith.constant 30 : index
    %c0_282 = arith.constant 0 : index
    %1194 = vector.load %arg7[%c30_281, %c0_282] : memref<32x128xf32, #tpu.memory_space<vmem>>, vector<1x128xf32>
    tpu.vector_store %arg7[%c30_281, %c0_282], %1193 {strides = array<i32>} : memref<32x128xf32, #tpu.memory_space<vmem>>, vector<1x128xf32>,
    %1195 = vector.extract_strided_slice %268 {offsets = [7, 0], sizes = [1, 128], strides = [1, 1]} : vector<8x128xf32> to vector<1x128xf32>
    %1196 = vector.extract_strided_slice %269 {offsets = [7, 0], sizes = [1, 128], strides = [1, 1]} : vector<8x128xf32> to vector<1x128xf32>
    %1197 = vector.extract_strided_slice %270 {offsets = [7, 0], sizes = [1, 128], strides = [1, 1]} : vector<8x128xf32> to vector<1x128xf32>
    %1198 = vector.extract_strided_slice %271 {offsets = [7, 0], sizes = [1, 128], strides = [1, 1]} : vector<8x128xf32> to vector<1x128xf32>
    %cst_283 = arith.constant 0.000000e+00 : f32
    %1199 = vector.broadcast %cst_283 : f32 to vector<16x128xf32>
    %cst_284 = arith.constant 0.000000e+00 : f32
    %1200 = vector.broadcast %cst_284 : f32 to vector<1x128xf32>
    %1201 = arith.addf %1195, %1200 : vector<1x128xf32>
    %cst_285 = arith.constant 1.000000e+00 : f32
    %1202 = vector.broadcast %cst_285 : f32 to vector<1x128xf32>
    %1203 = arith.subf %1202, %1197 : vector<1x128xf32>
    %cst_286 = arith.constant 0.000000e+00 : f32
    %1204 = vector.broadcast %cst_286 : f32 to vector<1x128xf32>
    %1205 = arith.cmpf oge, %1201, %1204 : vector<1x128xf32>
    %cst_287 = arith.constant 1.000000e+00 : f32
    %1206 = arith.subf %9, %cst_287 : f32
    %1207 = vector.broadcast %1206 : f32 to vector<1x128xf32>
    %1208 = arith.cmpf ole, %1201, %1207 : vector<1x128xf32>
    %1209 = arith.andi %1205, %1208 : vector<1x128xi1>
    %1210 = arith.extui %1209 : vector<1x128xi1> to vector<1x128xi32>
    %1211 = arith.sitofp %1210 : vector<1x128xi32> to vector<1x128xf32>
    %cst_288 = arith.constant 1.000000e+00 : f32
    %1212 = arith.subf %9, %cst_288 : f32
    %cst_289 = arith.constant 0.000000e+00 : f32
    %1213 = vector.broadcast %cst_289 : f32 to vector<1x128xf32>
    %1214 = arith.maximumf %1213, %1201 : vector<1x128xf32>
    %1215 = vector.broadcast %1212 : f32 to vector<1x128xf32>
    %1216 = arith.minimumf %1215, %1214 : vector<1x128xf32>
    %1217 = vector.broadcast %5 : f32 to vector<1x128xf32>
    %1218 = arith.addf %1216, %1217 : vector<1x128xf32>
    %1219 = vector.broadcast %1218 : vector<1x128xf32> to vector<16x128xf32>
    %1220 = arith.cmpf oeq, %275, %1219 : vector<16x128xf32>
    %1221 = arith.extui %1220 : vector<16x128xi1> to vector<16x128xi32>
    %1222 = arith.sitofp %1221 : vector<16x128xi32> to vector<16x128xf32>
    %1223 = arith.mulf %1203, %1211 : vector<1x128xf32>
    %1224 = vector.broadcast %1223 : vector<1x128xf32> to vector<16x128xf32>
    %1225 = arith.mulf %1222, %1224 : vector<16x128xf32>
    %1226 = arith.addf %1199, %1225 : vector<16x128xf32>
    %cst_290 = arith.constant 1.000000e+00 : f32
    %1227 = vector.broadcast %cst_290 : f32 to vector<1x128xf32>
    %1228 = arith.addf %1195, %1227 : vector<1x128xf32>
    %cst_291 = arith.constant 0.000000e+00 : f32
    %1229 = vector.broadcast %cst_291 : f32 to vector<1x128xf32>
    %1230 = arith.cmpf oge, %1228, %1229 : vector<1x128xf32>
    %cst_292 = arith.constant 1.000000e+00 : f32
    %1231 = arith.subf %9, %cst_292 : f32
    %1232 = vector.broadcast %1231 : f32 to vector<1x128xf32>
    %1233 = arith.cmpf ole, %1228, %1232 : vector<1x128xf32>
    %1234 = arith.andi %1230, %1233 : vector<1x128xi1>
    %1235 = arith.extui %1234 : vector<1x128xi1> to vector<1x128xi32>
    %1236 = arith.sitofp %1235 : vector<1x128xi32> to vector<1x128xf32>
    %cst_293 = arith.constant 1.000000e+00 : f32
    %1237 = arith.subf %9, %cst_293 : f32
    %cst_294 = arith.constant 0.000000e+00 : f32
    %1238 = vector.broadcast %cst_294 : f32 to vector<1x128xf32>
    %1239 = arith.maximumf %1238, %1228 : vector<1x128xf32>
    %1240 = vector.broadcast %1237 : f32 to vector<1x128xf32>
    %1241 = arith.minimumf %1240, %1239 : vector<1x128xf32>
    %1242 = vector.broadcast %5 : f32 to vector<1x128xf32>
    %1243 = arith.addf %1241, %1242 : vector<1x128xf32>
    %1244 = vector.broadcast %1243 : vector<1x128xf32> to vector<16x128xf32>
    %1245 = arith.cmpf oeq, %275, %1244 : vector<16x128xf32>
    %1246 = arith.extui %1245 : vector<16x128xi1> to vector<16x128xi32>
    %1247 = arith.sitofp %1246 : vector<16x128xi32> to vector<16x128xf32>
    %1248 = arith.mulf %1197, %1236 : vector<1x128xf32>
    %1249 = vector.broadcast %1248 : vector<1x128xf32> to vector<16x128xf32>
    %1250 = arith.mulf %1247, %1249 : vector<16x128xf32>
    %1251 = arith.addf %1226, %1250 : vector<16x128xf32>
    %cst_295 = arith.constant 0.000000e+00 : f32
    %1252 = vector.broadcast %cst_295 : f32 to vector<16x128xf32>
    %cst_296 = arith.constant 0.000000e+00 : f32
    %1253 = vector.broadcast %cst_296 : f32 to vector<1x128xf32>
    %1254 = arith.addf %1196, %1253 : vector<1x128xf32>
    %cst_297 = arith.constant 1.000000e+00 : f32
    %1255 = vector.broadcast %cst_297 : f32 to vector<1x128xf32>
    %1256 = arith.subf %1255, %1198 : vector<1x128xf32>
    %cst_298 = arith.constant 0.000000e+00 : f32
    %1257 = vector.broadcast %cst_298 : f32 to vector<1x128xf32>
    %1258 = arith.cmpf oge, %1254, %1257 : vector<1x128xf32>
    %cst_299 = arith.constant 1.000000e+00 : f32
    %1259 = arith.subf %3, %cst_299 : f32
    %1260 = vector.broadcast %1259 : f32 to vector<1x128xf32>
    %1261 = arith.cmpf ole, %1254, %1260 : vector<1x128xf32>
    %1262 = arith.andi %1258, %1261 : vector<1x128xi1>
    %1263 = arith.extui %1262 : vector<1x128xi1> to vector<1x128xi32>
    %1264 = arith.sitofp %1263 : vector<1x128xi32> to vector<1x128xf32>
    %cst_300 = arith.constant 1.000000e+00 : f32
    %1265 = arith.subf %3, %cst_300 : f32
    %cst_301 = arith.constant 0.000000e+00 : f32
    %1266 = vector.broadcast %cst_301 : f32 to vector<1x128xf32>
    %1267 = arith.maximumf %1266, %1254 : vector<1x128xf32>
    %1268 = vector.broadcast %1265 : f32 to vector<1x128xf32>
    %1269 = arith.minimumf %1268, %1267 : vector<1x128xf32>
    %1270 = vector.broadcast %7 : f32 to vector<1x128xf32>
    %1271 = arith.addf %1269, %1270 : vector<1x128xf32>
    %1272 = vector.broadcast %1271 : vector<1x128xf32> to vector<16x128xf32>
    %1273 = arith.cmpf oeq, %277, %1272 : vector<16x128xf32>
    %1274 = arith.extui %1273 : vector<16x128xi1> to vector<16x128xi32>
    %1275 = arith.sitofp %1274 : vector<16x128xi32> to vector<16x128xf32>
    %1276 = arith.mulf %1256, %1264 : vector<1x128xf32>
    %1277 = vector.broadcast %1276 : vector<1x128xf32> to vector<16x128xf32>
    %1278 = arith.mulf %1275, %1277 : vector<16x128xf32>
    %1279 = arith.addf %1252, %1278 : vector<16x128xf32>
    %cst_302 = arith.constant 1.000000e+00 : f32
    %1280 = vector.broadcast %cst_302 : f32 to vector<1x128xf32>
    %1281 = arith.addf %1196, %1280 : vector<1x128xf32>
    %cst_303 = arith.constant 0.000000e+00 : f32
    %1282 = vector.broadcast %cst_303 : f32 to vector<1x128xf32>
    %1283 = arith.cmpf oge, %1281, %1282 : vector<1x128xf32>
    %cst_304 = arith.constant 1.000000e+00 : f32
    %1284 = arith.subf %3, %cst_304 : f32
    %1285 = vector.broadcast %1284 : f32 to vector<1x128xf32>
    %1286 = arith.cmpf ole, %1281, %1285 : vector<1x128xf32>
    %1287 = arith.andi %1283, %1286 : vector<1x128xi1>
    %1288 = arith.extui %1287 : vector<1x128xi1> to vector<1x128xi32>
    %1289 = arith.sitofp %1288 : vector<1x128xi32> to vector<1x128xf32>
    %cst_305 = arith.constant 1.000000e+00 : f32
    %1290 = arith.subf %3, %cst_305 : f32
    %cst_306 = arith.constant 0.000000e+00 : f32
    %1291 = vector.broadcast %cst_306 : f32 to vector<1x128xf32>
    %1292 = arith.maximumf %1291, %1281 : vector<1x128xf32>
    %1293 = vector.broadcast %1290 : f32 to vector<1x128xf32>
    %1294 = arith.minimumf %1293, %1292 : vector<1x128xf32>
    %1295 = vector.broadcast %7 : f32 to vector<1x128xf32>
    %1296 = arith.addf %1294, %1295 : vector<1x128xf32>
    %1297 = vector.broadcast %1296 : vector<1x128xf32> to vector<16x128xf32>
    %1298 = arith.cmpf oeq, %277, %1297 : vector<16x128xf32>
    %1299 = arith.extui %1298 : vector<16x128xi1> to vector<16x128xi32>
    %1300 = arith.sitofp %1299 : vector<16x128xi32> to vector<16x128xf32>
    %1301 = arith.mulf %1198, %1289 : vector<1x128xf32>
    %1302 = vector.broadcast %1301 : vector<1x128xf32> to vector<16x128xf32>
    %1303 = arith.mulf %1300, %1302 : vector<16x128xf32>
    %1304 = arith.addf %1279, %1303 : vector<16x128xf32>
    %cst_307 = arith.constant dense<0.000000e+00> : vector<64x128xf32>
    %1305 = tpu.matmul %273, %1251, %cst_307 {dimension_numbers = #tpu.dot_dimension_numbers<[1], [0], [0], [1], [0, 0, 1, 1], [], []>} : vector<64x16xf32>, vector<16x128xf32>, vector<64x128xf32> -> vector<64x128xf32>
    %1306 = vector.extract_strided_slice %1305 {offsets = [0, 0], sizes = [16, 128], strides = [1, 1]} : vector<64x128xf32> to vector<16x128xf32>
    %1307 = arith.mulf %1304, %1306 : vector<16x128xf32>
    %cst_308 = arith.constant dense<0.000000e+00> : vector<128xf32>
    %1308 = vector.multi_reduction <add>, %1307, %cst_308 [0] : vector<16x128xf32> to vector<128xf32>
    %1309 = vector.shape_cast %1308 : vector<128xf32> to vector<1x128xf32>
    %c7_309 = arith.constant 7 : index
    %c0_310 = arith.constant 0 : index
    %1310 = vector.load %arg7[%c7_309, %c0_310] : memref<32x128xf32, #tpu.memory_space<vmem>>, vector<1x128xf32>
    tpu.vector_store %arg7[%c7_309, %c0_310], %1309 {strides = array<i32>} : memref<32x128xf32, #tpu.memory_space<vmem>>, vector<1x128xf32>,
    %1311 = vector.extract_strided_slice %1305 {offsets = [16, 0], sizes = [16, 128], strides = [1, 1]} : vector<64x128xf32> to vector<16x128xf32>
    %1312 = arith.mulf %1304, %1311 : vector<16x128xf32>
    %cst_311 = arith.constant dense<0.000000e+00> : vector<128xf32>
    %1313 = vector.multi_reduction <add>, %1312, %cst_311 [0] : vector<16x128xf32> to vector<128xf32>
    %1314 = vector.shape_cast %1313 : vector<128xf32> to vector<1x128xf32>
    %c15_312 = arith.constant 15 : index
    %c0_313 = arith.constant 0 : index
    %1315 = vector.load %arg7[%c15_312, %c0_313] : memref<32x128xf32, #tpu.memory_space<vmem>>, vector<1x128xf32>
    tpu.vector_store %arg7[%c15_312, %c0_313], %1314 {strides = array<i32>} : memref<32x128xf32, #tpu.memory_space<vmem>>, vector<1x128xf32>,
    %1316 = vector.extract_strided_slice %1305 {offsets = [32, 0], sizes = [16, 128], strides = [1, 1]} : vector<64x128xf32> to vector<16x128xf32>
    %1317 = arith.mulf %1304, %1316 : vector<16x128xf32>
    %cst_314 = arith.constant dense<0.000000e+00> : vector<128xf32>
    %1318 = vector.multi_reduction <add>, %1317, %cst_314 [0] : vector<16x128xf32> to vector<128xf32>
    %1319 = vector.shape_cast %1318 : vector<128xf32> to vector<1x128xf32>
    %c23_315 = arith.constant 23 : index
    %c0_316 = arith.constant 0 : index
    %1320 = vector.load %arg7[%c23_315, %c0_316] : memref<32x128xf32, #tpu.memory_space<vmem>>, vector<1x128xf32>
    tpu.vector_store %arg7[%c23_315, %c0_316], %1319 {strides = array<i32>} : memref<32x128xf32, #tpu.memory_space<vmem>>, vector<1x128xf32>,
    %1321 = vector.extract_strided_slice %1305 {offsets = [48, 0], sizes = [16, 128], strides = [1, 1]} : vector<64x128xf32> to vector<16x128xf32>
    %1322 = arith.mulf %1304, %1321 : vector<16x128xf32>
    %cst_317 = arith.constant dense<0.000000e+00> : vector<128xf32>
    %1323 = vector.multi_reduction <add>, %1322, %cst_317 [0] : vector<16x128xf32> to vector<128xf32>
    %1324 = vector.shape_cast %1323 : vector<128xf32> to vector<1x128xf32>
    %c31_318 = arith.constant 31 : index
    %c0_319 = arith.constant 0 : index
    %1325 = vector.load %arg7[%c31_318, %c0_319] : memref<32x128xf32, #tpu.memory_space<vmem>>, vector<1x128xf32>
    tpu.vector_store %arg7[%c31_318, %c0_319], %1324 {strides = array<i32>} : memref<32x128xf32, #tpu.memory_space<vmem>>, vector<1x128xf32>,
    %c0_320 = arith.constant 0 : index
    %c0_321 = arith.constant 0 : index
    %c0_322 = arith.constant 0 : index
    %1326 = vector.load %arg4[%c0_320, %c0_321, %c0_322] : memref<1x8x8xf32, #tpu.memory_space<vmem>>, vector<1x8x8xf32>
    %1327 = vector.shape_cast %1326 : vector<1x8x8xf32> to vector<8x8xf32>
    %c0_323 = arith.constant 0 : index
    %c0_324 = arith.constant 0 : index
    %c0_325 = arith.constant 0 : index
    %1328 = vector.load %arg5[%c0_323, %c0_324, %c0_325] : memref<1x128x128xf32, #tpu.memory_space<vmem>>, vector<1x128x128xf32>
    %1329 = vector.shape_cast %1328 : vector<1x128x128xf32> to vector<128x128xf32>
    %c0_326 = arith.constant 0 : index
    %c0_327 = arith.constant 0 : index
    %1330 = vector.load %arg7[%c0_326, %c0_327] : memref<32x128xf32, #tpu.memory_space<vmem>>, vector<32x128xf32>
    %cst_328 = arith.constant dense<0.000000e+00> : vector<32x128xf32>
    %1331 = tpu.matmul %1330, %1329, %cst_328 {dimension_numbers = #tpu.dot_dimension_numbers<[1], [0], [0], [1], [0, 0, 1, 1], [], []>} : vector<32x128xf32>, vector<128x128xf32>, vector<32x128xf32> -> vector<32x128xf32>
    %1332 = vector.extract_strided_slice %1331 {offsets = [0, 0], sizes = [8, 128], strides = [1, 1]} : vector<32x128xf32> to vector<8x128xf32>
    %cst_329 = arith.constant dense<0.000000e+00> : vector<8x128xf32>
    %1333 = tpu.matmul %1327, %1332, %cst_329 {dimension_numbers = #tpu.dot_dimension_numbers<[1], [0], [0], [1], [0, 0, 1, 1], [], []>} : vector<8x8xf32>, vector<8x128xf32>, vector<8x128xf32> -> vector<8x128xf32>
    %c0_330 = arith.constant 0 : index
    %c0_331 = arith.constant 0 : index
    %c0_332 = arith.constant 0 : index
    %c0_333 = arith.constant 0 : index
    %1334 = vector.load %arg6[%c0_330, %c0_331, %c0_332, %c0_333] : memref<1x4x8x128xf32, #tpu.memory_space<vmem>>, vector<1x1x8x128xf32>
    %1335 = vector.shape_cast %1334 : vector<1x1x8x128xf32> to vector<8x128xf32>
    %1336 = vector.shape_cast %1333 : vector<8x128xf32> to vector<1x1x8x128xf32>
    tpu.vector_store %arg6[%c0_330, %c0_331, %c0_332, %c0_333], %1336 {strides = array<i32>} : memref<1x4x8x128xf32, #tpu.memory_space<vmem>>, vector<1x1x8x128xf32>,
    %1337 = vector.extract_strided_slice %1331 {offsets = [8, 0], sizes = [8, 128], strides = [1, 1]} : vector<32x128xf32> to vector<8x128xf32>
    %cst_334 = arith.constant dense<0.000000e+00> : vector<8x128xf32>
    %1338 = tpu.matmul %1327, %1337, %cst_334 {dimension_numbers = #tpu.dot_dimension_numbers<[1], [0], [0], [1], [0, 0, 1, 1], [], []>} : vector<8x8xf32>, vector<8x128xf32>, vector<8x128xf32> -> vector<8x128xf32>
    %c0_335 = arith.constant 0 : index
    %c1_336 = arith.constant 1 : index
    %c0_337 = arith.constant 0 : index
    %c0_338 = arith.constant 0 : index
    %1339 = vector.load %arg6[%c0_335, %c1_336, %c0_337, %c0_338] : memref<1x4x8x128xf32, #tpu.memory_space<vmem>>, vector<1x1x8x128xf32>
    %1340 = vector.shape_cast %1339 : vector<1x1x8x128xf32> to vector<8x128xf32>
    %1341 = vector.shape_cast %1338 : vector<8x128xf32> to vector<1x1x8x128xf32>
    tpu.vector_store %arg6[%c0_335, %c1_336, %c0_337, %c0_338], %1341 {strides = array<i32>} : memref<1x4x8x128xf32, #tpu.memory_space<vmem>>, vector<1x1x8x128xf32>,
    %1342 = vector.extract_strided_slice %1331 {offsets = [16, 0], sizes = [8, 128], strides = [1, 1]} : vector<32x128xf32> to vector<8x128xf32>
    %cst_339 = arith.constant dense<0.000000e+00> : vector<8x128xf32>
    %1343 = tpu.matmul %1327, %1342, %cst_339 {dimension_numbers = #tpu.dot_dimension_numbers<[1], [0], [0], [1], [0, 0, 1, 1], [], []>} : vector<8x8xf32>, vector<8x128xf32>, vector<8x128xf32> -> vector<8x128xf32>
    %c0_340 = arith.constant 0 : index
    %c2_341 = arith.constant 2 : index
    %c0_342 = arith.constant 0 : index
    %c0_343 = arith.constant 0 : index
    %1344 = vector.load %arg6[%c0_340, %c2_341, %c0_342, %c0_343] : memref<1x4x8x128xf32, #tpu.memory_space<vmem>>, vector<1x1x8x128xf32>
    %1345 = vector.shape_cast %1344 : vector<1x1x8x128xf32> to vector<8x128xf32>
    %1346 = vector.shape_cast %1343 : vector<8x128xf32> to vector<1x1x8x128xf32>
    tpu.vector_store %arg6[%c0_340, %c2_341, %c0_342, %c0_343], %1346 {strides = array<i32>} : memref<1x4x8x128xf32, #tpu.memory_space<vmem>>, vector<1x1x8x128xf32>,
    %1347 = vector.extract_strided_slice %1331 {offsets = [24, 0], sizes = [8, 128], strides = [1, 1]} : vector<32x128xf32> to vector<8x128xf32>
    %cst_344 = arith.constant dense<0.000000e+00> : vector<8x128xf32>
    %1348 = tpu.matmul %1327, %1347, %cst_344 {dimension_numbers = #tpu.dot_dimension_numbers<[1], [0], [0], [1], [0, 0, 1, 1], [], []>} : vector<8x8xf32>, vector<8x128xf32>, vector<8x128xf32> -> vector<8x128xf32>
    %c0_345 = arith.constant 0 : index
    %c3_346 = arith.constant 3 : index
    %c0_347 = arith.constant 0 : index
    %c0_348 = arith.constant 0 : index
    %1349 = vector.load %arg6[%c0_345, %c3_346, %c0_347, %c0_348] : memref<1x4x8x128xf32, #tpu.memory_space<vmem>>, vector<1x1x8x128xf32>
    %1350 = vector.shape_cast %1349 : vector<1x1x8x128xf32> to vector<8x128xf32>
    %1351 = vector.shape_cast %1348 : vector<8x128xf32> to vector<1x1x8x128xf32>
    tpu.vector_store %arg6[%c0_345, %c3_346, %c0_347, %c0_348], %1351 {strides = array<i32>} : memref<1x4x8x128xf32, #tpu.memory_space<vmem>>, vector<1x1x8x128xf32>,
    return
  }
  func.func @transform_0(%arg0: i32, %arg1: memref<2xi32, #tpu.memory_space<smem>>) -> (i32, i32) {
    %c0_i32 = arith.constant 0 : i32
    %c0_i32_0 = arith.constant 0 : i32
    %c0_i32_1 = arith.constant 0 : i32
    return %c0_i32, %c0_i32_0 : i32, i32
  }
  func.func @transform_1(%arg0: i32, %arg1: memref<2xi32, #tpu.memory_space<smem>>) -> (i32, i32, i32) {
    %0 = arith.index_cast %arg0 : i32 to index
    %1 = memref.load %arg1[%0] : memref<2xi32, #tpu.memory_space<smem>>
    %c0_i32 = arith.constant 0 : i32
    %c0_i32_0 = arith.constant 0 : i32
    %c0_i32_1 = arith.constant 0 : i32
    return %1, %c0_i32, %c0_i32_0 : i32, i32, i32
  }
  func.func @transform_2(%arg0: i32, %arg1: memref<2xi32, #tpu.memory_space<smem>>) -> (i32, i32, i32) {
    %c0_i32 = arith.constant 0 : i32
    %c0_i32_0 = arith.constant 0 : i32
    %c0_i32_1 = arith.constant 0 : i32
    return %arg0, %c0_i32, %c0_i32_0 : i32, i32, i32
  }
  func.func @transform_3(%arg0: i32, %arg1: memref<2xi32, #tpu.memory_space<smem>>) -> (i32, i32, i32) {
    %c0_i32 = arith.constant 0 : i32
    %c0_i32_0 = arith.constant 0 : i32
    %c0_i32_1 = arith.constant 0 : i32
    return %arg0, %c0_i32, %c0_i32_0 : i32, i32, i32
  }
  func.func @transform_4(%arg0: i32, %arg1: memref<2xi32, #tpu.memory_space<smem>>) -> (i32, i32, i32, i32) {
    %c0_i32 = arith.constant 0 : i32
    %c0_i32_0 = arith.constant 0 : i32
    %c0_i32_1 = arith.constant 0 : i32
    %c0_i32_2 = arith.constant 0 : i32
    return %arg0, %c0_i32, %c0_i32_0, %c0_i32_1 : i32, i32, i32, i32
  }
}

</mosaic_0001>

<llo_original>
// kernel: tpu_custom_call.1
$region0: #{tpu_custom_call.1}
  #allocation0 [shape = 'u32[]', space=smem, size = 0x4, offset = 0x4, fixed_abs, tag = 'smem constant byte address 0x4 - core index']
  #allocation1 [shape = 'u32[72,128]{1,0:T(1,128)}', space=vmem, size = 0x9000, scoped, tag = 'internal scratch']
  #allocation2 [shape = 'f32[32,128]{1,0:T(8,128)}', space=vmem, size = 0x4000, scoped, tag = 'scratch operand']
  #allocation3 [shape = 's32[1]{0}', space=sflag, size = 0x4, scoped, tag = 'scoped memory for tpu_custom_call.1']
  #allocation4 [shape = 'u8[512]{0}', space=smem, size = 0x200, scoped, tag = 'prefetched SMEM operand 0']
  %s0 = inlined_call_operand.vmem [shape: s32[2], index: 0, kind: input, shape index: {}]
  %s1 = inlined_call_operand.vmem [shape: f32[2,43], index: 1, kind: input, shape index: {}]
  %s2 = inlined_call_operand.vmem [shape: f32[2,64,16], index: 2, kind: input, shape index: {}]
  %s3 = inlined_call_operand.vmem [shape: f32[2,8,8], index: 3, kind: input, shape index: {}]
  %s4 = inlined_call_operand.hbm [shape: f32[2,128,128], index: 4, kind: input, shape index: {}]
  %s5 = inlined_call_operand.hbm [shape: f32[2,4,8,128], index: 5, kind: output, shape index: {}]
  %s6 = sld [smem:[#allocation0]]
  $region57: #{tpu_custom_call.1} parent=0
    _
  %s8 = ssub.s32 1, %s6
  %s9 = scalar_select 0, %s8, %s6
  %s11 = sshll.u32 %s0, 4
  %s12 = int_to_ptr.vmem [resolvable:$true] %s11
  %14 = dma.vmem_to_smem %s12, 16, [#allocation4], [#allocation3]
  %16 = dma.done [#allocation3], 16
  %17 = sfence
  $region1: #{tpu_custom_call.1} parent=0
    #allocation5 [shape = 'u8[1024]{0}', space=smem, size = 0x400, scoped, tag = 'input window, operand 1, single buffered']
    #allocation6 [shape = 's32[2]{0}', space=sflag, size = 0x8, scoped, tag = 'scoped memory for tpu_custom_call.1']
    #allocation7 [shape = 's32[2]{0}', space=sflag, size = 0x8, scoped, tag = 'scoped memory for tpu_custom_call.1']
    #allocation8 [shape = 's32[2]{0}', space=sflag, size = 0x8, scoped, tag = 'scoped memory for tpu_custom_call.1']
    #allocation9 [shape = 'u8[131072]{0}', space=vmem, size = 0x20000, scoped, tag = 'input window, operand 4']
    #allocation10 [shape = 'u8[32768]{0}', space=vmem, size = 0x8000, scoped, tag = 'output window, operand 0']
    %18 = vsyncpa [#allocation8], 0
    %19 = vsyncpa [#allocation6], 0
    %s20 = scalar_lea.sflag [#allocation6], 1
    %21 = vsyncpa %s20, 0
    %22 = vsyncpa [#allocation7], 0
    %s23 = scalar_lea.sflag [#allocation7], 1
    %24 = vsyncpa %s23, 0
    loop: start=0, step=1, limit=4
    $region2: #{tpu_custom_call.1} parent=1 // loop_pre_header
      _
    $region3: #{tpu_custom_call.1} parent=1 // loop_header
      %s26 = sphi 0, %s30
      %p27 = scmp.ge.s32.totalorder %s26, 4
      %s34 = sphi 0, %s34
      %s36 = sphi 0, %s34
      %s37 = sphi 0, %s36
      %s51 = sphi 0, %s37
      %s59 = sphi 0, %s61
      %s62 = sphi 0, %s59
      %s63 = sphi 0, %s62
      %s79 = sphi 0, %s63
      %s85 = sphi 0, %s87
      %s88 = sphi 0, %s85
      %s89 = sphi 0, %s88
      %s105 = sphi 0, %s89
      %s111 = sphi 0, %s113
      %s114 = sphi 0, %s111
      %s115 = sphi 0, %s114
      %s131 = sphi 0, %s115
      %s137 = sphi 0, %s139
      %s140 = sphi 0, %s137
      %s141 = sphi 0, %s140
      %s157 = sphi 0, %s141
    $region4: #{tpu_custom_call.1} parent=1 // loop_header_branch
      %29 = sbr.rel (%p27) target = $region8
    $region5: #{tpu_custom_call.1} parent=1 // loop_body
      %s31 = ssub.s32 %s26, 1
      %s32 = ssub.s32 %s26, 2
      %s33 = sadd.s32 %s26, 1
      %s35 = sadd.s32 %s34, 1
      %p38 = scmp.eq.s32.totalorder %s26, 1
      %p39 = scmp.ne.s32.totalorder %s34, %s36
      %p40 = scmp.eq.s32.totalorder %s26, 0
      %p41 = por %p39, %p40
      %p42 = scmp.ne.s32.totalorder %s34, %s36
      %p43 = scmp.eq.s32.totalorder %s31, 1
      %p44 = por %p42, %p43
      %p45 = scmp.ne.s32.totalorder %s36, %s37
      %p46 = scmp.eq.s32.totalorder %s31, 0
      %p47 = por %p45, %p46
      %p48 = scmp.ne.s32.totalorder %s36, %s37
      %p49 = scmp.eq.s32.totalorder %s32, 1
      %p50 = por %p48, %p49
      %p52 = scmp.ne.s32.totalorder %s37, %s51
      %p53 = scmp.eq.s32.totalorder %s32, 0
      %p54 = por %p52, %p53
      %s55 = sld [smem:[#allocation4 + %s26]]
      %s56 = sld [smem:[#allocation4 + %s33]]
      %s57 = ssub.s32 %s55, %s56
      %p58 = scmp.eq.s32.totalorder %s57, 0
      %s60 = sadd.s32 %s59, 1
      %s61 = scalar_select %p58, %s59, %s60
      %p64 = pneg %p58
      %p65 = scmp.eq.s32.totalorder %s26, 1
      %p66 = por %p64, %p65
      %p67 = scmp.ne.s32.totalorder %s59, %s62
      %p68 = scmp.eq.s32.totalorder %s26, 0
      %p69 = por %p67, %p68
      %p70 = scmp.ne.s32.totalorder %s59, %s62
      %p71 = scmp.eq.s32.totalorder %s31, 1
      %p72 = por %p70, %p71
      %p73 = scmp.ne.s32.totalorder %s62, %s63
      %p74 = scmp.eq.s32.totalorder %s31, 0
      %p75 = por %p73, %p74
      %p76 = scmp.ne.s32.totalorder %s62, %s63
      %p77 = scmp.eq.s32.totalorder %s32, 1
      %p78 = por %p76, %p77
      %p80 = scmp.ne.s32.totalorder %s63, %s79
      %p81 = scmp.eq.s32.totalorder %s32, 0
      %p82 = por %p80, %p81
      %s83 = ssub.s32 %s26, %s33
      %p84 = scmp.eq.s32.totalorder %s83, 0
      %s86 = sadd.s32 %s85, 1
      %s87 = scalar_select %p84, %s85, %s86
      %p90 = pneg %p84
      %p91 = scmp.eq.s32.totalorder %s26, 1
      %p92 = por %p90, %p91
      %p93 = scmp.ne.s32.totalorder %s85, %s88
      %p94 = scmp.eq.s32.totalorder %s26, 0
      %p95 = por %p93, %p94
      %p96 = scmp.ne.s32.totalorder %s85, %s88
      %p97 = scmp.eq.s32.totalorder %s31, 1
      %p98 = por %p96, %p97
      %p99 = scmp.ne.s32.totalorder %s88, %s89
      %p100 = scmp.eq.s32.totalorder %s31, 0
      %p101 = por %p99, %p100
      %p102 = scmp.ne.s32.totalorder %s88, %s89
      %p103 = scmp.eq.s32.totalorder %s32, 1
      %p104 = por %p102, %p103
      %p106 = scmp.ne.s32.totalorder %s89, %s105
      %p107 = scmp.eq.s32.totalorder %s32, 0
      %p108 = por %p106, %p107
      %s109 = ssub.s32 %s26, %s33
      %p110 = scmp.eq.s32.totalorder %s109, 0
      %s112 = sadd.s32 %s111, 1
      %s113 = scalar_select %p110, %s111, %s112
      %p116 = pneg %p110
      %p117 = scmp.eq.s32.totalorder %s26, 1
      %p118 = por %p116, %p117
      %p119 = scmp.ne.s32.totalorder %s111, %s114
      %p120 = scmp.eq.s32.totalorder %s26, 0
      %p121 = por %p119, %p120
      %p122 = scmp.ne.s32.totalorder %s111, %s114
      %p123 = scmp.eq.s32.totalorder %s31, 1
      %p124 = por %p122, %p123
      %p125 = scmp.ne.s32.totalorder %s114, %s115
      %p126 = scmp.eq.s32.totalorder %s31, 0
      %p127 = por %p125, %p126
      %p128 = scmp.ne.s32.totalorder %s114, %s115
      %p129 = scmp.eq.s32.totalorder %s32, 1
      %p130 = por %p128, %p129
      %p132 = scmp.ne.s32.totalorder %s115, %s131
      %p133 = scmp.eq.s32.totalorder %s32, 0
      %p134 = por %p132, %p133
      %s135 = ssub.s32 %s26, %s33
      %p136 = scmp.eq.s32.totalorder %s135, 0
      %s138 = sadd.s32 %s137, 1
      %s139 = scalar_select %p136, %s137, %s138
      %p142 = pneg %p136
      %p143 = scmp.eq.s32.totalorder %s26, 1
      %p144 = por %p142, %p143
      %p145 = scmp.ne.s32.totalorder %s137, %s140
      %p146 = scmp.eq.s32.totalorder %s26, 0
      %p147 = por %p145, %p146
      %p148 = scmp.ne.s32.totalorder %s137, %s140
      %p149 = scmp.eq.s32.totalorder %s31, 1
      %p150 = por %p148, %p149
      %p151 = scmp.ne.s32.totalorder %s140, %s141
      %p152 = scmp.eq.s32.totalorder %s31, 0
      %p153 = por %p151, %p152
      %p154 = scmp.ne.s32.totalorder %s140, %s141
      %p155 = scmp.eq.s32.totalorder %s32, 1
      %p156 = por %p154, %p155
      %p158 = scmp.ne.s32.totalorder %s141, %s157
      %p159 = scmp.eq.s32.totalorder %s32, 0
      %p160 = por %p158, %p159
      %p161 = scmp.le.s32.totalorder 1, %s26
      %p162 = scmp.lt.s32.totalorder %s26, 3
      %p163 = pnand %p161, %p162
      %p164 = pneg %p163
      // Predicated region
      $region9: #{tpu_custom_call.1} parent=5 // pred_check
        _
      $region10: #{tpu_custom_call.1} parent=5 // pred_check_branch
        %166 = sbr.rel (%p163) target = $region12
      $region11: #{tpu_custom_call.1} parent=5 // pred_region
        %s167 = ssub.s32 %s26, 1
        // Predicated region
        $region13: #{tpu_custom_call.1} parent=11 // pred_check
          %p168 = pneg %p47
        $region14: #{tpu_custom_call.1} parent=11 // pred_check_branch
          %170 = sbr.rel (%p168) target = $region16
        $region15: #{tpu_custom_call.1} parent=11 // pred_region
          %172 = vsyncadd [#allocation8], 0
          %s174 = sshll.u32 %s1, 4
          %s175 = int_to_ptr.vmem [resolvable:$true] %s174
          %177 = dma.vmem_to_smem %s175, 32, [#allocation5], [#allocation8]
        $region16: #{tpu_custom_call.1} parent=11 // pred_fallthru
          _
      $region12: #{tpu_custom_call.1} parent=5 // pred_fallthru
        _
      %p178 = scmp.lt.s32.totalorder %s26, 2
      // Predicated region
      $region17: #{tpu_custom_call.1} parent=5 // pred_check
        %p179 = pneg %p178
      $region18: #{tpu_custom_call.1} parent=5 // pred_check_branch
        %181 = sbr.rel (%p179) target = $region20
      $region19: #{tpu_custom_call.1} parent=5 // pred_region
        // Predicated region
        $region21: #{tpu_custom_call.1} parent=19 // pred_check
          %p182 = pneg %p69
        $region22: #{tpu_custom_call.1} parent=19 // pred_check_branch
          %184 = sbr.rel (%p182) target = $region24
        $region23: #{tpu_custom_call.1} parent=19 // pred_region
          %s185 = sld [smem:[#allocation4 + %s26]]
          %p186 = scmp.lt.s32.totalorder %s185, 1
          %s187 = scalar_select %p186, %s185, 1
          %s188 = smul.addr %s187, 8
          %s189 = smul.addr %s188, 8
          %s190 = scalar_lea.vmem %s2, %s189
          %s191 = sld [smem:[#allocation4 + %s26]]
        $region24: #{tpu_custom_call.1} parent=19 // pred_fallthru
          _
        // Predicated region
        $region25: #{tpu_custom_call.1} parent=19 // pred_check
          %p192 = pneg %p95
        $region26: #{tpu_custom_call.1} parent=19 // pred_check_branch
          %194 = sbr.rel (%p192) target = $region28
        $region27: #{tpu_custom_call.1} parent=19 // pred_region
          %p195 = scmp.lt.s32.totalorder %s26, 1
          %s196 = scalar_select %p195, %s26, 1
          %s197 = smul.addr %s196, 8
          %s198 = scalar_lea.vmem %s3, %s197
        $region28: #{tpu_custom_call.1} parent=19 // pred_fallthru
          _
        // Predicated region
        $region29: #{tpu_custom_call.1} parent=19 // pred_check
          %p199 = pneg %p121
        $region30: #{tpu_custom_call.1} parent=19 // pred_check_branch
          %201 = sbr.rel (%p199) target = $region32
        $region31: #{tpu_custom_call.1} parent=19 // pred_region
          %s202 = sand.u32 %s111, 1
          %s203 = scalar_lea.sflag [#allocation6], %s202
          %s204 = sand.u32 %s111, 1
          %s205 = smul.addr %s204, 128
          %s206 = scalar_lea.vmem [#allocation9], %s205
          %208 = vsyncadd %s203, 0
          %s209 = smul.addr %s26, 16
          %s210 = smul.addr %s209, 8
          %s211 = scalar_lea.hbm %s4, %s210
          %s212 = sshll.u32 %s211, 4
          %s213 = int_to_ptr.hbm [resolvable:$true] %s212
          %s214 = sshll.u32 %s206, 4
          %s215 = int_to_ptr.vmem [resolvable:$true] %s214
          %220 = dma.hbm_to_vmem [thread:$0]  %s213, 2048, %s215, %s203, 128, 128, 8
        $region32: #{tpu_custom_call.1} parent=19 // pred_fallthru
          _
      $region20: #{tpu_custom_call.1} parent=5 // pred_fallthru
        _
      %p221 = scmp.le.s32.totalorder 1, %s26
      %p222 = scmp.lt.s32.totalorder %s26, 3
      %p223 = pnand %p221, %p222
      %p224 = pneg %p223
      // Predicated region
      $region33: #{tpu_custom_call.1} parent=5 // pred_check
        _
      $region34: #{tpu_custom_call.1} parent=5 // pred_check_branch
        %226 = sbr.rel (%p223) target = $region36
      $region35: #{tpu_custom_call.1} parent=5 // pred_region
        %s227 = ssub.s32 %s26, 1
        // Predicated region
        $region37: #{tpu_custom_call.1} parent=35 // pred_check
          %p228 = pneg %p47
        $region38: #{tpu_custom_call.1} parent=35 // pred_check_branch
          %230 = sbr.rel (%p228) target = $region40
        $region39: #{tpu_custom_call.1} parent=35 // pred_region
          %232 = dma.done [#allocation8], 32
        $region40: #{tpu_custom_call.1} parent=35 // pred_fallthru
          _
        %s233 = sand.u32 %s114, 1
        %s234 = scalar_lea.sflag [#allocation6], %s233
        %s235 = sand.u32 %s114, 1
        %s236 = smul.addr %s235, 128
        %s237 = scalar_lea.vmem [#allocation9], %s236
        // Predicated region
        $region41: #{tpu_custom_call.1} parent=35 // pred_check
          %p238 = pneg %p127
        $region42: #{tpu_custom_call.1} parent=35 // pred_check_branch
          %240 = sbr.rel (%p238) target = $region44
        $region43: #{tpu_custom_call.1} parent=35 // pred_region
          %242 = dma.done %s234, 2048
        $region44: #{tpu_custom_call.1} parent=35 // pred_fallthru
          _
        %243 = sfence
        %p244 = pneg %p47
        %p245 = pneg %p44
        %s246 = sld [smem:[#allocation4 + %s31]]
        %p247 = scmp.lt.s32.totalorder %s246, 1
        %s248 = scalar_select %p247, %s246, 1
        %s249 = smul.addr %s248, 8
        %s250 = smul.addr %s249, 8
        %s251 = scalar_lea.vmem %s2, %s250
        %p252 = pneg %p75
        %p253 = pneg %p72
        %p254 = scmp.lt.s32.totalorder %s31, 1
        %s255 = scalar_select %p254, %s31, 1
        %s256 = smul.addr %s255, 8
        %s257 = scalar_lea.vmem %s3, %s256
        %p258 = pneg %p101
        %p259 = pneg %p98
        %s260 = sand.u32 %s114, 1
        %s261 = scalar_lea.sflag [#allocation6], %s260
        %s262 = sand.u32 %s114, 1
        %s263 = smul.addr %s262, 128
        %s264 = scalar_lea.vmem [#allocation9], %s263
        %p265 = pneg %p127
        %p266 = pneg %p124
        %p267 = pneg %p153
        %p268 = pneg %p150
        %s269 = sand.u32 %s140, 1
        %s270 = scalar_lea.sflag [#allocation7], %s269
        %s271 = sand.u32 %s140, 1
        %s272 = smul.addr %s271, 32
        %s273 = scalar_lea.vmem [#allocation10], %s272
        %s274 = sld [smem:[#allocation4 + %s31]]
        %p275 = scmp.lt.s32.totalorder %s274, 1
        %s276 = scalar_select %p275, %s274, 1
        %s277 = smul.addr %s276, 8
        %s278 = smul.addr %s277, 8
        %s279 = scalar_lea.vmem %s2, %s278
        %s280 = sld [smem:[#allocation4 + %s31]]
        %p281 = scmp.lt.s32.totalorder %s31, 1
        %s282 = scalar_select %p281, %s31, 1
        %s283 = smul.addr %s282, 8
        %s284 = scalar_lea.vmem %s3, %s283
        %s285 = smul.u32 %s31, 128
        %s286 = sld [smem:[#allocation5 + %s285]]
        %s287 = sadd.s32 %s285, 1
        %s288 = sld [smem:[#allocation5 + %s287]]
        %s289 = sadd.s32 %s285, 2
        %s290 = sld [smem:[#allocation5 + %s289]]
        %s291 = sadd.s32 %s285, 3
        %s292 = sld [smem:[#allocation5 + %s291]]
        %s293 = sadd.s32 %s285, 4
        %s294 = sld [smem:[#allocation5 + %s293]]
        %v295 = vlaneseq
        %v296 = vshrl.u32 %v295, 7
        %v297 = vcvt.s32.f32 %v296
        %v298 = vlaneseq
        %v299 = vand.u32 %v298, 127
        %v300 = vcvt.s32.f32 %v299
        %s301 = ssub.f32 %s286, 1.0
        %s302 = smax.f32 %s301, 1.0
        %v303 = vstv %s302
        %v304 = vrcp.pop %v303
        %v305 = vmul.f32 %v303, %v304
        %v306 = vsub.f32 1.0, %v305
        %v307 = vmul.f32 %v304, %v306
        %v308 = vadd.f32 %v304, %v307
        %vm309 = vweird.f32 %v303
        %vm310 = vweird.f32 %v304
        %vm311 = vmor %vm309, %vm310
        %v312 = vsel %vm311, %v304, %v308
        %v313 = vand.u32 2147483647, %v303
        %vm314 = vcmp.eq.f32.partialorder %v313, 8.507059e+37
        %v315 = vand.u32 %v303, 2147483648
        %v316 = vor.u32 1.1754944e-38, %v315
        %v317 = vsel %vm314, %v316, %v312
        %s318 = vtos %v317
        %s319 = smul.f32 2.0, %s318
        %v320 = vstv %s319
        %v321 = vmul.f32 %v300, %v320
        %v322 = vsub.f32 %v321, 1.0
        %s323 = ssub.f32 %s288, 1.0
        %s324 = smax.f32 %s323, 1.0
        %v325 = vstv %s324
        %v326 = vrcp.pop %v325
        %v327 = vmul.f32 %v325, %v326
        %v328 = vsub.f32 1.0, %v327
        %v329 = vmul.f32 %v326, %v328
        %v330 = vadd.f32 %v326, %v329
        %vm331 = vweird.f32 %v325
        %vm332 = vweird.f32 %v326
        %vm333 = vmor %vm331, %vm332
        %v334 = vsel %vm333, %v326, %v330
        %v335 = vand.u32 2147483647, %v325
        %vm336 = vcmp.eq.f32.partialorder %v335, 8.507059e+37
        %v337 = vand.u32 %v325, 2147483648
        %v338 = vor.u32 1.1754944e-38, %v337
        %v339 = vsel %vm336, %v338, %v334
        %s340 = vtos %v339
        %s341 = smul.f32 2.0, %s340
        %v342 = vstv %s341
        %v343 = vmul.f32 %v297, %v342
        %v344 = vsub.f32 %v343, 1.0
        %s345 = sadd.s32 %s285, 5
        %s346 = sld [smem:[#allocation5 + %s345]]
        %s347 = sadd.s32 %s285, 6
        %s348 = sld [smem:[#allocation5 + %s347]]
        %v349 = vstv %s348
        %v350 = vmul.f32 %v322, %v349
        %v351 = vstv %s346
        %v352 = vadd.f32 %v351, %v350
        %s353 = sadd.s32 %s285, 7
        %s354 = sld [smem:[#allocation5 + %s353]]
        %v355 = vstv %s354
        %v356 = vmul.f32 %v344, %v355
        %v357 = vadd.f32 %v352, %v356
        %s358 = sadd.s32 %s285, 8
        %s359 = sld [smem:[#allocation5 + %s358]]
        %s360 = sadd.s32 %s285, 9
        %s361 = sld [smem:[#allocation5 + %s360]]
        %v362 = vstv %s361
        %v363 = vmul.f32 %v322, %v362
        %v364 = vstv %s359
        %v365 = vadd.f32 %v364, %v363
        %s366 = sadd.s32 %s285, 10
        %s367 = sld [smem:[#allocation5 + %s366]]
        %v368 = vstv %s367
        %v369 = vmul.f32 %v344, %v368
        %v370 = vadd.f32 %v365, %v369
        %s371 = sadd.s32 %s285, 11
        %s372 = sld [smem:[#allocation5 + %s371]]
        %s373 = sadd.s32 %s285, 12
        %s374 = sld [smem:[#allocation5 + %s373]]
        %v375 = vstv %s372
        %v376 = vsub.f32 %v322, %v375
        %v377 = vmul.f32 %v376, %v376
        %v378 = vstv %s374
        %v379 = vsub.f32 %v344, %v378
        %v380 = vmul.f32 %v379, %v379
        %v381 = vadd.f32 %v377, %v380
        %v382 = vadd.f32 %v381, 1e-09
        %v383 = vlog2.pop %v382
        %v384 = vmul.f32 %v383, 0.6931472
        %v385 = vmul.f32 %v381, %v384
        %s386 = sadd.s32 %s285, 13
        %s387 = sld [smem:[#allocation5 + %s386]]
        %v388 = vstv %s387
        %v389 = vmul.f32 %v385, %v388
        %v390 = vadd.f32 %v357, %v389
        %s391 = sadd.s32 %s285, 14
        %s392 = sld [smem:[#allocation5 + %s391]]
        %v393 = vstv %s392
        %v394 = vmul.f32 %v385, %v393
        %v395 = vadd.f32 %v370, %v394
        %s396 = sadd.s32 %s285, 15
        %s397 = sld [smem:[#allocation5 + %s396]]
        %s398 = sadd.s32 %s285, 16
        %s399 = sld [smem:[#allocation5 + %s398]]
        %v400 = vstv %s397
        %v401 = vsub.f32 %v322, %v400
        %v402 = vmul.f32 %v401, %v401
        %v403 = vstv %s399
        %v404 = vsub.f32 %v344, %v403
        %v405 = vmul.f32 %v404, %v404
        %v406 = vadd.f32 %v402, %v405
        %v407 = vadd.f32 %v406, 1e-09
        %v408 = vlog2.pop %v407
        %v409 = vmul.f32 %v408, 0.6931472
        %v410 = vmul.f32 %v406, %v409
        %s411 = sadd.s32 %s285, 17
        %s412 = sld [smem:[#allocation5 + %s411]]
        %v413 = vstv %s412
        %v414 = vmul.f32 %v410, %v413
        %v415 = vadd.f32 %v390, %v414
        %s416 = sadd.s32 %s285, 18
        %s417 = sld [smem:[#allocation5 + %s416]]
        %v418 = vstv %s417
        %v419 = vmul.f32 %v410, %v418
        %v420 = vadd.f32 %v395, %v419
        %s421 = sadd.s32 %s285, 19
        %s422 = sld [smem:[#allocation5 + %s421]]
        %s423 = sadd.s32 %s285, 20
        %s424 = sld [smem:[#allocation5 + %s423]]
        %v425 = vstv %s422
        %v426 = vsub.f32 %v322, %v425
        %v427 = vmul.f32 %v426, %v426
        %v428 = vstv %s424
        %v429 = vsub.f32 %v344, %v428
        %v430 = vmul.f32 %v429, %v429
        %v431 = vadd.f32 %v427, %v430
        %v432 = vadd.f32 %v431, 1e-09
        %v433 = vlog2.pop %v432
        %v434 = vmul.f32 %v433, 0.6931472
        %v435 = vmul.f32 %v431, %v434
        %s436 = sadd.s32 %s285, 21
        %s437 = sld [smem:[#allocation5 + %s436]]
        %v438 = vstv %s437
        %v439 = vmul.f32 %v435, %v438
        %v440 = vadd.f32 %v415, %v439
        %s441 = sadd.s32 %s285, 22
        %s442 = sld [smem:[#allocation5 + %s441]]
        %v443 = vstv %s442
        %v444 = vmul.f32 %v435, %v443
        %v445 = vadd.f32 %v420, %v444
        %s446 = sadd.s32 %s285, 23
        %s447 = sld [smem:[#allocation5 + %s446]]
        %s448 = sadd.s32 %s285, 24
        %s449 = sld [smem:[#allocation5 + %s448]]
        %v450 = vstv %s447
        %v451 = vsub.f32 %v322, %v450
        %v452 = vmul.f32 %v451, %v451
        %v453 = vstv %s449
        %v454 = vsub.f32 %v344, %v453
        %v455 = vmul.f32 %v454, %v454
        %v456 = vadd.f32 %v452, %v455
        %v457 = vadd.f32 %v456, 1e-09
        %v458 = vlog2.pop %v457
        %v459 = vmul.f32 %v458, 0.6931472
        %v460 = vmul.f32 %v456, %v459
        %s461 = sadd.s32 %s285, 25
        %s462 = sld [smem:[#allocation5 + %s461]]
        %v463 = vstv %s462
        %v464 = vmul.f32 %v460, %v463
        %v465 = vadd.f32 %v440, %v464
        %s466 = sadd.s32 %s285, 26
        %s467 = sld [smem:[#allocation5 + %s466]]
        %v468 = vstv %s467
        %v469 = vmul.f32 %v460, %v468
        %v470 = vadd.f32 %v445, %v469
        %s471 = sadd.s32 %s285, 27
        %s472 = sld [smem:[#allocation5 + %s471]]
        %s473 = sadd.s32 %s285, 28
        %s474 = sld [smem:[#allocation5 + %s473]]
        %v475 = vstv %s472
        %v476 = vsub.f32 %v322, %v475
        %v477 = vmul.f32 %v476, %v476
        %v478 = vstv %s474
        %v479 = vsub.f32 %v344, %v478
        %v480 = vmul.f32 %v479, %v479
        %v481 = vadd.f32 %v477, %v480
        %v482 = vadd.f32 %v481, 1e-09
        %v483 = vlog2.pop %v482
        %v484 = vmul.f32 %v483, 0.6931472
        %v485 = vmul.f32 %v481, %v484
        %s486 = sadd.s32 %s285, 29
        %s487 = sld [smem:[#allocation5 + %s486]]
        %v488 = vstv %s487
        %v489 = vmul.f32 %v485, %v488
        %v490 = vadd.f32 %v465, %v489
        %s491 = sadd.s32 %s285, 30
        %s492 = sld [smem:[#allocation5 + %s491]]
        %v493 = vstv %s492
        %v494 = vmul.f32 %v485, %v493
        %v495 = vadd.f32 %v470, %v494
        %s496 = sadd.s32 %s285, 31
        %s497 = sld [smem:[#allocation5 + %s496]]
        %s498 = sadd.s32 %s285, 32
        %s499 = sld [smem:[#allocation5 + %s498]]
        %v500 = vstv %s497
        %v501 = vsub.f32 %v322, %v500
        %v502 = vmul.f32 %v501, %v501
        %v503 = vstv %s499
        %v504 = vsub.f32 %v344, %v503
        %v505 = vmul.f32 %v504, %v504
        %v506 = vadd.f32 %v502, %v505
        %v507 = vadd.f32 %v506, 1e-09
        %v508 = vlog2.pop %v507
        %v509 = vmul.f32 %v508, 0.6931472
        %v510 = vmul.f32 %v506, %v509
        %s511 = sadd.s32 %s285, 33
        %s512 = sld [smem:[#allocation5 + %s511]]
        %v513 = vstv %s512
        %v514 = vmul.f32 %v510, %v513
        %v515 = vadd.f32 %v490, %v514
        %s516 = sadd.s32 %s285, 34
        %s517 = sld [smem:[#allocation5 + %s516]]
        %v518 = vstv %s517
        %v519 = vmul.f32 %v510, %v518
        %v520 = vadd.f32 %v495, %v519
        %s521 = sadd.s32 %s285, 35
        %s522 = sld [smem:[#allocation5 + %s521]]
        %s523 = sadd.s32 %s285, 36
        %s524 = sld [smem:[#allocation5 + %s523]]
        %v525 = vstv %s522
        %v526 = vsub.f32 %v322, %v525
        %v527 = vmul.f32 %v526, %v526
        %v528 = vstv %s524
        %v529 = vsub.f32 %v344, %v528
        %v530 = vmul.f32 %v529, %v529
        %v531 = vadd.f32 %v527, %v530
        %v532 = vadd.f32 %v531, 1e-09
        %v533 = vlog2.pop %v532
        %v534 = vmul.f32 %v533, 0.6931472
        %v535 = vmul.f32 %v531, %v534
        %s536 = sadd.s32 %s285, 37
        %s537 = sld [smem:[#allocation5 + %s536]]
        %v538 = vstv %s537
        %v539 = vmul.f32 %v535, %v538
        %v540 = vadd.f32 %v515, %v539
        %s541 = sadd.s32 %s285, 38
        %s542 = sld [smem:[#allocation5 + %s541]]
        %v543 = vstv %s542
        %v544 = vmul.f32 %v535, %v543
        %v545 = vadd.f32 %v520, %v544
        %s546 = sadd.s32 %s285, 39
        %s547 = sld [smem:[#allocation5 + %s546]]
        %s548 = sadd.s32 %s285, 40
        %s549 = sld [smem:[#allocation5 + %s548]]
        %v550 = vstv %s547
        %v551 = vsub.f32 %v322, %v550
        %v552 = vmul.f32 %v551, %v551
        %v553 = vstv %s549
        %v554 = vsub.f32 %v344, %v553
        %v555 = vmul.f32 %v554, %v554
        %v556 = vadd.f32 %v552, %v555
        %v557 = vadd.f32 %v556, 1e-09
        %v558 = vlog2.pop %v557
        %v559 = vmul.f32 %v558, 0.6931472
        %v560 = vmul.f32 %v556, %v559
        %s561 = sadd.s32 %s285, 41
        %s562 = sld [smem:[#allocation5 + %s561]]
        %v563 = vstv %s562
        %v564 = vmul.f32 %v560, %v563
        %v565 = vadd.f32 %v540, %v564
        %s566 = sadd.s32 %s285, 42
        %s567 = sld [smem:[#allocation5 + %s566]]
        %v568 = vstv %s567
        %v569 = vmul.f32 %v560, %v568
        %v570 = vadd.f32 %v545, %v569
        %v571 = vadd.f32 %v565, 1.0
        %v572 = vmul.f32 %v571, 0.5
        %v573 = vstv %s301
        %v574 = vmul.f32 %v572, %v573
        %v575 = vadd.f32 %v570, 1.0
        %v576 = vmul.f32 %v575, 0.5
        %v577 = vstv %s323
        %v578 = vmul.f32 %v576, %v577
        %v579 = vfloor.f32 %v574
        %v580 = vfloor.f32 %v578
        %v581 = vsub.f32 %v574, %v579
        %v582 = vsub.f32 %v578, %v580
        %v583 = vld [vmem:[%s279] sm:$0xff]
        %v584 = vld [vmem:[%s279 + $0x8] sm:$0xff]
        %v585 = vld [vmem:[%s279 + $0x10] sm:$0xff]
        %v586 = vld [vmem:[%s279 + $0x18] sm:$0xff]
        %v587 = vld [vmem:[%s279 + $0x20] sm:$0xff]
        %v588 = vld [vmem:[%s279 + $0x28] sm:$0xff]
        %v589 = vld [vmem:[%s279 + $0x30] sm:$0xff]
        %v590 = vld [vmem:[%s279 + $0x38] sm:$0xff]
        %v591 = vadd.s32 %v296, 8
        %v592 = vcvt.s32.f32 %v591
        %v593 = vadd.f32 %v579, 0.0
        %v594 = vsub.f32 1.0, %v581
        %vm595 = vcmp.ge.f32.partialorder %v593, 0.0
        %s596 = ssub.f32 %s294, 1.0
        %v597 = vstv %s596
        %vm598 = vcmp.le.f32.partialorder %v593, %v597
        %vm599 = vmand %vm595, %vm598
        %v600 = vsel %vm599, 1, 0
        %v601 = vcvt.s32.f32 %v600
        %v602 = vmax.f32 %v593, 0.0
        %v603 = vmin.f32 %v597, %v602
        %v604 = vstv %s290
        %v605 = vadd.f32 %v603, %v604
        %v606 = vperm.slane %v605, 0
        %vm607 = vcmp.eq.f32.partialorder %v297, %v606
        %vm608 = vcmp.eq.f32.partialorder %v592, %v606
        %v609 = vsel %vm607, 1, 0
        %v610 = vsel %vm608, 1, 0
        %v611 = vcvt.s32.f32 %v609
        %v612 = vcvt.s32.f32 %v610
        %v613 = vmul.f32 %v594, %v601
        %v614 = vperm.slane %v613, 0
        %v615 = vmul.f32 %v611, %v614
        %v616 = vmul.f32 %v612, %v614
        %v617 = vadd.f32 %v615, 0.0
        %v618 = vadd.f32 %v616, 0.0
        %v619 = vadd.f32 %v579, 1.0
        %vm620 = vcmp.ge.f32.partialorder %v619, 0.0
        %vm621 = vcmp.le.f32.partialorder %v619, %v597
        %vm622 = vmand %vm620, %vm621
        %v623 = vsel %vm622, 1, 0
        %v624 = vcvt.s32.f32 %v623
        %v625 = vmax.f32 %v619, 0.0
        %v626 = vmin.f32 %v597, %v625
        %v627 = vadd.f32 %v626, %v604
        %v628 = vperm.slane %v627, 0
        %vm629 = vcmp.eq.f32.partialorder %v297, %v628
        %vm630 = vcmp.eq.f32.partialorder %v592, %v628
        %v631 = vsel %vm629, 1, 0
        %v632 = vsel %vm630, 1, 0
        %v633 = vcvt.s32.f32 %v631
        %v634 = vcvt.s32.f32 %v632
        %v635 = vmul.f32 %v581, %v624
        %v636 = vperm.slane %v635, 0
        %v637 = vmul.f32 %v633, %v636
        %v638 = vmul.f32 %v634, %v636
        %v639 = vadd.f32 %v617, %v637
        %v640 = vadd.f32 %v618, %v638
        %v641 = vadd.f32 %v580, 0.0
        %v642 = vsub.f32 1.0, %v582
        %vm643 = vcmp.ge.f32.partialorder %v641, 0.0
        %vm644 = vcmp.le.f32.partialorder %v641, %v577
        %vm645 = vmand %vm643, %vm644
        %v646 = vsel %vm645, 1, 0
        %v647 = vcvt.s32.f32 %v646
        %v648 = vmax.f32 %v641, 0.0
        %v649 = vmin.f32 %v577, %v648
        %v650 = vstv %s292
        %v651 = vadd.f32 %v649, %v650
        %v652 = vperm.slane %v651, 0
        %vm653 = vcmp.eq.f32.partialorder %v297, %v652
        %vm654 = vcmp.eq.f32.partialorder %v592, %v652
        %v655 = vsel %vm653, 1, 0
        %v656 = vsel %vm654, 1, 0
        %v657 = vcvt.s32.f32 %v655
        %v658 = vcvt.s32.f32 %v656
        %v659 = vmul.f32 %v642, %v647
        %v660 = vperm.slane %v659, 0
        %v661 = vmul.f32 %v657, %v660
        %v662 = vmul.f32 %v658, %v660
        %v663 = vadd.f32 %v661, 0.0
        %v664 = vadd.f32 %v662, 0.0
        %v665 = vadd.f32 %v580, 1.0
        %vm666 = vcmp.ge.f32.partialorder %v665, 0.0
        %vm667 = vcmp.le.f32.partialorder %v665, %v577
        %vm668 = vmand %vm666, %vm667
        %v669 = vsel %vm668, 1, 0
        %v670 = vcvt.s32.f32 %v669
        %v671 = vmax.f32 %v665, 0.0
        %v672 = vmin.f32 %v577, %v671
        %v673 = vadd.f32 %v672, %v650
        %v674 = vperm.slane %v673, 0
        %vm675 = vcmp.eq.f32.partialorder %v297, %v674
        %vm676 = vcmp.eq.f32.partialorder %v592, %v674
        %v677 = vsel %vm675, 1, 0
        %v678 = vsel %vm676, 1, 0
        %v679 = vcvt.s32.f32 %v677
        %v680 = vcvt.s32.f32 %v678
        %v681 = vmul.f32 %v582, %v670
        %v682 = vperm.slane %v681, 0
        %v683 = vmul.f32 %v679, %v682
        %v684 = vmul.f32 %v680, %v682
        %v685 = vadd.f32 %v663, %v683
        %v686 = vadd.f32 %v664, %v684
        %vm687 = vcmask 130048
        %v689 = vsel %vm687, %v583, 0
        %v692 = vsel %vm687, %v584, 0
        %v695 = vsel %vm687, %v585, 0
        %v698 = vsel %vm687, %v586, 0
        %v701 = vsel %vm687, %v587, 0
        %v704 = vsel %vm687, %v588, 0
        %v707 = vsel %vm687, %v589, 0
        %v710 = vsel %vm687, %v590, 0
        %712 = vmatpush.msra.mxu0 0.0
        %713 = vmatpush.msra.mxu0 0.0
        %714 = vmatpush.msra.mxu0 0.0
        %715 = vmatpush.msra.mxu0 0.0
        %716 = vmatpush.msra.mxu0 0.0
        %717 = vmatpush.msra.mxu0 0.0
        %718 = vmatpush.msra.mxu0 0.0
        %719 = vmatpush.msra.mxu0 0.0
        %720 = vmatpush.msra.mxu0 0.0
        %721 = vmatpush.msra.mxu0 0.0
        %722 = vmatpush.msra.mxu0 0.0
        %723 = vmatpush.msra.mxu0 0.0
        %724 = vmatpush.msra.mxu0 0.0
        %725 = vmatpush.msra.mxu0 0.0
        %726 = vmatpush.msra.mxu0 %v640
        %727 = vmatpush.msra.mxu0 %v639
        %728 = vmatmul.f32.gmra.mxu0 %v689
        %v729 = vpop.f32.mrf.mxu0
        %v730 = vadd.f32 0.0, %v729
        %731 = vmatmul.f32.gmra.mxu0 %v692
        %v732 = vpop.f32.mrf.mxu0
        %v733 = vadd.f32 0.0, %v732
        %734 = vmatmul.f32.gmra.mxu0 %v695
        %v735 = vpop.f32.mrf.mxu0
        %v736 = vadd.f32 0.0, %v735
        %737 = vmatmul.f32.gmra.mxu0 %v698
        %v738 = vpop.f32.mrf.mxu0
        %v739 = vadd.f32 0.0, %v738
        %740 = vmatmul.f32.gmra.mxu0 %v701
        %v741 = vpop.f32.mrf.mxu0
        %v742 = vadd.f32 0.0, %v741
        %743 = vmatmul.f32.gmra.mxu0 %v704
        %v744 = vpop.f32.mrf.mxu0
        %v745 = vadd.f32 0.0, %v744
        %746 = vmatmul.f32.gmra.mxu0 %v707
        %v747 = vpop.f32.mrf.mxu0
        %v748 = vadd.f32 0.0, %v747
        %749 = vmatmul.f32.gmra.mxu0 %v710
        %v750 = vpop.f32.mrf.mxu0
        %v751 = vadd.f32 0.0, %v750
        %752 = vdwg.mxu0
        %v753 = vmul.f32 %v685, %v730
        %v754 = vmul.f32 %v686, %v733
        %v755 = vadd.f32 %v753, %v754
        %v756 = vrot.slane %v755, 4
        %v757 = vadd.f32 %v755, %v756
        %v758 = vrot.slane %v757, 2
        %v759 = vadd.f32 %v757, %v758
        %v760 = vrot.slane %v759, 1
        %v761 = vadd.f32 %v759, %v760
        %762 = vst [vmem:[#allocation2] sm:$0x1] %v761
        %v763 = vmul.f32 %v685, %v736
        %v764 = vmul.f32 %v686, %v739
        %v765 = vadd.f32 %v763, %v764
        %v766 = vrot.slane %v765, 4
        %v767 = vadd.f32 %v765, %v766
        %v768 = vrot.slane %v767, 2
        %v769 = vadd.f32 %v767, %v768
        %v770 = vrot.slane %v769, 1
        %v771 = vadd.f32 %v769, %v770
        %772 = vst [vmem:[#allocation2 + $0x8] sm:$0x1] %v771
        %v773 = vmul.f32 %v685, %v742
        %v774 = vmul.f32 %v686, %v745
        %v775 = vadd.f32 %v773, %v774
        %v776 = vrot.slane %v775, 4
        %v777 = vadd.f32 %v775, %v776
        %v778 = vrot.slane %v777, 2
        %v779 = vadd.f32 %v777, %v778
        %v780 = vrot.slane %v779, 1
        %v781 = vadd.f32 %v779, %v780
        %782 = vst [vmem:[#allocation2 + $0x10] sm:$0x1] %v781
        %v783 = vmul.f32 %v685, %v748
        %v784 = vmul.f32 %v686, %v751
        %v785 = vadd.f32 %v783, %v784
        %v786 = vrot.slane %v785, 4
        %v787 = vadd.f32 %v785, %v786
        %v788 = vrot.slane %v787, 2
        %v789 = vadd.f32 %v787, %v788
        %v790 = vrot.slane %v789, 1
        %v791 = vadd.f32 %v789, %v790
        %792 = vst [vmem:[#allocation2 + $0x18] sm:$0x1] %v791
        %v793 = vperm.slane %v605, 1
        %vm794 = vcmp.eq.f32.partialorder %v297, %v793
        %vm795 = vcmp.eq.f32.partialorder %v592, %v793
        %v796 = vsel %vm794, 1, 0
        %v797 = vsel %vm795, 1, 0
        %v798 = vcvt.s32.f32 %v796
        %v799 = vcvt.s32.f32 %v797
        %v800 = vperm.slane %v613, 1
        %v801 = vmul.f32 %v798, %v800
        %v802 = vmul.f32 %v799, %v800
        %v803 = vadd.f32 %v801, 0.0
        %v804 = vadd.f32 %v802, 0.0
        %v805 = vperm.slane %v627, 1
        %vm806 = vcmp.eq.f32.partialorder %v297, %v805
        %vm807 = vcmp.eq.f32.partialorder %v592, %v805
        %v808 = vsel %vm806, 1, 0
        %v809 = vsel %vm807, 1, 0
        %v810 = vcvt.s32.f32 %v808
        %v811 = vcvt.s32.f32 %v809
        %v812 = vperm.slane %v635, 1
        %v813 = vmul.f32 %v810, %v812
        %v814 = vmul.f32 %v811, %v812
        %v815 = vadd.f32 %v803, %v813
        %v816 = vadd.f32 %v804, %v814
        %v817 = vperm.slane %v651, 1
        %vm818 = vcmp.eq.f32.partialorder %v297, %v817
        %vm819 = vcmp.eq.f32.partialorder %v592, %v817
        %v820 = vsel %vm818, 1, 0
        %v821 = vsel %vm819, 1, 0
        %v822 = vcvt.s32.f32 %v820
        %v823 = vcvt.s32.f32 %v821
        %v824 = vperm.slane %v659, 1
        %v825 = vmul.f32 %v822, %v824
        %v826 = vmul.f32 %v823, %v824
        %v827 = vadd.f32 %v825, 0.0
        %v828 = vadd.f32 %v826, 0.0
        %v829 = vperm.slane %v673, 1
        %vm830 = vcmp.eq.f32.partialorder %v297, %v829
        %vm831 = vcmp.eq.f32.partialorder %v592, %v829
        %v832 = vsel %vm830, 1, 0
        %v833 = vsel %vm831, 1, 0
        %v834 = vcvt.s32.f32 %v832
        %v835 = vcvt.s32.f32 %v833
        %v836 = vperm.slane %v681, 1
        %v837 = vmul.f32 %v834, %v836
        %v838 = vmul.f32 %v835, %v836
        %v839 = vadd.f32 %v827, %v837
        %v840 = vadd.f32 %v828, %v838
        %841 = vmatpush.msra.mxu0 0.0
        %842 = vmatpush.msra.mxu0 0.0
        %843 = vmatpush.msra.mxu0 0.0
        %844 = vmatpush.msra.mxu0 0.0
        %845 = vmatpush.msra.mxu0 0.0
        %846 = vmatpush.msra.mxu0 0.0
        %847 = vmatpush.msra.mxu0 0.0
        %848 = vmatpush.msra.mxu0 0.0
        %849 = vmatpush.msra.mxu0 0.0
        %850 = vmatpush.msra.mxu0 0.0
        %851 = vmatpush.msra.mxu0 0.0
        %852 = vmatpush.msra.mxu0 0.0
        %853 = vmatpush.msra.mxu0 0.0
        %854 = vmatpush.msra.mxu0 0.0
        %855 = vmatpush.msra.mxu0 %v816
        %856 = vmatpush.msra.mxu0 %v815
        %857 = vmatmul.f32.gmra.mxu0 %v689
        %v858 = vpop.f32.mrf.mxu0
        %v859 = vadd.f32 0.0, %v858
        %860 = vmatmul.f32.gmra.mxu0 %v692
        %v861 = vpop.f32.mrf.mxu0
        %v862 = vadd.f32 0.0, %v861
        %863 = vmatmul.f32.gmra.mxu0 %v695
        %v864 = vpop.f32.mrf.mxu0
        %v865 = vadd.f32 0.0, %v864
        %866 = vmatmul.f32.gmra.mxu0 %v698
        %v867 = vpop.f32.mrf.mxu0
        %v868 = vadd.f32 0.0, %v867
        %869 = vmatmul.f32.gmra.mxu0 %v701
        %v870 = vpop.f32.mrf.mxu0
        %v871 = vadd.f32 0.0, %v870
        %872 = vmatmul.f32.gmra.mxu0 %v704
        %v873 = vpop.f32.mrf.mxu0
        %v874 = vadd.f32 0.0, %v873
        %875 = vmatmul.f32.gmra.mxu0 %v707
        %v876 = vpop.f32.mrf.mxu0
        %v877 = vadd.f32 0.0, %v876
        %878 = vmatmul.f32.gmra.mxu0 %v710
        %v879 = vpop.f32.mrf.mxu0
        %v880 = vadd.f32 0.0, %v879
        %881 = vdwg.mxu0
        %v882 = vmul.f32 %v839, %v859
        %v883 = vmul.f32 %v840, %v862
        %v884 = vadd.f32 %v882, %v883
        %v885 = vrot.slane %v884, 4
        %v886 = vadd.f32 %v884, %v885
        %v887 = vrot.slane %v886, 2
        %v888 = vadd.f32 %v886, %v887
        %v889 = vrot.slane %v888, 1
        %v890 = vadd.f32 %v888, %v889
        %891 = vst [vmem:[#allocation2 + $0x1] sm:$0x1] %v890
        %v892 = vmul.f32 %v839, %v865
        %v893 = vmul.f32 %v840, %v868
        %v894 = vadd.f32 %v892, %v893
        %v895 = vrot.slane %v894, 4
        %v896 = vadd.f32 %v894, %v895
        %v897 = vrot.slane %v896, 2
        %v898 = vadd.f32 %v896, %v897
        %v899 = vrot.slane %v898, 1
        %v900 = vadd.f32 %v898, %v899
        %901 = vst [vmem:[#allocation2 + $0x9] sm:$0x1] %v900
        %v902 = vmul.f32 %v839, %v871
        %v903 = vmul.f32 %v840, %v874
        %v904 = vadd.f32 %v902, %v903
        %v905 = vrot.slane %v904, 4
        %v906 = vadd.f32 %v904, %v905
        %v907 = vrot.slane %v906, 2
        %v908 = vadd.f32 %v906, %v907
        %v909 = vrot.slane %v908, 1
        %v910 = vadd.f32 %v908, %v909
        %911 = vst [vmem:[#allocation2 + $0x11] sm:$0x1] %v910
        %v912 = vmul.f32 %v839, %v877
        %v913 = vmul.f32 %v840, %v880
        %v914 = vadd.f32 %v912, %v913
        %v915 = vrot.slane %v914, 4
        %v916 = vadd.f32 %v914, %v915
        %v917 = vrot.slane %v916, 2
        %v918 = vadd.f32 %v916, %v917
        %v919 = vrot.slane %v918, 1
        %v920 = vadd.f32 %v918, %v919
        %921 = vst [vmem:[#allocation2 + $0x19] sm:$0x1] %v920
        %v922 = vperm.slane %v605, 2
        %vm923 = vcmp.eq.f32.partialorder %v297, %v922
        %vm924 = vcmp.eq.f32.partialorder %v592, %v922
        %v925 = vsel %vm923, 1, 0
        %v926 = vsel %vm924, 1, 0
        %v927 = vcvt.s32.f32 %v925
        %v928 = vcvt.s32.f32 %v926
        %v929 = vperm.slane %v613, 2
        %v930 = vmul.f32 %v927, %v929
        %v931 = vmul.f32 %v928, %v929
        %v932 = vadd.f32 %v930, 0.0
        %v933 = vadd.f32 %v931, 0.0
        %v934 = vperm.slane %v627, 2
        %vm935 = vcmp.eq.f32.partialorder %v297, %v934
        %vm936 = vcmp.eq.f32.partialorder %v592, %v934
        %v937 = vsel %vm935, 1, 0
        %v938 = vsel %vm936, 1, 0
        %v939 = vcvt.s32.f32 %v937
        %v940 = vcvt.s32.f32 %v938
        %v941 = vperm.slane %v635, 2
        %v942 = vmul.f32 %v939, %v941
        %v943 = vmul.f32 %v940, %v941
        %v944 = vadd.f32 %v932, %v942
        %v945 = vadd.f32 %v933, %v943
        %v946 = vperm.slane %v651, 2
        %vm947 = vcmp.eq.f32.partialorder %v297, %v946
        %vm948 = vcmp.eq.f32.partialorder %v592, %v946
        %v949 = vsel %vm947, 1, 0
        %v950 = vsel %vm948, 1, 0
        %v951 = vcvt.s32.f32 %v949
        %v952 = vcvt.s32.f32 %v950
        %v953 = vperm.slane %v659, 2
        %v954 = vmul.f32 %v951, %v953
        %v955 = vmul.f32 %v952, %v953
        %v956 = vadd.f32 %v954, 0.0
        %v957 = vadd.f32 %v955, 0.0
        %v958 = vperm.slane %v673, 2
        %vm959 = vcmp.eq.f32.partialorder %v297, %v958
        %vm960 = vcmp.eq.f32.partialorder %v592, %v958
        %v961 = vsel %vm959, 1, 0
        %v962 = vsel %vm960, 1, 0
        %v963 = vcvt.s32.f32 %v961
        %v964 = vcvt.s32.f32 %v962
        %v965 = vperm.slane %v681, 2
        %v966 = vmul.f32 %v963, %v965
        %v967 = vmul.f32 %v964, %v965
        %v968 = vadd.f32 %v956, %v966
        %v969 = vadd.f32 %v957, %v967
        %970 = vmatpush.msra.mxu0 0.0
        %971 = vmatpush.msra.mxu0 0.0
        %972 = vmatpush.msra.mxu0 0.0
        %973 = vmatpush.msra.mxu0 0.0
        %974 = vmatpush.msra.mxu0 0.0
        %975 = vmatpush.msra.mxu0 0.0
        %976 = vmatpush.msra.mxu0 0.0
        %977 = vmatpush.msra.mxu0 0.0
        %978 = vmatpush.msra.mxu0 0.0
        %979 = vmatpush.msra.mxu0 0.0
        %980 = vmatpush.msra.mxu0 0.0
        %981 = vmatpush.msra.mxu0 0.0
        %982 = vmatpush.msra.mxu0 0.0
        %983 = vmatpush.msra.mxu0 0.0
        %984 = vmatpush.msra.mxu0 %v945
        %985 = vmatpush.msra.mxu0 %v944
        %986 = vmatmul.f32.gmra.mxu0 %v689
        %v987 = vpop.f32.mrf.mxu0
        %v988 = vadd.f32 0.0, %v987
        %989 = vmatmul.f32.gmra.mxu0 %v692
        %v990 = vpop.f32.mrf.mxu0
        %v991 = vadd.f32 0.0, %v990
        %992 = vmatmul.f32.gmra.mxu0 %v695
        %v993 = vpop.f32.mrf.mxu0
        %v994 = vadd.f32 0.0, %v993
        %995 = vmatmul.f32.gmra.mxu0 %v698
        %v996 = vpop.f32.mrf.mxu0
        %v997 = vadd.f32 0.0, %v996
        %998 = vmatmul.f32.gmra.mxu0 %v701
        %v999 = vpop.f32.mrf.mxu0
        %v1000 = vadd.f32 0.0, %v999
        %1001 = vmatmul.f32.gmra.mxu0 %v704
        %v1002 = vpop.f32.mrf.mxu0
        %v1003 = vadd.f32 0.0, %v1002
        %1004 = vmatmul.f32.gmra.mxu0 %v707
        %v1005 = vpop.f32.mrf.mxu0
        %v1006 = vadd.f32 0.0, %v1005
        %1007 = vmatmul.f32.gmra.mxu0 %v710
        %v1008 = vpop.f32.mrf.mxu0
        %v1009 = vadd.f32 0.0, %v1008
        %1010 = vdwg.mxu0
        %v1011 = vmul.f32 %v968, %v988
        %v1012 = vmul.f32 %v969, %v991
        %v1013 = vadd.f32 %v1011, %v1012
        %v1014 = vrot.slane %v1013, 4
        %v1015 = vadd.f32 %v1013, %v1014
        %v1016 = vrot.slane %v1015, 2
        %v1017 = vadd.f32 %v1015, %v1016
        %v1018 = vrot.slane %v1017, 1
        %v1019 = vadd.f32 %v1017, %v1018
        %1020 = vst [vmem:[#allocation2 + $0x2] sm:$0x1] %v1019
        %v1021 = vmul.f32 %v968, %v994
        %v1022 = vmul.f32 %v969, %v997
        %v1023 = vadd.f32 %v1021, %v1022
        %v1024 = vrot.slane %v1023, 4
        %v1025 = vadd.f32 %v1023, %v1024
        %v1026 = vrot.slane %v1025, 2
        %v1027 = vadd.f32 %v1025, %v1026
        %v1028 = vrot.slane %v1027, 1
        %v1029 = vadd.f32 %v1027, %v1028
        %1030 = vst [vmem:[#allocation2 + $0xa] sm:$0x1] %v1029
        %v1031 = vmul.f32 %v968, %v1000
        %v1032 = vmul.f32 %v969, %v1003
        %v1033 = vadd.f32 %v1031, %v1032
        %v1034 = vrot.slane %v1033, 4
        %v1035 = vadd.f32 %v1033, %v1034
        %v1036 = vrot.slane %v1035, 2
        %v1037 = vadd.f32 %v1035, %v1036
        %v1038 = vrot.slane %v1037, 1
        %v1039 = vadd.f32 %v1037, %v1038
        %1040 = vst [vmem:[#allocation2 + $0x12] sm:$0x1] %v1039
        %v1041 = vmul.f32 %v968, %v1006
        %v1042 = vmul.f32 %v969, %v1009
        %v1043 = vadd.f32 %v1041, %v1042
        %v1044 = vrot.slane %v1043, 4
        %v1045 = vadd.f32 %v1043, %v1044
        %v1046 = vrot.slane %v1045, 2
        %v1047 = vadd.f32 %v1045, %v1046
        %v1048 = vrot.slane %v1047, 1
        %v1049 = vadd.f32 %v1047, %v1048
        %1050 = vst [vmem:[#allocation2 + $0x1a] sm:$0x1] %v1049
        %v1051 = vperm.slane %v605, 3
        %vm1052 = vcmp.eq.f32.partialorder %v297, %v1051
        %vm1053 = vcmp.eq.f32.partialorder %v592, %v1051
        %v1054 = vsel %vm1052, 1, 0
        %v1055 = vsel %vm1053, 1, 0
        %v1056 = vcvt.s32.f32 %v1054
        %v1057 = vcvt.s32.f32 %v1055
        %v1058 = vperm.slane %v613, 3
        %v1059 = vmul.f32 %v1056, %v1058
        %v1060 = vmul.f32 %v1057, %v1058
        %v1061 = vadd.f32 %v1059, 0.0
        %v1062 = vadd.f32 %v1060, 0.0
        %v1063 = vperm.slane %v627, 3
        %vm1064 = vcmp.eq.f32.partialorder %v297, %v1063
        %vm1065 = vcmp.eq.f32.partialorder %v592, %v1063
        %v1066 = vsel %vm1064, 1, 0
        %v1067 = vsel %vm1065, 1, 0
        %v1068 = vcvt.s32.f32 %v1066
        %v1069 = vcvt.s32.f32 %v1067
        %v1070 = vperm.slane %v635, 3
        %v1071 = vmul.f32 %v1068, %v1070
        %v1072 = vmul.f32 %v1069, %v1070
        %v1073 = vadd.f32 %v1061, %v1071
        %v1074 = vadd.f32 %v1062, %v1072
        %v1075 = vperm.slane %v651, 3
        %vm1076 = vcmp.eq.f32.partialorder %v297, %v1075
        %vm1077 = vcmp.eq.f32.partialorder %v592, %v1075
        %v1078 = vsel %vm1076, 1, 0
        %v1079 = vsel %vm1077, 1, 0
        %v1080 = vcvt.s32.f32 %v1078
        %v1081 = vcvt.s32.f32 %v1079
        %v1082 = vperm.slane %v659, 3
        %v1083 = vmul.f32 %v1080, %v1082
        %v1084 = vmul.f32 %v1081, %v1082
        %v1085 = vadd.f32 %v1083, 0.0
        %v1086 = vadd.f32 %v1084, 0.0
        %v1087 = vperm.slane %v673, 3
        %vm1088 = vcmp.eq.f32.partialorder %v297, %v1087
        %vm1089 = vcmp.eq.f32.partialorder %v592, %v1087
        %v1090 = vsel %vm1088, 1, 0
        %v1091 = vsel %vm1089, 1, 0
        %v1092 = vcvt.s32.f32 %v1090
        %v1093 = vcvt.s32.f32 %v1091
        %v1094 = vperm.slane %v681, 3
        %v1095 = vmul.f32 %v1092, %v1094
        %v1096 = vmul.f32 %v1093, %v1094
        %v1097 = vadd.f32 %v1085, %v1095
        %v1098 = vadd.f32 %v1086, %v1096
        %1099 = vmatpush.msra.mxu0 0.0
        %1100 = vmatpush.msra.mxu0 0.0
        %1101 = vmatpush.msra.mxu0 0.0
        %1102 = vmatpush.msra.mxu0 0.0
        %1103 = vmatpush.msra.mxu0 0.0
        %1104 = vmatpush.msra.mxu0 0.0
        %1105 = vmatpush.msra.mxu0 0.0
        %1106 = vmatpush.msra.mxu0 0.0
        %1107 = vmatpush.msra.mxu0 0.0
        %1108 = vmatpush.msra.mxu0 0.0
        %1109 = vmatpush.msra.mxu0 0.0
        %1110 = vmatpush.msra.mxu0 0.0
        %1111 = vmatpush.msra.mxu0 0.0
        %1112 = vmatpush.msra.mxu0 0.0
        %1113 = vmatpush.msra.mxu0 %v1074
        %1114 = vmatpush.msra.mxu0 %v1073
        %1115 = vmatmul.f32.gmra.mxu0 %v689
        %v1116 = vpop.f32.mrf.mxu0
        %v1117 = vadd.f32 0.0, %v1116
        %1118 = vmatmul.f32.gmra.mxu0 %v692
        %v1119 = vpop.f32.mrf.mxu0
        %v1120 = vadd.f32 0.0, %v1119
        %1121 = vmatmul.f32.gmra.mxu0 %v695
        %v1122 = vpop.f32.mrf.mxu0
        %v1123 = vadd.f32 0.0, %v1122
        %1124 = vmatmul.f32.gmra.mxu0 %v698
        %v1125 = vpop.f32.mrf.mxu0
        %v1126 = vadd.f32 0.0, %v1125
        %1127 = vmatmul.f32.gmra.mxu0 %v701
        %v1128 = vpop.f32.mrf.mxu0
        %v1129 = vadd.f32 0.0, %v1128
        %1130 = vmatmul.f32.gmra.mxu0 %v704
        %v1131 = vpop.f32.mrf.mxu0
        %v1132 = vadd.f32 0.0, %v1131
        %1133 = vmatmul.f32.gmra.mxu0 %v707
        %v1134 = vpop.f32.mrf.mxu0
        %v1135 = vadd.f32 0.0, %v1134
        %1136 = vmatmul.f32.gmra.mxu0 %v710
        %v1137 = vpop.f32.mrf.mxu0
        %v1138 = vadd.f32 0.0, %v1137
        %1139 = vdwg.mxu0
        %v1140 = vmul.f32 %v1097, %v1117
        %v1141 = vmul.f32 %v1098, %v1120
        %v1142 = vadd.f32 %v1140, %v1141
        %v1143 = vrot.slane %v1142, 4
        %v1144 = vadd.f32 %v1142, %v1143
        %v1145 = vrot.slane %v1144, 2
        %v1146 = vadd.f32 %v1144, %v1145
        %v1147 = vrot.slane %v1146, 1
        %v1148 = vadd.f32 %v1146, %v1147
        %1149 = vst [vmem:[#allocation2 + $0x3] sm:$0x1] %v1148
        %v1150 = vmul.f32 %v1097, %v1123
        %v1151 = vmul.f32 %v1098, %v1126
        %v1152 = vadd.f32 %v1150, %v1151
        %v1153 = vrot.slane %v1152, 4
        %v1154 = vadd.f32 %v1152, %v1153
        %v1155 = vrot.slane %v1154, 2
        %v1156 = vadd.f32 %v1154, %v1155
        %v1157 = vrot.slane %v1156, 1
        %v1158 = vadd.f32 %v1156, %v1157
        %1159 = vst [vmem:[#allocation2 + $0xb] sm:$0x1] %v1158
        %v1160 = vmul.f32 %v1097, %v1129
        %v1161 = vmul.f32 %v1098, %v1132
        %v1162 = vadd.f32 %v1160, %v1161
        %v1163 = vrot.slane %v1162, 4
        %v1164 = vadd.f32 %v1162, %v1163
        %v1165 = vrot.slane %v1164, 2
        %v1166 = vadd.f32 %v1164, %v1165
        %v1167 = vrot.slane %v1166, 1
        %v1168 = vadd.f32 %v1166, %v1167
        %1169 = vst [vmem:[#allocation2 + $0x13] sm:$0x1] %v1168
        %v1170 = vmul.f32 %v1097, %v1135
        %v1171 = vmul.f32 %v1098, %v1138
        %v1172 = vadd.f32 %v1170, %v1171
        %v1173 = vrot.slane %v1172, 4
        %v1174 = vadd.f32 %v1172, %v1173
        %v1175 = vrot.slane %v1174, 2
        %v1176 = vadd.f32 %v1174, %v1175
        %v1177 = vrot.slane %v1176, 1
        %v1178 = vadd.f32 %v1176, %v1177
        %1179 = vst [vmem:[#allocation2 + $0x1b] sm:$0x1] %v1178
        %v1180 = vperm.slane %v605, 4
        %vm1181 = vcmp.eq.f32.partialorder %v297, %v1180
        %vm1182 = vcmp.eq.f32.partialorder %v592, %v1180
        %v1183 = vsel %vm1181, 1, 0
        %v1184 = vsel %vm1182, 1, 0
        %v1185 = vcvt.s32.f32 %v1183
        %v1186 = vcvt.s32.f32 %v1184
        %v1187 = vperm.slane %v613, 4
        %v1188 = vmul.f32 %v1185, %v1187
        %v1189 = vmul.f32 %v1186, %v1187
        %v1190 = vadd.f32 %v1188, 0.0
        %v1191 = vadd.f32 %v1189, 0.0
        %v1192 = vperm.slane %v627, 4
        %vm1193 = vcmp.eq.f32.partialorder %v297, %v1192
        %vm1194 = vcmp.eq.f32.partialorder %v592, %v1192
        %v1195 = vsel %vm1193, 1, 0
        %v1196 = vsel %vm1194, 1, 0
        %v1197 = vcvt.s32.f32 %v1195
        %v1198 = vcvt.s32.f32 %v1196
        %v1199 = vperm.slane %v635, 4
        %v1200 = vmul.f32 %v1197, %v1199
        %v1201 = vmul.f32 %v1198, %v1199
        %v1202 = vadd.f32 %v1190, %v1200
        %v1203 = vadd.f32 %v1191, %v1201
        %v1204 = vperm.slane %v651, 4
        %vm1205 = vcmp.eq.f32.partialorder %v297, %v1204
        %vm1206 = vcmp.eq.f32.partialorder %v592, %v1204
        %v1207 = vsel %vm1205, 1, 0
        %v1208 = vsel %vm1206, 1, 0
        %v1209 = vcvt.s32.f32 %v1207
        %v1210 = vcvt.s32.f32 %v1208
        %v1211 = vperm.slane %v659, 4
        %v1212 = vmul.f32 %v1209, %v1211
        %v1213 = vmul.f32 %v1210, %v1211
        %v1214 = vadd.f32 %v1212, 0.0
        %v1215 = vadd.f32 %v1213, 0.0
        %v1216 = vperm.slane %v673, 4
        %vm1217 = vcmp.eq.f32.partialorder %v297, %v1216
        %vm1218 = vcmp.eq.f32.partialorder %v592, %v1216
        %v1219 = vsel %vm1217, 1, 0
        %v1220 = vsel %vm1218, 1, 0
        %v1221 = vcvt.s32.f32 %v1219
        %v1222 = vcvt.s32.f32 %v1220
        %v1223 = vperm.slane %v681, 4
        %v1224 = vmul.f32 %v1221, %v1223
        %v1225 = vmul.f32 %v1222, %v1223
        %v1226 = vadd.f32 %v1214, %v1224
        %v1227 = vadd.f32 %v1215, %v1225
        %1228 = vmatpush.msra.mxu0 0.0
        %1229 = vmatpush.msra.mxu0 0.0
        %1230 = vmatpush.msra.mxu0 0.0
        %1231 = vmatpush.msra.mxu0 0.0
        %1232 = vmatpush.msra.mxu0 0.0
        %1233 = vmatpush.msra.mxu0 0.0
        %1234 = vmatpush.msra.mxu0 0.0
        %1235 = vmatpush.msra.mxu0 0.0
        %1236 = vmatpush.msra.mxu0 0.0
        %1237 = vmatpush.msra.mxu0 0.0
        %1238 = vmatpush.msra.mxu0 0.0
        %1239 = vmatpush.msra.mxu0 0.0
        %1240 = vmatpush.msra.mxu0 0.0
        %1241 = vmatpush.msra.mxu0 0.0
        %1242 = vmatpush.msra.mxu0 %v1203
        %1243 = vmatpush.msra.mxu0 %v1202
        %1244 = vmatmul.f32.gmra.mxu0 %v689
        %v1245 = vpop.f32.mrf.mxu0
        %v1246 = vadd.f32 0.0, %v1245
        %1247 = vmatmul.f32.gmra.mxu0 %v692
        %v1248 = vpop.f32.mrf.mxu0
        %v1249 = vadd.f32 0.0, %v1248
        %1250 = vmatmul.f32.gmra.mxu0 %v695
        %v1251 = vpop.f32.mrf.mxu0
        %v1252 = vadd.f32 0.0, %v1251
        %1253 = vmatmul.f32.gmra.mxu0 %v698
        %v1254 = vpop.f32.mrf.mxu0
        %v1255 = vadd.f32 0.0, %v1254
        %1256 = vmatmul.f32.gmra.mxu0 %v701
        %v1257 = vpop.f32.mrf.mxu0
        %v1258 = vadd.f32 0.0, %v1257
        %1259 = vmatmul.f32.gmra.mxu0 %v704
        %v1260 = vpop.f32.mrf.mxu0
        %v1261 = vadd.f32 0.0, %v1260
        %1262 = vmatmul.f32.gmra.mxu0 %v707
        %v1263 = vpop.f32.mrf.mxu0
        %v1264 = vadd.f32 0.0, %v1263
        %1265 = vmatmul.f32.gmra.mxu0 %v710
        %v1266 = vpop.f32.mrf.mxu0
        %v1267 = vadd.f32 0.0, %v1266
        %1268 = vdwg.mxu0
        %v1269 = vmul.f32 %v1226, %v1246
        %v1270 = vmul.f32 %v1227, %v1249
        %v1271 = vadd.f32 %v1269, %v1270
        %v1272 = vrot.slane %v1271, 4
        %v1273 = vadd.f32 %v1271, %v1272
        %v1274 = vrot.slane %v1273, 2
        %v1275 = vadd.f32 %v1273, %v1274
        %v1276 = vrot.slane %v1275, 1
        %v1277 = vadd.f32 %v1275, %v1276
        %1278 = vst [vmem:[#allocation2 + $0x4] sm:$0x1] %v1277
        %v1279 = vmul.f32 %v1226, %v1252
        %v1280 = vmul.f32 %v1227, %v1255
        %v1281 = vadd.f32 %v1279, %v1280
        %v1282 = vrot.slane %v1281, 4
        %v1283 = vadd.f32 %v1281, %v1282
        %v1284 = vrot.slane %v1283, 2
        %v1285 = vadd.f32 %v1283, %v1284
        %v1286 = vrot.slane %v1285, 1
        %v1287 = vadd.f32 %v1285, %v1286
        %1288 = vst [vmem:[#allocation2 + $0xc] sm:$0x1] %v1287
        %v1289 = vmul.f32 %v1226, %v1258
        %v1290 = vmul.f32 %v1227, %v1261
        %v1291 = vadd.f32 %v1289, %v1290
        %v1292 = vrot.slane %v1291, 4
        %v1293 = vadd.f32 %v1291, %v1292
        %v1294 = vrot.slane %v1293, 2
        %v1295 = vadd.f32 %v1293, %v1294
        %v1296 = vrot.slane %v1295, 1
        %v1297 = vadd.f32 %v1295, %v1296
        %1298 = vst [vmem:[#allocation2 + $0x14] sm:$0x1] %v1297
        %v1299 = vmul.f32 %v1226, %v1264
        %v1300 = vmul.f32 %v1227, %v1267
        %v1301 = vadd.f32 %v1299, %v1300
        %v1302 = vrot.slane %v1301, 4
        %v1303 = vadd.f32 %v1301, %v1302
        %v1304 = vrot.slane %v1303, 2
        %v1305 = vadd.f32 %v1303, %v1304
        %v1306 = vrot.slane %v1305, 1
        %v1307 = vadd.f32 %v1305, %v1306
        %1308 = vst [vmem:[#allocation2 + $0x1c] sm:$0x1] %v1307
        %v1309 = vperm.slane %v605, 5
        %vm1310 = vcmp.eq.f32.partialorder %v297, %v1309
        %vm1311 = vcmp.eq.f32.partialorder %v592, %v1309
        %v1312 = vsel %vm1310, 1, 0
        %v1313 = vsel %vm1311, 1, 0
        %v1314 = vcvt.s32.f32 %v1312
        %v1315 = vcvt.s32.f32 %v1313
        %v1316 = vperm.slane %v613, 5
        %v1317 = vmul.f32 %v1314, %v1316
        %v1318 = vmul.f32 %v1315, %v1316
        %v1319 = vadd.f32 %v1317, 0.0
        %v1320 = vadd.f32 %v1318, 0.0
        %v1321 = vperm.slane %v627, 5
        %vm1322 = vcmp.eq.f32.partialorder %v297, %v1321
        %vm1323 = vcmp.eq.f32.partialorder %v592, %v1321
        %v1324 = vsel %vm1322, 1, 0
        %v1325 = vsel %vm1323, 1, 0
        %v1326 = vcvt.s32.f32 %v1324
        %v1327 = vcvt.s32.f32 %v1325
        %v1328 = vperm.slane %v635, 5
        %v1329 = vmul.f32 %v1326, %v1328
        %v1330 = vmul.f32 %v1327, %v1328
        %v1331 = vadd.f32 %v1319, %v1329
        %v1332 = vadd.f32 %v1320, %v1330
        %v1333 = vperm.slane %v651, 5
        %vm1334 = vcmp.eq.f32.partialorder %v297, %v1333
        %vm1335 = vcmp.eq.f32.partialorder %v592, %v1333
        %v1336 = vsel %vm1334, 1, 0
        %v1337 = vsel %vm1335, 1, 0
        %v1338 = vcvt.s32.f32 %v1336
        %v1339 = vcvt.s32.f32 %v1337
        %v1340 = vperm.slane %v659, 5
        %v1341 = vmul.f32 %v1338, %v1340
        %v1342 = vmul.f32 %v1339, %v1340
        %v1343 = vadd.f32 %v1341, 0.0
        %v1344 = vadd.f32 %v1342, 0.0
        %v1345 = vperm.slane %v673, 5
        %vm1346 = vcmp.eq.f32.partialorder %v297, %v1345
        %vm1347 = vcmp.eq.f32.partialorder %v592, %v1345
        %v1348 = vsel %vm1346, 1, 0
        %v1349 = vsel %vm1347, 1, 0
        %v1350 = vcvt.s32.f32 %v1348
        %v1351 = vcvt.s32.f32 %v1349
        %v1352 = vperm.slane %v681, 5
        %v1353 = vmul.f32 %v1350, %v1352
        %v1354 = vmul.f32 %v1351, %v1352
        %v1355 = vadd.f32 %v1343, %v1353
        %v1356 = vadd.f32 %v1344, %v1354
        %1357 = vmatpush.msra.mxu0 0.0
        %1358 = vmatpush.msra.mxu0 0.0
        %1359 = vmatpush.msra.mxu0 0.0
        %1360 = vmatpush.msra.mxu0 0.0
        %1361 = vmatpush.msra.mxu0 0.0
        %1362 = vmatpush.msra.mxu0 0.0
        %1363 = vmatpush.msra.mxu0 0.0
        %1364 = vmatpush.msra.mxu0 0.0
        %1365 = vmatpush.msra.mxu0 0.0
        %1366 = vmatpush.msra.mxu0 0.0
        %1367 = vmatpush.msra.mxu0 0.0
        %1368 = vmatpush.msra.mxu0 0.0
        %1369 = vmatpush.msra.mxu0 0.0
        %1370 = vmatpush.msra.mxu0 0.0
        %1371 = vmatpush.msra.mxu0 %v1332
        %1372 = vmatpush.msra.mxu0 %v1331
        %1373 = vmatmul.f32.gmra.mxu0 %v689
        %v1374 = vpop.f32.mrf.mxu0
        %v1375 = vadd.f32 0.0, %v1374
        %1376 = vmatmul.f32.gmra.mxu0 %v692
        %v1377 = vpop.f32.mrf.mxu0
        %v1378 = vadd.f32 0.0, %v1377
        %1379 = vmatmul.f32.gmra.mxu0 %v695
        %v1380 = vpop.f32.mrf.mxu0
        %v1381 = vadd.f32 0.0, %v1380
        %1382 = vmatmul.f32.gmra.mxu0 %v698
        %v1383 = vpop.f32.mrf.mxu0
        %v1384 = vadd.f32 0.0, %v1383
        %1385 = vmatmul.f32.gmra.mxu0 %v701
        %v1386 = vpop.f32.mrf.mxu0
        %v1387 = vadd.f32 0.0, %v1386
        %1388 = vmatmul.f32.gmra.mxu0 %v704
        %v1389 = vpop.f32.mrf.mxu0
        %v1390 = vadd.f32 0.0, %v1389
        %1391 = vmatmul.f32.gmra.mxu0 %v707
        %v1392 = vpop.f32.mrf.mxu0
        %v1393 = vadd.f32 0.0, %v1392
        %1394 = vmatmul.f32.gmra.mxu0 %v710
        %v1395 = vpop.f32.mrf.mxu0
        %v1396 = vadd.f32 0.0, %v1395
        %1397 = vdwg.mxu0
        %v1398 = vmul.f32 %v1355, %v1375
        %v1399 = vmul.f32 %v1356, %v1378
        %v1400 = vadd.f32 %v1398, %v1399
        %v1401 = vrot.slane %v1400, 4
        %v1402 = vadd.f32 %v1400, %v1401
        %v1403 = vrot.slane %v1402, 2
        %v1404 = vadd.f32 %v1402, %v1403
        %v1405 = vrot.slane %v1404, 1
        %v1406 = vadd.f32 %v1404, %v1405
        %1407 = vst [vmem:[#allocation2 + $0x5] sm:$0x1] %v1406
        %v1408 = vmul.f32 %v1355, %v1381
        %v1409 = vmul.f32 %v1356, %v1384
        %v1410 = vadd.f32 %v1408, %v1409
        %v1411 = vrot.slane %v1410, 4
        %v1412 = vadd.f32 %v1410, %v1411
        %v1413 = vrot.slane %v1412, 2
        %v1414 = vadd.f32 %v1412, %v1413
        %v1415 = vrot.slane %v1414, 1
        %v1416 = vadd.f32 %v1414, %v1415
        %1417 = vst [vmem:[#allocation2 + $0xd] sm:$0x1] %v1416
        %v1418 = vmul.f32 %v1355, %v1387
        %v1419 = vmul.f32 %v1356, %v1390
        %v1420 = vadd.f32 %v1418, %v1419
        %v1421 = vrot.slane %v1420, 4
        %v1422 = vadd.f32 %v1420, %v1421
        %v1423 = vrot.slane %v1422, 2
        %v1424 = vadd.f32 %v1422, %v1423
        %v1425 = vrot.slane %v1424, 1
        %v1426 = vadd.f32 %v1424, %v1425
        %1427 = vst [vmem:[#allocation2 + $0x15] sm:$0x1] %v1426
        %v1428 = vmul.f32 %v1355, %v1393
        %v1429 = vmul.f32 %v1356, %v1396
        %v1430 = vadd.f32 %v1428, %v1429
        %v1431 = vrot.slane %v1430, 4
        %v1432 = vadd.f32 %v1430, %v1431
        %v1433 = vrot.slane %v1432, 2
        %v1434 = vadd.f32 %v1432, %v1433
        %v1435 = vrot.slane %v1434, 1
        %v1436 = vadd.f32 %v1434, %v1435
        %1437 = vst [vmem:[#allocation2 + $0x1d] sm:$0x1] %v1436
        %v1438 = vperm.slane %v605, 6
        %vm1439 = vcmp.eq.f32.partialorder %v297, %v1438
        %vm1440 = vcmp.eq.f32.partialorder %v592, %v1438
        %v1441 = vsel %vm1439, 1, 0
        %v1442 = vsel %vm1440, 1, 0
        %v1443 = vcvt.s32.f32 %v1441
        %v1444 = vcvt.s32.f32 %v1442
        %v1445 = vperm.slane %v613, 6
        %v1446 = vmul.f32 %v1443, %v1445
        %v1447 = vmul.f32 %v1444, %v1445
        %v1448 = vadd.f32 %v1446, 0.0
        %v1449 = vadd.f32 %v1447, 0.0
        %v1450 = vperm.slane %v627, 6
        %vm1451 = vcmp.eq.f32.partialorder %v297, %v1450
        %vm1452 = vcmp.eq.f32.partialorder %v592, %v1450
        %v1453 = vsel %vm1451, 1, 0
        %v1454 = vsel %vm1452, 1, 0
        %v1455 = vcvt.s32.f32 %v1453
        %v1456 = vcvt.s32.f32 %v1454
        %v1457 = vperm.slane %v635, 6
        %v1458 = vmul.f32 %v1455, %v1457
        %v1459 = vmul.f32 %v1456, %v1457
        %v1460 = vadd.f32 %v1448, %v1458
        %v1461 = vadd.f32 %v1449, %v1459
        %v1462 = vperm.slane %v651, 6
        %vm1463 = vcmp.eq.f32.partialorder %v297, %v1462
        %vm1464 = vcmp.eq.f32.partialorder %v592, %v1462
        %v1465 = vsel %vm1463, 1, 0
        %v1466 = vsel %vm1464, 1, 0
        %v1467 = vcvt.s32.f32 %v1465
        %v1468 = vcvt.s32.f32 %v1466
        %v1469 = vperm.slane %v659, 6
        %v1470 = vmul.f32 %v1467, %v1469
        %v1471 = vmul.f32 %v1468, %v1469
        %v1472 = vadd.f32 %v1470, 0.0
        %v1473 = vadd.f32 %v1471, 0.0
        %v1474 = vperm.slane %v673, 6
        %vm1475 = vcmp.eq.f32.partialorder %v297, %v1474
        %vm1476 = vcmp.eq.f32.partialorder %v592, %v1474
        %v1477 = vsel %vm1475, 1, 0
        %v1478 = vsel %vm1476, 1, 0
        %v1479 = vcvt.s32.f32 %v1477
        %v1480 = vcvt.s32.f32 %v1478
        %v1481 = vperm.slane %v681, 6
        %v1482 = vmul.f32 %v1479, %v1481
        %v1483 = vmul.f32 %v1480, %v1481
        %v1484 = vadd.f32 %v1472, %v1482
        %v1485 = vadd.f32 %v1473, %v1483
        %1486 = vmatpush.msra.mxu0 0.0
        %1487 = vmatpush.msra.mxu0 0.0
        %1488 = vmatpush.msra.mxu0 0.0
        %1489 = vmatpush.msra.mxu0 0.0
        %1490 = vmatpush.msra.mxu0 0.0
        %1491 = vmatpush.msra.mxu0 0.0
        %1492 = vmatpush.msra.mxu0 0.0
        %1493 = vmatpush.msra.mxu0 0.0
        %1494 = vmatpush.msra.mxu0 0.0
        %1495 = vmatpush.msra.mxu0 0.0
        %1496 = vmatpush.msra.mxu0 0.0
        %1497 = vmatpush.msra.mxu0 0.0
        %1498 = vmatpush.msra.mxu0 0.0
        %1499 = vmatpush.msra.mxu0 0.0
        %1500 = vmatpush.msra.mxu0 %v1461
        %1501 = vmatpush.msra.mxu0 %v1460
        %1502 = vmatmul.f32.gmra.mxu0 %v689
        %v1503 = vpop.f32.mrf.mxu0
        %v1504 = vadd.f32 0.0, %v1503
        %1505 = vmatmul.f32.gmra.mxu0 %v692
        %v1506 = vpop.f32.mrf.mxu0
        %v1507 = vadd.f32 0.0, %v1506
        %1508 = vmatmul.f32.gmra.mxu0 %v695
        %v1509 = vpop.f32.mrf.mxu0
        %v1510 = vadd.f32 0.0, %v1509
        %1511 = vmatmul.f32.gmra.mxu0 %v698
        %v1512 = vpop.f32.mrf.mxu0
        %v1513 = vadd.f32 0.0, %v1512
        %1514 = vmatmul.f32.gmra.mxu0 %v701
        %v1515 = vpop.f32.mrf.mxu0
        %v1516 = vadd.f32 0.0, %v1515
        %1517 = vmatmul.f32.gmra.mxu0 %v704
        %v1518 = vpop.f32.mrf.mxu0
        %v1519 = vadd.f32 0.0, %v1518
        %1520 = vmatmul.f32.gmra.mxu0 %v707
        %v1521 = vpop.f32.mrf.mxu0
        %v1522 = vadd.f32 0.0, %v1521
        %1523 = vmatmul.f32.gmra.mxu0 %v710
        %v1524 = vpop.f32.mrf.mxu0
        %v1525 = vadd.f32 0.0, %v1524
        %1526 = vdwg.mxu0
        %v1527 = vmul.f32 %v1484, %v1504
        %v1528 = vmul.f32 %v1485, %v1507
        %v1529 = vadd.f32 %v1527, %v1528
        %v1530 = vrot.slane %v1529, 4
        %v1531 = vadd.f32 %v1529, %v1530
        %v1532 = vrot.slane %v1531, 2
        %v1533 = vadd.f32 %v1531, %v1532
        %v1534 = vrot.slane %v1533, 1
        %v1535 = vadd.f32 %v1533, %v1534
        %1536 = vst [vmem:[#allocation2 + $0x6] sm:$0x1] %v1535
        %v1537 = vmul.f32 %v1484, %v1510
        %v1538 = vmul.f32 %v1485, %v1513
        %v1539 = vadd.f32 %v1537, %v1538
        %v1540 = vrot.slane %v1539, 4
        %v1541 = vadd.f32 %v1539, %v1540
        %v1542 = vrot.slane %v1541, 2
        %v1543 = vadd.f32 %v1541, %v1542
        %v1544 = vrot.slane %v1543, 1
        %v1545 = vadd.f32 %v1543, %v1544
        %1546 = vst [vmem:[#allocation2 + $0xe] sm:$0x1] %v1545
        %v1547 = vmul.f32 %v1484, %v1516
        %v1548 = vmul.f32 %v1485, %v1519
        %v1549 = vadd.f32 %v1547, %v1548
        %v1550 = vrot.slane %v1549, 4
        %v1551 = vadd.f32 %v1549, %v1550
        %v1552 = vrot.slane %v1551, 2
        %v1553 = vadd.f32 %v1551, %v1552
        %v1554 = vrot.slane %v1553, 1
        %v1555 = vadd.f32 %v1553, %v1554
        %1556 = vst [vmem:[#allocation2 + $0x16] sm:$0x1] %v1555
        %v1557 = vmul.f32 %v1484, %v1522
        %v1558 = vmul.f32 %v1485, %v1525
        %v1559 = vadd.f32 %v1557, %v1558
        %v1560 = vrot.slane %v1559, 4
        %v1561 = vadd.f32 %v1559, %v1560
        %v1562 = vrot.slane %v1561, 2
        %v1563 = vadd.f32 %v1561, %v1562
        %v1564 = vrot.slane %v1563, 1
        %v1565 = vadd.f32 %v1563, %v1564
        %1566 = vst [vmem:[#allocation2 + $0x1e] sm:$0x1] %v1565
        %v1567 = vperm.slane %v605, 7
        %vm1568 = vcmp.eq.f32.partialorder %v297, %v1567
        %vm1569 = vcmp.eq.f32.partialorder %v592, %v1567
        %v1570 = vsel %vm1568, 1, 0
        %v1571 = vsel %vm1569, 1, 0
        %v1572 = vcvt.s32.f32 %v1570
        %v1573 = vcvt.s32.f32 %v1571
        %v1574 = vperm.slane %v613, 7
        %v1575 = vmul.f32 %v1572, %v1574
        %v1576 = vmul.f32 %v1573, %v1574
        %v1577 = vadd.f32 %v1575, 0.0
        %v1578 = vadd.f32 %v1576, 0.0
        %v1579 = vperm.slane %v627, 7
        %vm1580 = vcmp.eq.f32.partialorder %v297, %v1579
        %vm1581 = vcmp.eq.f32.partialorder %v592, %v1579
        %v1582 = vsel %vm1580, 1, 0
        %v1583 = vsel %vm1581, 1, 0
        %v1584 = vcvt.s32.f32 %v1582
        %v1585 = vcvt.s32.f32 %v1583
        %v1586 = vperm.slane %v635, 7
        %v1587 = vmul.f32 %v1584, %v1586
        %v1588 = vmul.f32 %v1585, %v1586
        %v1589 = vadd.f32 %v1577, %v1587
        %v1590 = vadd.f32 %v1578, %v1588
        %v1591 = vperm.slane %v651, 7
        %vm1592 = vcmp.eq.f32.partialorder %v297, %v1591
        %vm1593 = vcmp.eq.f32.partialorder %v592, %v1591
        %v1594 = vsel %vm1592, 1, 0
        %v1595 = vsel %vm1593, 1, 0
        %v1596 = vcvt.s32.f32 %v1594
        %v1597 = vcvt.s32.f32 %v1595
        %v1598 = vperm.slane %v659, 7
        %v1599 = vmul.f32 %v1596, %v1598
        %v1600 = vmul.f32 %v1597, %v1598
        %v1601 = vadd.f32 %v1599, 0.0
        %v1602 = vadd.f32 %v1600, 0.0
        %v1603 = vperm.slane %v673, 7
        %vm1604 = vcmp.eq.f32.partialorder %v297, %v1603
        %vm1605 = vcmp.eq.f32.partialorder %v592, %v1603
        %v1606 = vsel %vm1604, 1, 0
        %v1607 = vsel %vm1605, 1, 0
        %v1608 = vcvt.s32.f32 %v1606
        %v1609 = vcvt.s32.f32 %v1607
        %v1610 = vperm.slane %v681, 7
        %v1611 = vmul.f32 %v1608, %v1610
        %v1612 = vmul.f32 %v1609, %v1610
        %v1613 = vadd.f32 %v1601, %v1611
        %v1614 = vadd.f32 %v1602, %v1612
        %1615 = vmatpush.msra.mxu0 0.0
        %1616 = vmatpush.msra.mxu0 0.0
        %1617 = vmatpush.msra.mxu0 0.0
        %1618 = vmatpush.msra.mxu0 0.0
        %1619 = vmatpush.msra.mxu0 0.0
        %1620 = vmatpush.msra.mxu0 0.0
        %1621 = vmatpush.msra.mxu0 0.0
        %1622 = vmatpush.msra.mxu0 0.0
        %1623 = vmatpush.msra.mxu0 0.0
        %1624 = vmatpush.msra.mxu0 0.0
        %1625 = vmatpush.msra.mxu0 0.0
        %1626 = vmatpush.msra.mxu0 0.0
        %1627 = vmatpush.msra.mxu0 0.0
        %1628 = vmatpush.msra.mxu0 0.0
        %1629 = vmatpush.msra.mxu0 %v1590
        %1630 = vmatpush.msra.mxu0 %v1589
        %1631 = vmatmul.f32.gmra.mxu0 %v689
        %v1632 = vpop.f32.mrf.mxu0
        %v1633 = vadd.f32 0.0, %v1632
        %1634 = vmatmul.f32.gmra.mxu0 %v692
        %v1635 = vpop.f32.mrf.mxu0
        %v1636 = vadd.f32 0.0, %v1635
        %1637 = vmatmul.f32.gmra.mxu0 %v695
        %v1638 = vpop.f32.mrf.mxu0
        %v1639 = vadd.f32 0.0, %v1638
        %1640 = vmatmul.f32.gmra.mxu0 %v698
        %v1641 = vpop.f32.mrf.mxu0
        %v1642 = vadd.f32 0.0, %v1641
        %1643 = vmatmul.f32.gmra.mxu0 %v701
        %v1644 = vpop.f32.mrf.mxu0
        %v1645 = vadd.f32 0.0, %v1644
        %1646 = vmatmul.f32.gmra.mxu0 %v704
        %v1647 = vpop.f32.mrf.mxu0
        %v1648 = vadd.f32 0.0, %v1647
        %1649 = vmatmul.f32.gmra.mxu0 %v707
        %v1650 = vpop.f32.mrf.mxu0
        %v1651 = vadd.f32 0.0, %v1650
        %1652 = vmatmul.f32.gmra.mxu0 %v710
        %v1653 = vpop.f32.mrf.mxu0
        %v1654 = vadd.f32 0.0, %v1653
        %1655 = vdwg.mxu0
        %v1656 = vmul.f32 %v1613, %v1633
        %v1657 = vmul.f32 %v1614, %v1636
        %v1658 = vadd.f32 %v1656, %v1657
        %v1659 = vrot.slane %v1658, 4
        %v1660 = vadd.f32 %v1658, %v1659
        %v1661 = vrot.slane %v1660, 2
        %v1662 = vadd.f32 %v1660, %v1661
        %v1663 = vrot.slane %v1662, 1
        %v1664 = vadd.f32 %v1662, %v1663
        %1665 = vst [vmem:[#allocation2 + $0x7] sm:$0x1] %v1664
        %v1666 = vmul.f32 %v1613, %v1639
        %v1667 = vmul.f32 %v1614, %v1642
        %v1668 = vadd.f32 %v1666, %v1667
        %v1669 = vrot.slane %v1668, 4
        %v1670 = vadd.f32 %v1668, %v1669
        %v1671 = vrot.slane %v1670, 2
        %v1672 = vadd.f32 %v1670, %v1671
        %v1673 = vrot.slane %v1672, 1
        %v1674 = vadd.f32 %v1672, %v1673
        %1675 = vst [vmem:[#allocation2 + $0xf] sm:$0x1] %v1674
        %v1676 = vmul.f32 %v1613, %v1645
        %v1677 = vmul.f32 %v1614, %v1648
        %v1678 = vadd.f32 %v1676, %v1677
        %v1679 = vrot.slane %v1678, 4
        %v1680 = vadd.f32 %v1678, %v1679
        %v1681 = vrot.slane %v1680, 2
        %v1682 = vadd.f32 %v1680, %v1681
        %v1683 = vrot.slane %v1682, 1
        %v1684 = vadd.f32 %v1682, %v1683
        %1685 = vst [vmem:[#allocation2 + $0x17] sm:$0x1] %v1684
        %v1686 = vmul.f32 %v1613, %v1651
        %v1687 = vmul.f32 %v1614, %v1654
        %v1688 = vadd.f32 %v1686, %v1687
        %v1689 = vrot.slane %v1688, 4
        %v1690 = vadd.f32 %v1688, %v1689
        %v1691 = vrot.slane %v1690, 2
        %v1692 = vadd.f32 %v1690, %v1691
        %v1693 = vrot.slane %v1692, 1
        %v1694 = vadd.f32 %v1692, %v1693
        %1695 = vst [vmem:[#allocation2 + $0x1f] sm:$0x1] %v1694
        %v1696 = vld [vmem:[%s284] sm:$0xff]
        %v1697 = vld [vmem:[%s237] sm:$0xff]
        %v1698 = vld [vmem:[%s237 + $0x8] sm:$0xff]
        %v1699 = vld [vmem:[%s237 + $0x10] sm:$0xff]
        %v1700 = vld [vmem:[%s237 + $0x18] sm:$0xff]
        %v1701 = vld [vmem:[%s237 + $0x20] sm:$0xff]
        %v1702 = vld [vmem:[%s237 + $0x28] sm:$0xff]
        %v1703 = vld [vmem:[%s237 + $0x30] sm:$0xff]
        %v1704 = vld [vmem:[%s237 + $0x38] sm:$0xff]
        %v1705 = vld [vmem:[%s237 + $0x40] sm:$0xff]
        %v1706 = vld [vmem:[%s237 + $0x48] sm:$0xff]
        %v1707 = vld [vmem:[%s237 + $0x50] sm:$0xff]
        %v1708 = vld [vmem:[%s237 + $0x58] sm:$0xff]
        %v1709 = vld [vmem:[%s237 + $0x60] sm:$0xff]
        %v1710 = vld [vmem:[%s237 + $0x68] sm:$0xff]
        %v1711 = vld [vmem:[%s237 + $0x70] sm:$0xff]
        %v1712 = vld [vmem:[%s237 + $0x78] sm:$0xff]
        %v1713 = vld [vmem:[#allocation2] sm:$0xff]
        %v1714 = vld [vmem:[#allocation2 + $0x8] sm:$0xff]
        %v1715 = vld [vmem:[#allocation2 + $0x10] sm:$0xff]
        %v1716 = vld [vmem:[#allocation2 + $0x18] sm:$0xff]
        %1717 = vmatpush.msra.mxu0 %v1712
        %1718 = vmatpush.msra.mxu0 %v1711
        %1719 = vmatpush.msra.mxu0 %v1710
        %1720 = vmatpush.msra.mxu0 %v1709
        %1721 = vmatpush.msra.mxu0 %v1708
        %1722 = vmatpush.msra.mxu0 %v1707
        %1723 = vmatpush.msra.mxu0 %v1706
        %1724 = vmatpush.msra.mxu0 %v1705
        %1725 = vmatpush.msra.mxu0 %v1704
        %1726 = vmatpush.msra.mxu0 %v1703
        %1727 = vmatpush.msra.mxu0 %v1702
        %1728 = vmatpush.msra.mxu0 %v1701
        %1729 = vmatpush.msra.mxu0 %v1700
        %1730 = vmatpush.msra.mxu0 %v1699
        %1731 = vmatpush.msra.mxu0 %v1698
        %1732 = vmatpush.msra.mxu0 %v1697
        %1733 = vmatmul.f32.gmra.mxu0 %v1713
        %v1734 = vpop.f32.mrf.mxu0
        %v1735 = vadd.f32 0.0, %v1734
        %1736 = vmatmul.f32.gmra.mxu0 %v1714
        %v1737 = vpop.f32.mrf.mxu0
        %v1738 = vadd.f32 0.0, %v1737
        %1739 = vmatmul.f32.gmra.mxu0 %v1715
        %v1740 = vpop.f32.mrf.mxu0
        %v1741 = vadd.f32 0.0, %v1740
        %1742 = vmatmul.f32.gmra.mxu0 %v1716
        %v1743 = vpop.f32.mrf.mxu0
        %v1744 = vadd.f32 0.0, %v1743
        %1745 = vdwg.mxu0
        %vm1746 = vcmask 64512
        %v1748 = vsel %vm1746, %v1696, 0
        %1750 = vmatpush.msra.mxu0 0.0
        %1751 = vmatpush.msra.mxu0 0.0
        %1752 = vmatpush.msra.mxu0 0.0
        %1753 = vmatpush.msra.mxu0 0.0
        %1754 = vmatpush.msra.mxu0 0.0
        %1755 = vmatpush.msra.mxu0 0.0
        %1756 = vmatpush.msra.mxu0 0.0
        %1757 = vmatpush.msra.mxu0 0.0
        %1758 = vmatpush.msra.mxu0 0.0
        %1759 = vmatpush.msra.mxu0 0.0
        %1760 = vmatpush.msra.mxu0 0.0
        %1761 = vmatpush.msra.mxu0 0.0
        %1762 = vmatpush.msra.mxu0 0.0
        %1763 = vmatpush.msra.mxu0 0.0
        %1764 = vmatpush.msra.mxu0 0.0
        %1765 = vmatpush.msra.mxu0 %v1735
        %1766 = vmatmul.f32.gmra.mxu0 %v1748
        %v1767 = vpop.f32.mrf.mxu0
        %v1768 = vadd.f32 0.0, %v1767
        %1769 = vdwg.mxu0
        %1770 = vst [vmem:[%s273] sm:$0xff] %v1768
        %1771 = vmatpush.msra.mxu0 0.0
        %1772 = vmatpush.msra.mxu0 0.0
        %1773 = vmatpush.msra.mxu0 0.0
        %1774 = vmatpush.msra.mxu0 0.0
        %1775 = vmatpush.msra.mxu0 0.0
        %1776 = vmatpush.msra.mxu0 0.0
        %1777 = vmatpush.msra.mxu0 0.0
        %1778 = vmatpush.msra.mxu0 0.0
        %1779 = vmatpush.msra.mxu0 0.0
        %1780 = vmatpush.msra.mxu0 0.0
        %1781 = vmatpush.msra.mxu0 0.0
        %1782 = vmatpush.msra.mxu0 0.0
        %1783 = vmatpush.msra.mxu0 0.0
        %1784 = vmatpush.msra.mxu0 0.0
        %1785 = vmatpush.msra.mxu0 0.0
        %1786 = vmatpush.msra.mxu0 %v1738
        %1787 = vmatmul.f32.gmra.mxu0 %v1748
        %v1788 = vpop.f32.mrf.mxu0
        %v1789 = vadd.f32 0.0, %v1788
        %1790 = vdwg.mxu0
        %s1791 = scalar_lea.vmem %s273, 8 [#allocation10]
        %1792 = vst [vmem:[%s1791] sm:$0xff] %v1789
        %1793 = vmatpush.msra.mxu0 0.0
        %1794 = vmatpush.msra.mxu0 0.0
        %1795 = vmatpush.msra.mxu0 0.0
        %1796 = vmatpush.msra.mxu0 0.0
        %1797 = vmatpush.msra.mxu0 0.0
        %1798 = vmatpush.msra.mxu0 0.0
        %1799 = vmatpush.msra.mxu0 0.0
        %1800 = vmatpush.msra.mxu0 0.0
        %1801 = vmatpush.msra.mxu0 0.0
        %1802 = vmatpush.msra.mxu0 0.0
        %1803 = vmatpush.msra.mxu0 0.0
        %1804 = vmatpush.msra.mxu0 0.0
        %1805 = vmatpush.msra.mxu0 0.0
        %1806 = vmatpush.msra.mxu0 0.0
        %1807 = vmatpush.msra.mxu0 0.0
        %1808 = vmatpush.msra.mxu0 %v1741
        %1809 = vmatmul.f32.gmra.mxu0 %v1748
        %v1810 = vpop.f32.mrf.mxu0
        %v1811 = vadd.f32 0.0, %v1810
        %1812 = vdwg.mxu0
        %s1813 = scalar_lea.vmem %s273, 16 [#allocation10]
        %1814 = vst [vmem:[%s1813] sm:$0xff] %v1811
        %1815 = vmatpush.msra.mxu0 0.0
        %1816 = vmatpush.msra.mxu0 0.0
        %1817 = vmatpush.msra.mxu0 0.0
        %1818 = vmatpush.msra.mxu0 0.0
        %1819 = vmatpush.msra.mxu0 0.0
        %1820 = vmatpush.msra.mxu0 0.0
        %1821 = vmatpush.msra.mxu0 0.0
        %1822 = vmatpush.msra.mxu0 0.0
        %1823 = vmatpush.msra.mxu0 0.0
        %1824 = vmatpush.msra.mxu0 0.0
        %1825 = vmatpush.msra.mxu0 0.0
        %1826 = vmatpush.msra.mxu0 0.0
        %1827 = vmatpush.msra.mxu0 0.0
        %1828 = vmatpush.msra.mxu0 0.0
        %1829 = vmatpush.msra.mxu0 0.0
        %1830 = vmatpush.msra.mxu0 %v1744
        %1831 = vmatmul.f32.gmra.mxu0 %v1748
        %v1832 = vpop.f32.mrf.mxu0
        %v1833 = vadd.f32 0.0, %v1832
        %1834 = vdwg.mxu0
        %s1835 = scalar_lea.vmem %s273, 24 [#allocation10]
        %1836 = vst [vmem:[%s1835] sm:$0xff] %v1833
        %s1837 = sand.u32 %s140, 1
        %s1838 = scalar_lea.sflag [#allocation7], %s1837
        %s1839 = sand.u32 %s140, 1
        %s1840 = smul.addr %s1839, 32
        %s1841 = scalar_lea.vmem [#allocation10], %s1840
        // Predicated region
        $region45: #{tpu_custom_call.1} parent=35 // pred_check
          %p1842 = pneg %p150
        $region46: #{tpu_custom_call.1} parent=35 // pred_check_branch
          %1844 = sbr.rel (%p1842) target = $region48
        $region47: #{tpu_custom_call.1} parent=35 // pred_region
          %1846 = vsyncadd %s1838, 0
          %s1847 = smul.addr %s31, 4
          %s1848 = smul.addr %s1847, 8
          %s1849 = scalar_lea.hbm %s5, %s1848
          %s1850 = sshll.u32 %s1841, 4
          %s1851 = int_to_ptr.vmem [resolvable:$true] %s1850
          %s1852 = sshll.u32 %s1849, 4
          %s1853 = int_to_ptr.hbm [resolvable:$true] %s1852
          %1858 = dma.vmem_to_hbm [thread:$0]  %s1851, 512, %s1853, %s1838, 128, 128, 8
        $region48: #{tpu_custom_call.1} parent=35 // pred_fallthru
          _
      $region36: #{tpu_custom_call.1} parent=5 // pred_fallthru
        _
      %p1859 = scmp.le.s32.totalorder 2, %s26
      // Predicated region
      $region49: #{tpu_custom_call.1} parent=5 // pred_check
        %p1860 = pneg %p1859
      $region50: #{tpu_custom_call.1} parent=5 // pred_check_branch
        %1862 = sbr.rel (%p1860) target = $region52
      $region51: #{tpu_custom_call.1} parent=5 // pred_region
        %s1863 = ssub.s32 %s26, 2
        // Predicated region
        $region53: #{tpu_custom_call.1} parent=51 // pred_check
          %p1864 = pneg %p156
        $region54: #{tpu_custom_call.1} parent=51 // pred_check_branch
          %1866 = sbr.rel (%p1864) target = $region56
        $region55: #{tpu_custom_call.1} parent=51 // pred_region
          %s1867 = sand.u32 %s141, 1
          %s1868 = scalar_lea.sflag [#allocation7], %s1867
          %s1869 = sand.u32 %s141, 1
          %s1870 = smul.addr %s1869, 32
          %s1871 = scalar_lea.vmem [#allocation10], %s1870
          %1873 = dma.done %s1868, 512
        $region56: #{tpu_custom_call.1} parent=51 // pred_fallthru
          _
      $region52: #{tpu_custom_call.1} parent=5 // pred_fallthru
        _
    $region6: #{tpu_custom_call.1} parent=1 // loop_footer
      %s30 = sadd.s32 1, %s26
    $region7: #{tpu_custom_call.1} parent=1 // loop_footer_branch
      %25 = sbr.rel target = $region3
    $region8: #{tpu_custom_call.1} parent=1 // loop_exit
      _
    %1874 = vsyncpa [#allocation6], 1
    %s1875 = scalar_lea.sflag [#allocation6], 1
    %1876 = vsyncpa %s1875, 1
    %1877 = vsyncpa [#allocation7], 1
    %s1878 = scalar_lea.sflag [#allocation7], 1
    %1879 = vsyncpa %s1878, 1
    %1880 = vsyncpa [#allocation8], 1
    %s1881 = scalar_lea.sflag [#allocation8], 1
    %1882 = vsyncpa %s1881, 1

</llo_original>
